<compile_context>
chip_gen: v6e
topology: v6e:2x2x1
jax: 0.10.0
libtpu: 0.0.40
codegen_flags: <defaults>
</compile_context>

<pallas_src>
import jax
import jax.numpy as jnp
from jax.experimental import pallas as pl
from jax.experimental.pallas import tpu as pltpu

_K = 3  # every layer is 3x3


# ----------------------------------------------------------------------------
# Host/XLA-side factorization of each (transposed-)conv layer.
# Activation layout: X[(w_in), (ci, h_in)]  (channel-major columns).
#   conv   (s=2,p=1):        source index = 2*out + tap - 1
#   convT  (s=2,p=1,op=1):   out index    = 2*in  + tap - 1
#   A_kw[(ci,h_in),(co,h_out)] = sum_kh W[co,ci,kh,kw] * 1{h relation holds}
#   S_kw[w_out, w_in]          = 1{w relation holds}
# Out-of-range source/target indices simply never match, which implements the
# zero padding (conv) and the output cropping / output_padding (convT) exactly.
# ----------------------------------------------------------------------------
def _factorize_layer(w, b, hin, win, is_transpose):
    taps = jnp.arange(_K)[:, None, None]
    if is_transpose:
        c_in, c_out = w.shape[0], w.shape[1]
        w_io = w                                    # (Cin, Cout, kh, kw)
        hout, wout = 2 * hin, 2 * win
        sel_h = (jnp.arange(hout)[None, None, :] ==
                 2 * jnp.arange(hin)[None, :, None] + taps - 1)      # (3, hin, hout)
        sel_w = (jnp.arange(wout)[None, :, None] ==
                 2 * jnp.arange(win)[None, None, :] + taps - 1)      # (3, wout, win)
    else:
        c_out, c_in = w.shape[0], w.shape[1]
        w_io = jnp.transpose(w, (1, 0, 2, 3))       # (Cin, Cout, kh, kw)
        hout, wout = hin // 2, win // 2
        sel_h = (jnp.arange(hin)[None, :, None] ==
                 2 * jnp.arange(hout)[None, None, :] + taps - 1)     # (3, hin, hout)
        sel_w = (jnp.arange(win)[None, None, :] ==
                 2 * jnp.arange(wout)[None, :, None] + taps - 1)     # (3, wout, win)

    a = jnp.einsum('iokw,kab->wiaob', w_io, sel_h.astype(jnp.float32))
    a = a.reshape(_K, c_in * hin, c_out * hout).astype(jnp.bfloat16)  # (3, Cin*Hin, Cout*Hout)
    s = sel_w.astype(jnp.bfloat16)                                    # (3, Wout, Win)
    b_row = jnp.repeat(b, hout)[None, :].astype(jnp.float32)          # (1, Cout*Hout)
    return s, a, b_row


# ----------------------------------------------------------------------------
# Fused kernel: one image per grid step, all 6 layers chained in VMEM.
# ----------------------------------------------------------------------------
def _fused_ae_kernel(x_ref, *refs):
    """x_ref: (32, 96) f32; refs = 6 x (S_ref, A_ref, bias_ref) + o_ref (32, 96)."""
    o_ref = refs[-1]
    layer_refs = refs[:-1]
    n_layers = len(layer_refs) // 3

    x = x_ref[...].astype(jnp.bfloat16)             # (Win, Cin*Hin), lane-dense
    for l in range(n_layers):
        s_ref, a_ref, b_ref = layer_refs[3 * l:3 * l + 3]
        wout, win = s_ref.shape[1], s_ref.shape[2]
        acc = None
        for t in range(_K):                          # per-kw-tap accumulation (f32)
            s_t = s_ref[t]                           # (Wout, Win)          bf16
            a_t = a_ref[t]                           # (Cin*Hin, Cout*Hout) bf16
            if wout <= win:                          # encoder: shrink spatial first
                tmp = jnp.dot(s_t, x, preferred_element_type=jnp.float32)
                p = jnp.dot(tmp.astype(jnp.bfloat16), a_t,
                            preferred_element_type=jnp.float32)
            else:                                    # decoder: contract channels first
                tmp = jnp.dot(x, a_t, preferred_element_type=jnp.float32)
                p = jnp.dot(s_t, tmp.astype(jnp.bfloat16),
                            preferred_element_type=jnp.float32)
            acc = p if acc is None else acc + p
        y = acc + b_ref[...]                         # (Wout, Cout*Hout) + (1, Cout*Hout)
        if l < n_layers - 1:
            x = jnp.maximum(y, 0.0).astype(jnp.bfloat16)   # ReLU -> next layer input
        else:
            x = jax.nn.sigmoid(y)                    # final layer, stays f32
    o_ref[...] = x.astype(o_ref.dtype)               # (32, 96) lane-dense store


# ----------------------------------------------------------------------------
# Wrapper
# ----------------------------------------------------------------------------
_LAYERS = (("enc1", False, 32), ("enc2", False, 16), ("enc3", False, 8),
           ("dec1", True, 4), ("dec2", True, 8), ("dec3", True, 16))


def vanilla_ae_forward(params, x_nchw):
    """x_nchw: (B, 3, 32, 32) f32 -> (B, 3, 32, 32) f32  (matches VanillaAE.forward)."""
    n, c, h, w = x_nchw.shape
    assert (c, h, w) == (3, 32, 32), x_nchw.shape

    operands = []
    in_specs = [pl.BlockSpec((None, 32, 96), lambda b: (b, 0, 0))]      # per-image input
    for name, is_t, hin in _LAYERS:
        s, a, b_row = _factorize_layer(params[name][0], params[name][1], hin, hin, is_t)
        operands += [s, a, b_row]
        in_specs += [pl.BlockSpec(s.shape, lambda b: (0, 0, 0)),         # constant index_map:
                     pl.BlockSpec(a.shape, lambda b: (0, 0, 0)),         # stays resident in VMEM
                     pl.BlockSpec(b_row.shape, lambda b: (0, 0))]

    # (B, 3, 32, 32) -> (B, 32, 96): width in sublanes, (channel, height) in lanes.
    x_in = jnp.transpose(x_nchw.reshape(n, 96, 32), (0, 2, 1))

    out = pl.pallas_call(
        _fused_ae_kernel,
        out_shape=jax.ShapeDtypeStruct((n, 32, 96), jnp.float32),
        grid=(n,),
        in_specs=in_specs,
        out_specs=pl.BlockSpec((None, 32, 96), lambda b: (b, 0, 0)),
        compiler_params=pltpu.CompilerParams(dimension_semantics=("parallel",)),
    )(x_in, *operands)

    return jnp.transpose(out, (0, 2, 1)).reshape(n, 3, 32, 32)


# ----------------------------------------------------------------------------
# Parameter init (deterministic, PyTorch-default-style uniform bounds)
# ----------------------------------------------------------------------------
def _init_conv(key, c_out, c_in, k):
    kw, kb = jax.random.split(key)
    bound = 1.0 / (c_in * k * k) ** 0.5
    w = jax.random.uniform(kw, (c_out, c_in, k, k), jnp.float32, -bound, bound)
    b = jax.random.uniform(kb, (c_out,), jnp.float32, -bound, bound)
    return w, b


def _init_convT(key, c_in, c_out, k):
    kw, kb = jax.random.split(key)
    bound = 1.0 / (c_out * k * k) ** 0.5
    w = jax.random.uniform(kw, (c_in, c_out, k, k), jnp.float32, -bound, bound)
    b = jax.random.uniform(kb, (c_out,), jnp.float32, -bound, bound)
    return w, b


def init_params(key):
    keys = jax.random.split(key, 6)
    return {
        "enc1": _init_conv(keys[0], 12, 3, 3),
        "enc2": _init_conv(keys[1], 24, 12, 3),
        "enc3": _init_conv(keys[2], 48, 24, 3),
        "dec1": _init_convT(keys[3], 48, 24, 3),
        "dec2": _init_convT(keys[4], 24, 12, 3),
        "dec3": _init_convT(keys[5], 12, 3, 3),
    }


# ----------------------------------------------------------------------------
# Pure-XLA reference (lax.conv) for a numerical self-check only.
# ----------------------------------------------------------------------------
def _reference_forward(params, x):
    def conv(x, w, b):
        y = jax.lax.conv_general_dilated(
            x, w, window_strides=(2, 2), padding=((1, 1), (1, 1)),
            dimension_numbers=("NCHW", "OIHW", "NCHW"))
        return y + b[None, :, None, None]

    def convT(x, w, b):
        w_eq = jnp.transpose(w[:, :, ::-1, ::-1], (1, 0, 2, 3))   # flipped, (Cout,Cin,kh,kw)
        y = jax.lax.conv_general_dilated(
            x, w_eq, window_strides=(1, 1), padding=((1, 2), (1, 2)),
            lhs_dilation=(2, 2), dimension_numbers=("NCHW", "OIHW", "NCHW"))
        return y + b[None, :, None, None]

    hdn = jax.nn.relu(conv(x, *params["enc1"]))
    hdn = jax.nn.relu(conv(hdn, *params["enc2"]))
    hdn = jax.nn.relu(conv(hdn, *params["enc3"]))
    hdn = jax.nn.relu(convT(hdn, *params["dec1"]))
    hdn = jax.nn.relu(convT(hdn, *params["dec2"]))
    return jax.nn.sigmoid(convT(hdn, *params["dec3"]))


if __name__ == "__main__":
    key = jax.random.PRNGKey(0)
    k_params, k_x = jax.random.split(key)
    params = init_params(k_params)
    x = jax.random.uniform(k_x, (2, 3, 32, 32), jnp.float32)     # NCHW, like PyTorch

    fwd = jax.jit(vanilla_ae_forward)
    out = fwd(params, x)
    jax.block_until_ready(out)

    assert out.shape == (2, 3, 32, 32), out.shape
    assert out.dtype == jnp.float32

    # Numerical self-check vs. pure-XLA reference (loose tol: bf16 MXU operands).
    ref = jax.jit(_reference_forward)(params, x)
    err = float(jnp.max(jnp.abs(out - ref)))
    assert err < 5e-2, f"kernel/reference mismatch: max abs err = {err}"

    print("KERNEL_OK")
</pallas_src>

<mosaic_0001>
module attributes {stable_mosaic.version = 11 : i64} {
  func.func @_fused_ae_kernel(%arg0: i32, %arg1: memref<1x32x96xf32, #tpu.memory_space<vmem>>, %arg2: memref<3x16x32xbf16, #tpu.memory_space<vmem>>, %arg3: memref<3x96x192xbf16, #tpu.memory_space<vmem>>, %arg4: memref<1x192xf32, #tpu.memory_space<vmem>>, %arg5: memref<3x8x16xbf16, #tpu.memory_space<vmem>>, %arg6: memref<3x192x192xbf16, #tpu.memory_space<vmem>>, %arg7: memref<1x192xf32, #tpu.memory_space<vmem>>, %arg8: memref<3x4x8xbf16, #tpu.memory_space<vmem>>, %arg9: memref<3x192x192xbf16, #tpu.memory_space<vmem>>, %arg10: memref<1x192xf32, #tpu.memory_space<vmem>>, %arg11: memref<3x8x4xbf16, #tpu.memory_space<vmem>>, %arg12: memref<3x192x192xbf16, #tpu.memory_space<vmem>>, %arg13: memref<1x192xf32, #tpu.memory_space<vmem>>, %arg14: memref<3x16x8xbf16, #tpu.memory_space<vmem>>, %arg15: memref<3x192x192xbf16, #tpu.memory_space<vmem>>, %arg16: memref<1x192xf32, #tpu.memory_space<vmem>>, %arg17: memref<3x32x16xbf16, #tpu.memory_space<vmem>>, %arg18: memref<3x192x96xbf16, #tpu.memory_space<vmem>>, %arg19: memref<1x96xf32, #tpu.memory_space<vmem>>, %arg20: memref<1x32x96xf32, #tpu.memory_space<vmem>>) attributes {dimension_semantics = [#tpu.dimension_semantics<parallel>], iteration_bounds = array<i64: 2>, scalar_prefetch = 0 : i64, scratch_operands = 0 : i64, tpu.core_type = #tpu.core_type<tc>, window_params = [{transform_indices = @transform_0, window_bounds = array<i64: 1, 32, 96>}, {pipeline_mode = #tpu.pipeline_mode<synchronous>, transform_indices = @transform_1, window_bounds = array<i64: 3, 16, 32>}, {pipeline_mode = #tpu.pipeline_mode<synchronous>, transform_indices = @transform_2, window_bounds = array<i64: 3, 96, 192>}, {pipeline_mode = #tpu.pipeline_mode<synchronous>, transform_indices = @transform_3, window_bounds = array<i64: 1, 192>}, {pipeline_mode = #tpu.pipeline_mode<synchronous>, transform_indices = @transform_4, window_bounds = array<i64: 3, 8, 16>}, {pipeline_mode = #tpu.pipeline_mode<synchronous>, transform_indices = @transform_5, window_bounds = array<i64: 3, 192, 192>}, {pipeline_mode = #tpu.pipeline_mode<synchronous>, transform_indices = @transform_6, window_bounds = array<i64: 1, 192>}, {pipeline_mode = #tpu.pipeline_mode<synchronous>, transform_indices = @transform_7, window_bounds = array<i64: 3, 4, 8>}, {pipeline_mode = #tpu.pipeline_mode<synchronous>, transform_indices = @transform_8, window_bounds = array<i64: 3, 192, 192>}, {pipeline_mode = #tpu.pipeline_mode<synchronous>, transform_indices = @transform_9, window_bounds = array<i64: 1, 192>}, {pipeline_mode = #tpu.pipeline_mode<synchronous>, transform_indices = @transform_10, window_bounds = array<i64: 3, 8, 4>}, {pipeline_mode = #tpu.pipeline_mode<synchronous>, transform_indices = @transform_11, window_bounds = array<i64: 3, 192, 192>}, {pipeline_mode = #tpu.pipeline_mode<synchronous>, transform_indices = @transform_12, window_bounds = array<i64: 1, 192>}, {pipeline_mode = #tpu.pipeline_mode<synchronous>, transform_indices = @transform_13, window_bounds = array<i64: 3, 16, 8>}, {pipeline_mode = #tpu.pipeline_mode<synchronous>, transform_indices = @transform_14, window_bounds = array<i64: 3, 192, 192>}, {pipeline_mode = #tpu.pipeline_mode<synchronous>, transform_indices = @transform_15, window_bounds = array<i64: 1, 192>}, {pipeline_mode = #tpu.pipeline_mode<synchronous>, transform_indices = @transform_16, window_bounds = array<i64: 3, 32, 16>}, {pipeline_mode = #tpu.pipeline_mode<synchronous>, transform_indices = @transform_17, window_bounds = array<i64: 3, 192, 96>}, {pipeline_mode = #tpu.pipeline_mode<synchronous>, transform_indices = @transform_18, window_bounds = array<i64: 1, 96>}, {transform_indices = @transform_19, window_bounds = array<i64: 1, 32, 96>}]} {
    %c0 = arith.constant 0 : index
    %c0_0 = arith.constant 0 : index
    %c0_1 = arith.constant 0 : index
    %0 = vector.load %arg1[%c0, %c0_0, %c0_1] : memref<1x32x96xf32, #tpu.memory_space<vmem>>, vector<1x32x96xf32>
    %1 = vector.shape_cast %0 : vector<1x32x96xf32> to vector<32x96xf32>
    %2 = arith.truncf %1 : vector<32x96xf32> to vector<32x96xbf16>
    %c0_2 = arith.constant 0 : index
    %c0_3 = arith.constant 0 : index
    %c0_4 = arith.constant 0 : index
    %3 = vector.load %arg2[%c0_2, %c0_3, %c0_4] : memref<3x16x32xbf16, #tpu.memory_space<vmem>>, vector<1x16x32xbf16>
    %4 = vector.shape_cast %3 : vector<1x16x32xbf16> to vector<16x32xbf16>
    %c0_5 = arith.constant 0 : index
    %c0_6 = arith.constant 0 : index
    %c0_7 = arith.constant 0 : index
    %5 = vector.load %arg3[%c0_5, %c0_6, %c0_7] : memref<3x96x192xbf16, #tpu.memory_space<vmem>>, vector<1x96x192xbf16>
    %6 = vector.shape_cast %5 : vector<1x96x192xbf16> to vector<96x192xbf16>
    %cst = arith.constant dense<0.000000e+00> : vector<16x96xf32>
    %7 = tpu.matmul %4, %2, %cst {dimension_numbers = #tpu.dot_dimension_numbers<[1], [0], [0], [1], [0, 0, 1, 1], [], []>} : vector<16x32xbf16>, vector<32x96xbf16>, vector<16x96xf32> -> vector<16x96xf32>
    %8 = arith.truncf %7 : vector<16x96xf32> to vector<16x96xbf16>
    %cst_8 = arith.constant dense<0.000000e+00> : vector<16x192xf32>
    %9 = tpu.matmul %8, %6, %cst_8 {dimension_numbers = #tpu.dot_dimension_numbers<[1], [0], [0], [1], [0, 0, 1, 1], [], []>} : vector<16x96xbf16>, vector<96x192xbf16>, vector<16x192xf32> -> vector<16x192xf32>
    %c1 = arith.constant 1 : index
    %c0_9 = arith.constant 0 : index
    %c0_10 = arith.constant 0 : index
    %10 = vector.load %arg2[%c1, %c0_9, %c0_10] : memref<3x16x32xbf16, #tpu.memory_space<vmem>>, vector<1x16x32xbf16>
    %11 = vector.shape_cast %10 : vector<1x16x32xbf16> to vector<16x32xbf16>
    %c1_11 = arith.constant 1 : index
    %c0_12 = arith.constant 0 : index
    %c0_13 = arith.constant 0 : index
    %12 = vector.load %arg3[%c1_11, %c0_12, %c0_13] : memref<3x96x192xbf16, #tpu.memory_space<vmem>>, vector<1x96x192xbf16>
    %13 = vector.shape_cast %12 : vector<1x96x192xbf16> to vector<96x192xbf16>
    %cst_14 = arith.constant dense<0.000000e+00> : vector<16x96xf32>
    %14 = tpu.matmul %11, %2, %cst_14 {dimension_numbers = #tpu.dot_dimension_numbers<[1], [0], [0], [1], [0, 0, 1, 1], [], []>} : vector<16x32xbf16>, vector<32x96xbf16>, vector<16x96xf32> -> vector<16x96xf32>
    %15 = arith.truncf %14 : vector<16x96xf32> to vector<16x96xbf16>
    %cst_15 = arith.constant dense<0.000000e+00> : vector<16x192xf32>
    %16 = tpu.matmul %15, %13, %cst_15 {dimension_numbers = #tpu.dot_dimension_numbers<[1], [0], [0], [1], [0, 0, 1, 1], [], []>} : vector<16x96xbf16>, vector<96x192xbf16>, vector<16x192xf32> -> vector<16x192xf32>
    %17 = arith.addf %9, %16 : vector<16x192xf32>
    %c2 = arith.constant 2 : index
    %c0_16 = arith.constant 0 : index
    %c0_17 = arith.constant 0 : index
    %18 = vector.load %arg2[%c2, %c0_16, %c0_17] : memref<3x16x32xbf16, #tpu.memory_space<vmem>>, vector<1x16x32xbf16>
    %19 = vector.shape_cast %18 : vector<1x16x32xbf16> to vector<16x32xbf16>
    %c2_18 = arith.constant 2 : index
    %c0_19 = arith.constant 0 : index
    %c0_20 = arith.constant 0 : index
    %20 = vector.load %arg3[%c2_18, %c0_19, %c0_20] : memref<3x96x192xbf16, #tpu.memory_space<vmem>>, vector<1x96x192xbf16>
    %21 = vector.shape_cast %20 : vector<1x96x192xbf16> to vector<96x192xbf16>
    %cst_21 = arith.constant dense<0.000000e+00> : vector<16x96xf32>
    %22 = tpu.matmul %19, %2, %cst_21 {dimension_numbers = #tpu.dot_dimension_numbers<[1], [0], [0], [1], [0, 0, 1, 1], [], []>} : vector<16x32xbf16>, vector<32x96xbf16>, vector<16x96xf32> -> vector<16x96xf32>
    %23 = arith.truncf %22 : vector<16x96xf32> to vector<16x96xbf16>
    %cst_22 = arith.constant dense<0.000000e+00> : vector<16x192xf32>
    %24 = tpu.matmul %23, %21, %cst_22 {dimension_numbers = #tpu.dot_dimension_numbers<[1], [0], [0], [1], [0, 0, 1, 1], [], []>} : vector<16x96xbf16>, vector<96x192xbf16>, vector<16x192xf32> -> vector<16x192xf32>
    %25 = arith.addf %17, %24 : vector<16x192xf32>
    %c0_23 = arith.constant 0 : index
    %c0_24 = arith.constant 0 : index
    %26 = vector.load %arg4[%c0_23, %c0_24] : memref<1x192xf32, #tpu.memory_space<vmem>>, vector<1x192xf32>
    %27 = vector.broadcast %26 : vector<1x192xf32> to vector<16x192xf32>
    %28 = arith.addf %25, %27 : vector<16x192xf32>
    %cst_25 = arith.constant 0.000000e+00 : f32
    %29 = vector.broadcast %cst_25 : f32 to vector<16x192xf32>
    %30 = arith.maximumf %28, %29 : vector<16x192xf32>
    %31 = arith.truncf %30 : vector<16x192xf32> to vector<16x192xbf16>
    %c0_26 = arith.constant 0 : index
    %c0_27 = arith.constant 0 : index
    %c0_28 = arith.constant 0 : index
    %32 = vector.load %arg5[%c0_26, %c0_27, %c0_28] : memref<3x8x16xbf16, #tpu.memory_space<vmem>>, vector<1x8x16xbf16>
    %33 = vector.shape_cast %32 : vector<1x8x16xbf16> to vector<8x16xbf16>
    %c0_29 = arith.constant 0 : index
    %c0_30 = arith.constant 0 : index
    %c0_31 = arith.constant 0 : index
    %34 = vector.load %arg6[%c0_29, %c0_30, %c0_31] : memref<3x192x192xbf16, #tpu.memory_space<vmem>>, vector<1x192x192xbf16>
    %35 = vector.shape_cast %34 : vector<1x192x192xbf16> to vector<192x192xbf16>
    %cst_32 = arith.constant dense<0.000000e+00> : vector<8x192xf32>
    %36 = tpu.matmul %33, %31, %cst_32 {dimension_numbers = #tpu.dot_dimension_numbers<[1], [0], [0], [1], [0, 0, 1, 1], [], []>} : vector<8x16xbf16>, vector<16x192xbf16>, vector<8x192xf32> -> vector<8x192xf32>
    %37 = arith.truncf %36 : vector<8x192xf32> to vector<8x192xbf16>
    %cst_33 = arith.constant dense<0.000000e+00> : vector<8x192xf32>
    %38 = tpu.matmul %37, %35, %cst_33 {dimension_numbers = #tpu.dot_dimension_numbers<[1], [0], [0], [1], [0, 0, 1, 1], [], []>} : vector<8x192xbf16>, vector<192x192xbf16>, vector<8x192xf32> -> vector<8x192xf32>
    %c1_34 = arith.constant 1 : index
    %c0_35 = arith.constant 0 : index
    %c0_36 = arith.constant 0 : index
    %39 = vector.load %arg5[%c1_34, %c0_35, %c0_36] : memref<3x8x16xbf16, #tpu.memory_space<vmem>>, vector<1x8x16xbf16>
    %40 = vector.shape_cast %39 : vector<1x8x16xbf16> to vector<8x16xbf16>
    %c1_37 = arith.constant 1 : index
    %c0_38 = arith.constant 0 : index
    %c0_39 = arith.constant 0 : index
    %41 = vector.load %arg6[%c1_37, %c0_38, %c0_39] : memref<3x192x192xbf16, #tpu.memory_space<vmem>>, vector<1x192x192xbf16>
    %42 = vector.shape_cast %41 : vector<1x192x192xbf16> to vector<192x192xbf16>
    %cst_40 = arith.constant dense<0.000000e+00> : vector<8x192xf32>
    %43 = tpu.matmul %40, %31, %cst_40 {dimension_numbers = #tpu.dot_dimension_numbers<[1], [0], [0], [1], [0, 0, 1, 1], [], []>} : vector<8x16xbf16>, vector<16x192xbf16>, vector<8x192xf32> -> vector<8x192xf32>
    %44 = arith.truncf %43 : vector<8x192xf32> to vector<8x192xbf16>
    %cst_41 = arith.constant dense<0.000000e+00> : vector<8x192xf32>
    %45 = tpu.matmul %44, %42, %cst_41 {dimension_numbers = #tpu.dot_dimension_numbers<[1], [0], [0], [1], [0, 0, 1, 1], [], []>} : vector<8x192xbf16>, vector<192x192xbf16>, vector<8x192xf32> -> vector<8x192xf32>
    %46 = arith.addf %38, %45 : vector<8x192xf32>
    %c2_42 = arith.constant 2 : index
    %c0_43 = arith.constant 0 : index
    %c0_44 = arith.constant 0 : index
    %47 = vector.load %arg5[%c2_42, %c0_43, %c0_44] : memref<3x8x16xbf16, #tpu.memory_space<vmem>>, vector<1x8x16xbf16>
    %48 = vector.shape_cast %47 : vector<1x8x16xbf16> to vector<8x16xbf16>
    %c2_45 = arith.constant 2 : index
    %c0_46 = arith.constant 0 : index
    %c0_47 = arith.constant 0 : index
    %49 = vector.load %arg6[%c2_45, %c0_46, %c0_47] : memref<3x192x192xbf16, #tpu.memory_space<vmem>>, vector<1x192x192xbf16>
    %50 = vector.shape_cast %49 : vector<1x192x192xbf16> to vector<192x192xbf16>
    %cst_48 = arith.constant dense<0.000000e+00> : vector<8x192xf32>
    %51 = tpu.matmul %48, %31, %cst_48 {dimension_numbers = #tpu.dot_dimension_numbers<[1], [0], [0], [1], [0, 0, 1, 1], [], []>} : vector<8x16xbf16>, vector<16x192xbf16>, vector<8x192xf32> -> vector<8x192xf32>
    %52 = arith.truncf %51 : vector<8x192xf32> to vector<8x192xbf16>
    %cst_49 = arith.constant dense<0.000000e+00> : vector<8x192xf32>
    %53 = tpu.matmul %52, %50, %cst_49 {dimension_numbers = #tpu.dot_dimension_numbers<[1], [0], [0], [1], [0, 0, 1, 1], [], []>} : vector<8x192xbf16>, vector<192x192xbf16>, vector<8x192xf32> -> vector<8x192xf32>
    %54 = arith.addf %46, %53 : vector<8x192xf32>
    %c0_50 = arith.constant 0 : index
    %c0_51 = arith.constant 0 : index
    %55 = vector.load %arg7[%c0_50, %c0_51] : memref<1x192xf32, #tpu.memory_space<vmem>>, vector<1x192xf32>
    %56 = vector.broadcast %55 : vector<1x192xf32> to vector<8x192xf32>
    %57 = arith.addf %54, %56 : vector<8x192xf32>
    %cst_52 = arith.constant 0.000000e+00 : f32
    %58 = vector.broadcast %cst_52 : f32 to vector<8x192xf32>
    %59 = arith.maximumf %57, %58 : vector<8x192xf32>
    %60 = arith.truncf %59 : vector<8x192xf32> to vector<8x192xbf16>
    %c0_53 = arith.constant 0 : index
    %c0_54 = arith.constant 0 : index
    %c0_55 = arith.constant 0 : index
    %61 = vector.load %arg8[%c0_53, %c0_54, %c0_55] : memref<3x4x8xbf16, #tpu.memory_space<vmem>>, vector<1x4x8xbf16>
    %62 = vector.shape_cast %61 : vector<1x4x8xbf16> to vector<4x8xbf16>
    %c0_56 = arith.constant 0 : index
    %c0_57 = arith.constant 0 : index
    %c0_58 = arith.constant 0 : index
    %63 = vector.load %arg9[%c0_56, %c0_57, %c0_58] : memref<3x192x192xbf16, #tpu.memory_space<vmem>>, vector<1x192x192xbf16>
    %64 = vector.shape_cast %63 : vector<1x192x192xbf16> to vector<192x192xbf16>
    %cst_59 = arith.constant dense<0.000000e+00> : vector<4x192xf32>
    %65 = tpu.matmul %62, %60, %cst_59 {dimension_numbers = #tpu.dot_dimension_numbers<[1], [0], [0], [1], [0, 0, 1, 1], [], []>} : vector<4x8xbf16>, vector<8x192xbf16>, vector<4x192xf32> -> vector<4x192xf32>
    %66 = arith.truncf %65 : vector<4x192xf32> to vector<4x192xbf16>
    %cst_60 = arith.constant dense<0.000000e+00> : vector<4x192xf32>
    %67 = tpu.matmul %66, %64, %cst_60 {dimension_numbers = #tpu.dot_dimension_numbers<[1], [0], [0], [1], [0, 0, 1, 1], [], []>} : vector<4x192xbf16>, vector<192x192xbf16>, vector<4x192xf32> -> vector<4x192xf32>
    %c1_61 = arith.constant 1 : index
    %c0_62 = arith.constant 0 : index
    %c0_63 = arith.constant 0 : index
    %68 = vector.load %arg8[%c1_61, %c0_62, %c0_63] : memref<3x4x8xbf16, #tpu.memory_space<vmem>>, vector<1x4x8xbf16>
    %69 = vector.shape_cast %68 : vector<1x4x8xbf16> to vector<4x8xbf16>
    %c1_64 = arith.constant 1 : index
    %c0_65 = arith.constant 0 : index
    %c0_66 = arith.constant 0 : index
    %70 = vector.load %arg9[%c1_64, %c0_65, %c0_66] : memref<3x192x192xbf16, #tpu.memory_space<vmem>>, vector<1x192x192xbf16>
    %71 = vector.shape_cast %70 : vector<1x192x192xbf16> to vector<192x192xbf16>
    %cst_67 = arith.constant dense<0.000000e+00> : vector<4x192xf32>
    %72 = tpu.matmul %69, %60, %cst_67 {dimension_numbers = #tpu.dot_dimension_numbers<[1], [0], [0], [1], [0, 0, 1, 1], [], []>} : vector<4x8xbf16>, vector<8x192xbf16>, vector<4x192xf32> -> vector<4x192xf32>
    %73 = arith.truncf %72 : vector<4x192xf32> to vector<4x192xbf16>
    %cst_68 = arith.constant dense<0.000000e+00> : vector<4x192xf32>
    %74 = tpu.matmul %73, %71, %cst_68 {dimension_numbers = #tpu.dot_dimension_numbers<[1], [0], [0], [1], [0, 0, 1, 1], [], []>} : vector<4x192xbf16>, vector<192x192xbf16>, vector<4x192xf32> -> vector<4x192xf32>
    %75 = arith.addf %67, %74 : vector<4x192xf32>
    %c2_69 = arith.constant 2 : index
    %c0_70 = arith.constant 0 : index
    %c0_71 = arith.constant 0 : index
    %76 = vector.load %arg8[%c2_69, %c0_70, %c0_71] : memref<3x4x8xbf16, #tpu.memory_space<vmem>>, vector<1x4x8xbf16>
    %77 = vector.shape_cast %76 : vector<1x4x8xbf16> to vector<4x8xbf16>
    %c2_72 = arith.constant 2 : index
    %c0_73 = arith.constant 0 : index
    %c0_74 = arith.constant 0 : index
    %78 = vector.load %arg9[%c2_72, %c0_73, %c0_74] : memref<3x192x192xbf16, #tpu.memory_space<vmem>>, vector<1x192x192xbf16>
    %79 = vector.shape_cast %78 : vector<1x192x192xbf16> to vector<192x192xbf16>
    %cst_75 = arith.constant dense<0.000000e+00> : vector<4x192xf32>
    %80 = tpu.matmul %77, %60, %cst_75 {dimension_numbers = #tpu.dot_dimension_numbers<[1], [0], [0], [1], [0, 0, 1, 1], [], []>} : vector<4x8xbf16>, vector<8x192xbf16>, vector<4x192xf32> -> vector<4x192xf32>
    %81 = arith.truncf %80 : vector<4x192xf32> to vector<4x192xbf16>
    %cst_76 = arith.constant dense<0.000000e+00> : vector<4x192xf32>
    %82 = tpu.matmul %81, %79, %cst_76 {dimension_numbers = #tpu.dot_dimension_numbers<[1], [0], [0], [1], [0, 0, 1, 1], [], []>} : vector<4x192xbf16>, vector<192x192xbf16>, vector<4x192xf32> -> vector<4x192xf32>
    %83 = arith.addf %75, %82 : vector<4x192xf32>
    %c0_77 = arith.constant 0 : index
    %c0_78 = arith.constant 0 : index
    %84 = vector.load %arg10[%c0_77, %c0_78] : memref<1x192xf32, #tpu.memory_space<vmem>>, vector<1x192xf32>
    %85 = vector.broadcast %84 : vector<1x192xf32> to vector<4x192xf32>
    %86 = arith.addf %83, %85 : vector<4x192xf32>
    %cst_79 = arith.constant 0.000000e+00 : f32
    %87 = vector.broadcast %cst_79 : f32 to vector<4x192xf32>
    %88 = arith.maximumf %86, %87 : vector<4x192xf32>
    %89 = arith.truncf %88 : vector<4x192xf32> to vector<4x192xbf16>
    %c0_80 = arith.constant 0 : index
    %c0_81 = arith.constant 0 : index
    %c0_82 = arith.constant 0 : index
    %90 = vector.load %arg11[%c0_80, %c0_81, %c0_82] : memref<3x8x4xbf16, #tpu.memory_space<vmem>>, vector<1x8x4xbf16>
    %91 = vector.shape_cast %90 : vector<1x8x4xbf16> to vector<8x4xbf16>
    %c0_83 = arith.constant 0 : index
    %c0_84 = arith.constant 0 : index
    %c0_85 = arith.constant 0 : index
    %92 = vector.load %arg12[%c0_83, %c0_84, %c0_85] : memref<3x192x192xbf16, #tpu.memory_space<vmem>>, vector<1x192x192xbf16>
    %93 = vector.shape_cast %92 : vector<1x192x192xbf16> to vector<192x192xbf16>
    %cst_86 = arith.constant dense<0.000000e+00> : vector<4x192xf32>
    %94 = tpu.matmul %89, %93, %cst_86 {dimension_numbers = #tpu.dot_dimension_numbers<[1], [0], [0], [1], [0, 0, 1, 1], [], []>} : vector<4x192xbf16>, vector<192x192xbf16>, vector<4x192xf32> -> vector<4x192xf32>
    %95 = arith.truncf %94 : vector<4x192xf32> to vector<4x192xbf16>
    %cst_87 = arith.constant dense<0.000000e+00> : vector<8x192xf32>
    %96 = tpu.matmul %91, %95, %cst_87 {dimension_numbers = #tpu.dot_dimension_numbers<[1], [0], [0], [1], [0, 0, 1, 1], [], []>} : vector<8x4xbf16>, vector<4x192xbf16>, vector<8x192xf32> -> vector<8x192xf32>
    %c1_88 = arith.constant 1 : index
    %c0_89 = arith.constant 0 : index
    %c0_90 = arith.constant 0 : index
    %97 = vector.load %arg11[%c1_88, %c0_89, %c0_90] : memref<3x8x4xbf16, #tpu.memory_space<vmem>>, vector<1x8x4xbf16>
    %98 = vector.shape_cast %97 : vector<1x8x4xbf16> to vector<8x4xbf16>
    %c1_91 = arith.constant 1 : index
    %c0_92 = arith.constant 0 : index
    %c0_93 = arith.constant 0 : index
    %99 = vector.load %arg12[%c1_91, %c0_92, %c0_93] : memref<3x192x192xbf16, #tpu.memory_space<vmem>>, vector<1x192x192xbf16>
    %100 = vector.shape_cast %99 : vector<1x192x192xbf16> to vector<192x192xbf16>
    %cst_94 = arith.constant dense<0.000000e+00> : vector<4x192xf32>
    %101 = tpu.matmul %89, %100, %cst_94 {dimension_numbers = #tpu.dot_dimension_numbers<[1], [0], [0], [1], [0, 0, 1, 1], [], []>} : vector<4x192xbf16>, vector<192x192xbf16>, vector<4x192xf32> -> vector<4x192xf32>
    %102 = arith.truncf %101 : vector<4x192xf32> to vector<4x192xbf16>
    %cst_95 = arith.constant dense<0.000000e+00> : vector<8x192xf32>
    %103 = tpu.matmul %98, %102, %cst_95 {dimension_numbers = #tpu.dot_dimension_numbers<[1], [0], [0], [1], [0, 0, 1, 1], [], []>} : vector<8x4xbf16>, vector<4x192xbf16>, vector<8x192xf32> -> vector<8x192xf32>
    %104 = arith.addf %96, %103 : vector<8x192xf32>
    %c2_96 = arith.constant 2 : index
    %c0_97 = arith.constant 0 : index
    %c0_98 = arith.constant 0 : index
    %105 = vector.load %arg11[%c2_96, %c0_97, %c0_98] : memref<3x8x4xbf16, #tpu.memory_space<vmem>>, vector<1x8x4xbf16>
    %106 = vector.shape_cast %105 : vector<1x8x4xbf16> to vector<8x4xbf16>
    %c2_99 = arith.constant 2 : index
    %c0_100 = arith.constant 0 : index
    %c0_101 = arith.constant 0 : index
    %107 = vector.load %arg12[%c2_99, %c0_100, %c0_101] : memref<3x192x192xbf16, #tpu.memory_space<vmem>>, vector<1x192x192xbf16>
    %108 = vector.shape_cast %107 : vector<1x192x192xbf16> to vector<192x192xbf16>
    %cst_102 = arith.constant dense<0.000000e+00> : vector<4x192xf32>
    %109 = tpu.matmul %89, %108, %cst_102 {dimension_numbers = #tpu.dot_dimension_numbers<[1], [0], [0], [1], [0, 0, 1, 1], [], []>} : vector<4x192xbf16>, vector<192x192xbf16>, vector<4x192xf32> -> vector<4x192xf32>
    %110 = arith.truncf %109 : vector<4x192xf32> to vector<4x192xbf16>
    %cst_103 = arith.constant dense<0.000000e+00> : vector<8x192xf32>
    %111 = tpu.matmul %106, %110, %cst_103 {dimension_numbers = #tpu.dot_dimension_numbers<[1], [0], [0], [1], [0, 0, 1, 1], [], []>} : vector<8x4xbf16>, vector<4x192xbf16>, vector<8x192xf32> -> vector<8x192xf32>
    %112 = arith.addf %104, %111 : vector<8x192xf32>
    %c0_104 = arith.constant 0 : index
    %c0_105 = arith.constant 0 : index
    %113 = vector.load %arg13[%c0_104, %c0_105] : memref<1x192xf32, #tpu.memory_space<vmem>>, vector<1x192xf32>
    %114 = vector.broadcast %113 : vector<1x192xf32> to vector<8x192xf32>
    %115 = arith.addf %112, %114 : vector<8x192xf32>
    %cst_106 = arith.constant 0.000000e+00 : f32
    %116 = vector.broadcast %cst_106 : f32 to vector<8x192xf32>
    %117 = arith.maximumf %115, %116 : vector<8x192xf32>
    %118 = arith.truncf %117 : vector<8x192xf32> to vector<8x192xbf16>
    %c0_107 = arith.constant 0 : index
    %c0_108 = arith.constant 0 : index
    %c0_109 = arith.constant 0 : index
    %119 = vector.load %arg14[%c0_107, %c0_108, %c0_109] : memref<3x16x8xbf16, #tpu.memory_space<vmem>>, vector<1x16x8xbf16>
    %120 = vector.shape_cast %119 : vector<1x16x8xbf16> to vector<16x8xbf16>
    %c0_110 = arith.constant 0 : index
    %c0_111 = arith.constant 0 : index
    %c0_112 = arith.constant 0 : index
    %121 = vector.load %arg15[%c0_110, %c0_111, %c0_112] : memref<3x192x192xbf16, #tpu.memory_space<vmem>>, vector<1x192x192xbf16>
    %122 = vector.shape_cast %121 : vector<1x192x192xbf16> to vector<192x192xbf16>
    %cst_113 = arith.constant dense<0.000000e+00> : vector<8x192xf32>
    %123 = tpu.matmul %118, %122, %cst_113 {dimension_numbers = #tpu.dot_dimension_numbers<[1], [0], [0], [1], [0, 0, 1, 1], [], []>} : vector<8x192xbf16>, vector<192x192xbf16>, vector<8x192xf32> -> vector<8x192xf32>
    %124 = arith.truncf %123 : vector<8x192xf32> to vector<8x192xbf16>
    %cst_114 = arith.constant dense<0.000000e+00> : vector<16x192xf32>
    %125 = tpu.matmul %120, %124, %cst_114 {dimension_numbers = #tpu.dot_dimension_numbers<[1], [0], [0], [1], [0, 0, 1, 1], [], []>} : vector<16x8xbf16>, vector<8x192xbf16>, vector<16x192xf32> -> vector<16x192xf32>
    %c1_115 = arith.constant 1 : index
    %c0_116 = arith.constant 0 : index
    %c0_117 = arith.constant 0 : index
    %126 = vector.load %arg14[%c1_115, %c0_116, %c0_117] : memref<3x16x8xbf16, #tpu.memory_space<vmem>>, vector<1x16x8xbf16>
    %127 = vector.shape_cast %126 : vector<1x16x8xbf16> to vector<16x8xbf16>
    %c1_118 = arith.constant 1 : index
    %c0_119 = arith.constant 0 : index
    %c0_120 = arith.constant 0 : index
    %128 = vector.load %arg15[%c1_118, %c0_119, %c0_120] : memref<3x192x192xbf16, #tpu.memory_space<vmem>>, vector<1x192x192xbf16>
    %129 = vector.shape_cast %128 : vector<1x192x192xbf16> to vector<192x192xbf16>
    %cst_121 = arith.constant dense<0.000000e+00> : vector<8x192xf32>
    %130 = tpu.matmul %118, %129, %cst_121 {dimension_numbers = #tpu.dot_dimension_numbers<[1], [0], [0], [1], [0, 0, 1, 1], [], []>} : vector<8x192xbf16>, vector<192x192xbf16>, vector<8x192xf32> -> vector<8x192xf32>
    %131 = arith.truncf %130 : vector<8x192xf32> to vector<8x192xbf16>
    %cst_122 = arith.constant dense<0.000000e+00> : vector<16x192xf32>
    %132 = tpu.matmul %127, %131, %cst_122 {dimension_numbers = #tpu.dot_dimension_numbers<[1], [0], [0], [1], [0, 0, 1, 1], [], []>} : vector<16x8xbf16>, vector<8x192xbf16>, vector<16x192xf32> -> vector<16x192xf32>
    %133 = arith.addf %125, %132 : vector<16x192xf32>
    %c2_123 = arith.constant 2 : index
    %c0_124 = arith.constant 0 : index
    %c0_125 = arith.constant 0 : index
    %134 = vector.load %arg14[%c2_123, %c0_124, %c0_125] : memref<3x16x8xbf16, #tpu.memory_space<vmem>>, vector<1x16x8xbf16>
    %135 = vector.shape_cast %134 : vector<1x16x8xbf16> to vector<16x8xbf16>
    %c2_126 = arith.constant 2 : index
    %c0_127 = arith.constant 0 : index
    %c0_128 = arith.constant 0 : index
    %136 = vector.load %arg15[%c2_126, %c0_127, %c0_128] : memref<3x192x192xbf16, #tpu.memory_space<vmem>>, vector<1x192x192xbf16>
    %137 = vector.shape_cast %136 : vector<1x192x192xbf16> to vector<192x192xbf16>
    %cst_129 = arith.constant dense<0.000000e+00> : vector<8x192xf32>
    %138 = tpu.matmul %118, %137, %cst_129 {dimension_numbers = #tpu.dot_dimension_numbers<[1], [0], [0], [1], [0, 0, 1, 1], [], []>} : vector<8x192xbf16>, vector<192x192xbf16>, vector<8x192xf32> -> vector<8x192xf32>
    %139 = arith.truncf %138 : vector<8x192xf32> to vector<8x192xbf16>
    %cst_130 = arith.constant dense<0.000000e+00> : vector<16x192xf32>
    %140 = tpu.matmul %135, %139, %cst_130 {dimension_numbers = #tpu.dot_dimension_numbers<[1], [0], [0], [1], [0, 0, 1, 1], [], []>} : vector<16x8xbf16>, vector<8x192xbf16>, vector<16x192xf32> -> vector<16x192xf32>
    %141 = arith.addf %133, %140 : vector<16x192xf32>
    %c0_131 = arith.constant 0 : index
    %c0_132 = arith.constant 0 : index
    %142 = vector.load %arg16[%c0_131, %c0_132] : memref<1x192xf32, #tpu.memory_space<vmem>>, vector<1x192xf32>
    %143 = vector.broadcast %142 : vector<1x192xf32> to vector<16x192xf32>
    %144 = arith.addf %141, %143 : vector<16x192xf32>
    %cst_133 = arith.constant 0.000000e+00 : f32
    %145 = vector.broadcast %cst_133 : f32 to vector<16x192xf32>
    %146 = arith.maximumf %144, %145 : vector<16x192xf32>
    %147 = arith.truncf %146 : vector<16x192xf32> to vector<16x192xbf16>
    %c0_134 = arith.constant 0 : index
    %c0_135 = arith.constant 0 : index
    %c0_136 = arith.constant 0 : index
    %148 = vector.load %arg17[%c0_134, %c0_135, %c0_136] : memref<3x32x16xbf16, #tpu.memory_space<vmem>>, vector<1x32x16xbf16>
    %149 = vector.shape_cast %148 : vector<1x32x16xbf16> to vector<32x16xbf16>
    %c0_137 = arith.constant 0 : index
    %c0_138 = arith.constant 0 : index
    %c0_139 = arith.constant 0 : index
    %150 = vector.load %arg18[%c0_137, %c0_138, %c0_139] : memref<3x192x96xbf16, #tpu.memory_space<vmem>>, vector<1x192x96xbf16>
    %151 = vector.shape_cast %150 : vector<1x192x96xbf16> to vector<192x96xbf16>
    %cst_140 = arith.constant dense<0.000000e+00> : vector<16x96xf32>
    %152 = tpu.matmul %147, %151, %cst_140 {dimension_numbers = #tpu.dot_dimension_numbers<[1], [0], [0], [1], [0, 0, 1, 1], [], []>} : vector<16x192xbf16>, vector<192x96xbf16>, vector<16x96xf32> -> vector<16x96xf32>
    %153 = arith.truncf %152 : vector<16x96xf32> to vector<16x96xbf16>
    %cst_141 = arith.constant dense<0.000000e+00> : vector<32x96xf32>
    %154 = tpu.matmul %149, %153, %cst_141 {dimension_numbers = #tpu.dot_dimension_numbers<[1], [0], [0], [1], [0, 0, 1, 1], [], []>} : vector<32x16xbf16>, vector<16x96xbf16>, vector<32x96xf32> -> vector<32x96xf32>
    %c1_142 = arith.constant 1 : index
    %c0_143 = arith.constant 0 : index
    %c0_144 = arith.constant 0 : index
    %155 = vector.load %arg17[%c1_142, %c0_143, %c0_144] : memref<3x32x16xbf16, #tpu.memory_space<vmem>>, vector<1x32x16xbf16>
    %156 = vector.shape_cast %155 : vector<1x32x16xbf16> to vector<32x16xbf16>
    %c1_145 = arith.constant 1 : index
    %c0_146 = arith.constant 0 : index
    %c0_147 = arith.constant 0 : index
    %157 = vector.load %arg18[%c1_145, %c0_146, %c0_147] : memref<3x192x96xbf16, #tpu.memory_space<vmem>>, vector<1x192x96xbf16>
    %158 = vector.shape_cast %157 : vector<1x192x96xbf16> to vector<192x96xbf16>
    %cst_148 = arith.constant dense<0.000000e+00> : vector<16x96xf32>
    %159 = tpu.matmul %147, %158, %cst_148 {dimension_numbers = #tpu.dot_dimension_numbers<[1], [0], [0], [1], [0, 0, 1, 1], [], []>} : vector<16x192xbf16>, vector<192x96xbf16>, vector<16x96xf32> -> vector<16x96xf32>
    %160 = arith.truncf %159 : vector<16x96xf32> to vector<16x96xbf16>
    %cst_149 = arith.constant dense<0.000000e+00> : vector<32x96xf32>
    %161 = tpu.matmul %156, %160, %cst_149 {dimension_numbers = #tpu.dot_dimension_numbers<[1], [0], [0], [1], [0, 0, 1, 1], [], []>} : vector<32x16xbf16>, vector<16x96xbf16>, vector<32x96xf32> -> vector<32x96xf32>
    %162 = arith.addf %154, %161 : vector<32x96xf32>
    %c2_150 = arith.constant 2 : index
    %c0_151 = arith.constant 0 : index
    %c0_152 = arith.constant 0 : index
    %163 = vector.load %arg17[%c2_150, %c0_151, %c0_152] : memref<3x32x16xbf16, #tpu.memory_space<vmem>>, vector<1x32x16xbf16>
    %164 = vector.shape_cast %163 : vector<1x32x16xbf16> to vector<32x16xbf16>
    %c2_153 = arith.constant 2 : index
    %c0_154 = arith.constant 0 : index
    %c0_155 = arith.constant 0 : index
    %165 = vector.load %arg18[%c2_153, %c0_154, %c0_155] : memref<3x192x96xbf16, #tpu.memory_space<vmem>>, vector<1x192x96xbf16>
    %166 = vector.shape_cast %165 : vector<1x192x96xbf16> to vector<192x96xbf16>
    %cst_156 = arith.constant dense<0.000000e+00> : vector<16x96xf32>
    %167 = tpu.matmul %147, %166, %cst_156 {dimension_numbers = #tpu.dot_dimension_numbers<[1], [0], [0], [1], [0, 0, 1, 1], [], []>} : vector<16x192xbf16>, vector<192x96xbf16>, vector<16x96xf32> -> vector<16x96xf32>
    %168 = arith.truncf %167 : vector<16x96xf32> to vector<16x96xbf16>
    %cst_157 = arith.constant dense<0.000000e+00> : vector<32x96xf32>
    %169 = tpu.matmul %164, %168, %cst_157 {dimension_numbers = #tpu.dot_dimension_numbers<[1], [0], [0], [1], [0, 0, 1, 1], [], []>} : vector<32x16xbf16>, vector<16x96xbf16>, vector<32x96xf32> -> vector<32x96xf32>
    %170 = arith.addf %162, %169 : vector<32x96xf32>
    %c0_158 = arith.constant 0 : index
    %c0_159 = arith.constant 0 : index
    %171 = vector.load %arg19[%c0_158, %c0_159] : memref<1x96xf32, #tpu.memory_space<vmem>>, vector<1x96xf32>
    %172 = vector.broadcast %171 : vector<1x96xf32> to vector<32x96xf32>
    %173 = arith.addf %170, %172 : vector<32x96xf32>
    %174 = arith.negf %173 : vector<32x96xf32>
    %175 = math.exp %174 : vector<32x96xf32>
    %cst_160 = arith.constant 1.000000e+00 : f32
    %176 = vector.broadcast %cst_160 : f32 to vector<32x96xf32>
    %177 = arith.addf %176, %175 : vector<32x96xf32>
    %178 = arith.divf %176, %177 : vector<32x96xf32>
    %c0_161 = arith.constant 0 : index
    %c0_162 = arith.constant 0 : index
    %c0_163 = arith.constant 0 : index
    %179 = vector.load %arg20[%c0_161, %c0_162, %c0_163] : memref<1x32x96xf32, #tpu.memory_space<vmem>>, vector<1x32x96xf32>
    %180 = vector.shape_cast %179 : vector<1x32x96xf32> to vector<32x96xf32>
    %181 = vector.shape_cast %178 : vector<32x96xf32> to vector<1x32x96xf32>
    tpu.vector_store %arg20[%c0_161, %c0_162, %c0_163], %181 {strides = array<i32>} : memref<1x32x96xf32, #tpu.memory_space<vmem>>, vector<1x32x96xf32>,
    return
  }
  func.func @transform_0(%arg0: i32) -> (i32, i32, i32) {
    %c0_i32 = arith.constant 0 : i32
    %c0_i32_0 = arith.constant 0 : i32
    %c0_i32_1 = arith.constant 0 : i32
    return %arg0, %c0_i32, %c0_i32_0 : i32, i32, i32
  }
  func.func @transform_1(%arg0: i32) -> (i32, i32, i32) {
    %c0_i32 = arith.constant 0 : i32
    %c0_i32_0 = arith.constant 0 : i32
    %c0_i32_1 = arith.constant 0 : i32
    %c0_i32_2 = arith.constant 0 : i32
    return %c0_i32, %c0_i32_0, %c0_i32_1 : i32, i32, i32
  }
  func.func @transform_2(%arg0: i32) -> (i32, i32, i32) {
    %c0_i32 = arith.constant 0 : i32
    %c0_i32_0 = arith.constant 0 : i32
    %c0_i32_1 = arith.constant 0 : i32
    %c0_i32_2 = arith.constant 0 : i32
    return %c0_i32, %c0_i32_0, %c0_i32_1 : i32, i32, i32
  }
  func.func @transform_3(%arg0: i32) -> (i32, i32) {
    %c0_i32 = arith.constant 0 : i32
    %c0_i32_0 = arith.constant 0 : i32
    %c0_i32_1 = arith.constant 0 : i32
    return %c0_i32, %c0_i32_0 : i32, i32
  }
  func.func @transform_4(%arg0: i32) -> (i32, i32, i32) {
    %c0_i32 = arith.constant 0 : i32
    %c0_i32_0 = arith.constant 0 : i32
    %c0_i32_1 = arith.constant 0 : i32
    %c0_i32_2 = arith.constant 0 : i32
    return %c0_i32, %c0_i32_0, %c0_i32_1 : i32, i32, i32
  }
  func.func @transform_5(%arg0: i32) -> (i32, i32, i32) {
    %c0_i32 = arith.constant 0 : i32
    %c0_i32_0 = arith.constant 0 : i32
    %c0_i32_1 = arith.constant 0 : i32
    %c0_i32_2 = arith.constant 0 : i32
    return %c0_i32, %c0_i32_0, %c0_i32_1 : i32, i32, i32
  }
  func.func @transform_6(%arg0: i32) -> (i32, i32) {
    %c0_i32 = arith.constant 0 : i32
    %c0_i32_0 = arith.constant 0 : i32
    %c0_i32_1 = arith.constant 0 : i32
    return %c0_i32, %c0_i32_0 : i32, i32
  }
  func.func @transform_7(%arg0: i32) -> (i32, i32, i32) {
    %c0_i32 = arith.constant 0 : i32
    %c0_i32_0 = arith.constant 0 : i32
    %c0_i32_1 = arith.constant 0 : i32
    %c0_i32_2 = arith.constant 0 : i32
    return %c0_i32, %c0_i32_0, %c0_i32_1 : i32, i32, i32
  }
  func.func @transform_8(%arg0: i32) -> (i32, i32, i32) {
    %c0_i32 = arith.constant 0 : i32
    %c0_i32_0 = arith.constant 0 : i32
    %c0_i32_1 = arith.constant 0 : i32
    %c0_i32_2 = arith.constant 0 : i32
    return %c0_i32, %c0_i32_0, %c0_i32_1 : i32, i32, i32
  }
  func.func @transform_9(%arg0: i32) -> (i32, i32) {
    %c0_i32 = arith.constant 0 : i32
    %c0_i32_0 = arith.constant 0 : i32
    %c0_i32_1 = arith.constant 0 : i32
    return %c0_i32, %c0_i32_0 : i32, i32
  }
  func.func @transform_10(%arg0: i32) -> (i32, i32, i32) {
    %c0_i32 = arith.constant 0 : i32
    %c0_i32_0 = arith.constant 0 : i32
    %c0_i32_1 = arith.constant 0 : i32
    %c0_i32_2 = arith.constant 0 : i32
    return %c0_i32, %c0_i32_0, %c0_i32_1 : i32, i32, i32
  }
  func.func @transform_11(%arg0: i32) -> (i32, i32, i32) {
    %c0_i32 = arith.constant 0 : i32
    %c0_i32_0 = arith.constant 0 : i32
    %c0_i32_1 = arith.constant 0 : i32
    %c0_i32_2 = arith.constant 0 : i32
    return %c0_i32, %c0_i32_0, %c0_i32_1 : i32, i32, i32
  }
  func.func @transform_12(%arg0: i32) -> (i32, i32) {
    %c0_i32 = arith.constant 0 : i32
    %c0_i32_0 = arith.constant 0 : i32
    %c0_i32_1 = arith.constant 0 : i32
    return %c0_i32, %c0_i32_0 : i32, i32
  }
  func.func @transform_13(%arg0: i32) -> (i32, i32, i32) {
    %c0_i32 = arith.constant 0 : i32
    %c0_i32_0 = arith.constant 0 : i32
    %c0_i32_1 = arith.constant 0 : i32
    %c0_i32_2 = arith.constant 0 : i32
    return %c0_i32, %c0_i32_0, %c0_i32_1 : i32, i32, i32
  }
  func.func @transform_14(%arg0: i32) -> (i32, i32, i32) {
    %c0_i32 = arith.constant 0 : i32
    %c0_i32_0 = arith.constant 0 : i32
    %c0_i32_1 = arith.constant 0 : i32
    %c0_i32_2 = arith.constant 0 : i32
    return %c0_i32, %c0_i32_0, %c0_i32_1 : i32, i32, i32
  }
  func.func @transform_15(%arg0: i32) -> (i32, i32) {
    %c0_i32 = arith.constant 0 : i32
    %c0_i32_0 = arith.constant 0 : i32
    %c0_i32_1 = arith.constant 0 : i32
    return %c0_i32, %c0_i32_0 : i32, i32
  }
  func.func @transform_16(%arg0: i32) -> (i32, i32, i32) {
    %c0_i32 = arith.constant 0 : i32
    %c0_i32_0 = arith.constant 0 : i32
    %c0_i32_1 = arith.constant 0 : i32
    %c0_i32_2 = arith.constant 0 : i32
    return %c0_i32, %c0_i32_0, %c0_i32_1 : i32, i32, i32
  }
  func.func @transform_17(%arg0: i32) -> (i32, i32, i32) {
    %c0_i32 = arith.constant 0 : i32
    %c0_i32_0 = arith.constant 0 : i32
    %c0_i32_1 = arith.constant 0 : i32
    %c0_i32_2 = arith.constant 0 : i32
    return %c0_i32, %c0_i32_0, %c0_i32_1 : i32, i32, i32
  }
  func.func @transform_18(%arg0: i32) -> (i32, i32) {
    %c0_i32 = arith.constant 0 : i32
    %c0_i32_0 = arith.constant 0 : i32
    %c0_i32_1 = arith.constant 0 : i32
    return %c0_i32, %c0_i32_0 : i32, i32
  }
  func.func @transform_19(%arg0: i32) -> (i32, i32, i32) {
    %c0_i32 = arith.constant 0 : i32
    %c0_i32_0 = arith.constant 0 : i32
    %c0_i32_1 = arith.constant 0 : i32
    return %arg0, %c0_i32, %c0_i32_0 : i32, i32, i32
  }
}

</mosaic_0001>

<llo_original>
// kernel: vanilla_ae_forward.1
$region0: #{vanilla_ae_forward.1}
  #allocation0 [shape = 'u32[]', space=smem, size = 0x4, offset = 0x4, fixed_abs, tag = 'smem constant byte address 0x4 - core index']
  #allocation1 [shape = 'u32[144,128]{1,0:T(1,128)}', space=vmem, size = 0x12000, scoped, tag = 'internal scratch']
  %s0 = inlined_call_operand.vmem [shape: f32[2,32,96], index: 0, kind: input, shape index: {}]
  %s1 = inlined_call_operand.vmem [shape: bf16[3,16,32], index: 1, kind: input, shape index: {}]
  %s2 = inlined_call_operand.vmem [shape: bf16[3,96,192], index: 2, kind: input, shape index: {}]
  %s3 = inlined_call_operand.vmem [shape: f32[1,192], index: 3, kind: input, shape index: {}]
  %s4 = inlined_call_operand.vmem [shape: bf16[3,8,16], index: 4, kind: input, shape index: {}]
  %s5 = inlined_call_operand.vmem [shape: bf16[3,192,192], index: 5, kind: input, shape index: {}]
  %s6 = inlined_call_operand.vmem [shape: f32[1,192], index: 6, kind: input, shape index: {}]
  %s7 = inlined_call_operand.vmem [shape: bf16[3,4,8], index: 7, kind: input, shape index: {}]
  %s8 = inlined_call_operand.vmem [shape: bf16[3,192,192], index: 8, kind: input, shape index: {}]
  %s9 = inlined_call_operand.vmem [shape: f32[1,192], index: 9, kind: input, shape index: {}]
  %s10 = inlined_call_operand.vmem [shape: bf16[3,8,4], index: 10, kind: input, shape index: {}]
  %s11 = inlined_call_operand.vmem [shape: bf16[3,192,192], index: 11, kind: input, shape index: {}]
  %s12 = inlined_call_operand.vmem [shape: f32[1,192], index: 12, kind: input, shape index: {}]
  %s13 = inlined_call_operand.vmem [shape: bf16[3,16,8], index: 13, kind: input, shape index: {}]
  %s14 = inlined_call_operand.vmem [shape: bf16[3,192,192], index: 14, kind: input, shape index: {}]
  %s15 = inlined_call_operand.vmem [shape: f32[1,192], index: 15, kind: input, shape index: {}]
  %s16 = inlined_call_operand.vmem [shape: bf16[3,32,16], index: 16, kind: input, shape index: {}]
  %s17 = inlined_call_operand.vmem [shape: bf16[3,192,96], index: 17, kind: input, shape index: {}]
  %s18 = inlined_call_operand.vmem [shape: f32[1,96], index: 18, kind: input, shape index: {}]
  %s19 = inlined_call_operand.vmem [shape: f32[2,32,96], index: 19, kind: output, shape index: {}]
  %s20 = sld [smem:[#allocation0]]
  $region109: #{vanilla_ae_forward.1} parent=0
    _
  %s22 = ssub.s32 1, %s20
  %s23 = scalar_select 0, %s22, %s20
  loop: start=0, step=1, limit=4
  $region2: #{vanilla_ae_forward.1} parent=0 // loop_pre_header
    _
  $region3: #{vanilla_ae_forward.1} parent=0 // loop_header
    %s25 = sphi 0, %s29
    %p26 = scmp.ge.s32.totalorder %s25, 4
    %s35 = sphi 0, %s37
    %s38 = sphi 0, %s35
    %s39 = sphi 0, %s38
    %s55 = sphi 0, %s39
    %s59 = sphi 0, %s59
    %s61 = sphi 0, %s59
    %s62 = sphi 0, %s61
    %s76 = sphi 0, %s62
    %s80 = sphi 0, %s80
    %s82 = sphi 0, %s80
    %s83 = sphi 0, %s82
    %s97 = sphi 0, %s83
    %s101 = sphi 0, %s101
    %s103 = sphi 0, %s101
    %s104 = sphi 0, %s103
    %s118 = sphi 0, %s104
    %s122 = sphi 0, %s122
    %s124 = sphi 0, %s122
    %s125 = sphi 0, %s124
    %s139 = sphi 0, %s125
    %s143 = sphi 0, %s143
    %s145 = sphi 0, %s143
    %s146 = sphi 0, %s145
    %s160 = sphi 0, %s146
    %s164 = sphi 0, %s164
    %s166 = sphi 0, %s164
    %s167 = sphi 0, %s166
    %s181 = sphi 0, %s167
    %s185 = sphi 0, %s185
    %s187 = sphi 0, %s185
    %s188 = sphi 0, %s187
    %s202 = sphi 0, %s188
    %s206 = sphi 0, %s206
    %s208 = sphi 0, %s206
    %s209 = sphi 0, %s208
    %s223 = sphi 0, %s209
    %s227 = sphi 0, %s227
    %s229 = sphi 0, %s227
    %s230 = sphi 0, %s229
    %s244 = sphi 0, %s230
    %s248 = sphi 0, %s248
    %s250 = sphi 0, %s248
    %s251 = sphi 0, %s250
    %s265 = sphi 0, %s251
    %s269 = sphi 0, %s269
    %s271 = sphi 0, %s269
    %s272 = sphi 0, %s271
    %s286 = sphi 0, %s272
    %s290 = sphi 0, %s290
    %s292 = sphi 0, %s290
    %s293 = sphi 0, %s292
    %s307 = sphi 0, %s293
    %s311 = sphi 0, %s311
    %s313 = sphi 0, %s311
    %s314 = sphi 0, %s313
    %s328 = sphi 0, %s314
    %s332 = sphi 0, %s332
    %s334 = sphi 0, %s332
    %s335 = sphi 0, %s334
    %s349 = sphi 0, %s335
    %s353 = sphi 0, %s353
    %s355 = sphi 0, %s353
    %s356 = sphi 0, %s355
    %s370 = sphi 0, %s356
    %s374 = sphi 0, %s374
    %s376 = sphi 0, %s374
    %s377 = sphi 0, %s376
    %s391 = sphi 0, %s377
    %s395 = sphi 0, %s395
    %s397 = sphi 0, %s395
    %s398 = sphi 0, %s397
    %s412 = sphi 0, %s398
    %s416 = sphi 0, %s416
    %s418 = sphi 0, %s416
    %s419 = sphi 0, %s418
    %s433 = sphi 0, %s419
    %s439 = sphi 0, %s441
    %s442 = sphi 0, %s439
    %s443 = sphi 0, %s442
    %s459 = sphi 0, %s443
  $region4: #{vanilla_ae_forward.1} parent=0 // loop_header_branch
    %28 = sbr.rel (%p26) target = $region8
  $region5: #{vanilla_ae_forward.1} parent=0 // loop_body
    %s30 = ssub.s32 %s25, 1
    %s31 = ssub.s32 %s25, 2
    %s32 = sadd.s32 %s25, 1
    %s33 = ssub.s32 %s25, %s32
    %p34 = scmp.eq.s32.totalorder %s33, 0
    %s36 = sadd.s32 %s35, 1
    %s37 = scalar_select %p34, %s35, %s36
    %p40 = pneg %p34
    %p41 = scmp.eq.s32.totalorder %s25, 1
    %p42 = por %p40, %p41
    %p43 = scmp.ne.s32.totalorder %s35, %s38
    %p44 = scmp.eq.s32.totalorder %s25, 0
    %p45 = por %p43, %p44
    %p46 = scmp.ne.s32.totalorder %s35, %s38
    %p47 = scmp.eq.s32.totalorder %s30, 1
    %p48 = por %p46, %p47
    %p49 = scmp.ne.s32.totalorder %s38, %s39
    %p50 = scmp.eq.s32.totalorder %s30, 0
    %p51 = por %p49, %p50
    %p52 = scmp.ne.s32.totalorder %s38, %s39
    %p53 = scmp.eq.s32.totalorder %s31, 1
    %p54 = por %p52, %p53
    %p56 = scmp.ne.s32.totalorder %s39, %s55
    %p57 = scmp.eq.s32.totalorder %s31, 0
    %p58 = por %p56, %p57
    %s60 = sadd.s32 %s59, 1
    %p63 = scmp.eq.s32.totalorder %s25, 1
    %p64 = scmp.ne.s32.totalorder %s59, %s61
    %p65 = scmp.eq.s32.totalorder %s25, 0
    %p66 = por %p64, %p65
    %p67 = scmp.ne.s32.totalorder %s59, %s61
    %p68 = scmp.eq.s32.totalorder %s30, 1
    %p69 = por %p67, %p68
    %p70 = scmp.ne.s32.totalorder %s61, %s62
    %p71 = scmp.eq.s32.totalorder %s30, 0
    %p72 = por %p70, %p71
    %p73 = scmp.ne.s32.totalorder %s61, %s62
    %p74 = scmp.eq.s32.totalorder %s31, 1
    %p75 = por %p73, %p74
    %p77 = scmp.ne.s32.totalorder %s62, %s76
    %p78 = scmp.eq.s32.totalorder %s31, 0
    %p79 = por %p77, %p78
    %s81 = sadd.s32 %s80, 1
    %p84 = scmp.eq.s32.totalorder %s25, 1
    %p85 = scmp.ne.s32.totalorder %s80, %s82
    %p86 = scmp.eq.s32.totalorder %s25, 0
    %p87 = por %p85, %p86
    %p88 = scmp.ne.s32.totalorder %s80, %s82
    %p89 = scmp.eq.s32.totalorder %s30, 1
    %p90 = por %p88, %p89
    %p91 = scmp.ne.s32.totalorder %s82, %s83
    %p92 = scmp.eq.s32.totalorder %s30, 0
    %p93 = por %p91, %p92
    %p94 = scmp.ne.s32.totalorder %s82, %s83
    %p95 = scmp.eq.s32.totalorder %s31, 1
    %p96 = por %p94, %p95
    %p98 = scmp.ne.s32.totalorder %s83, %s97
    %p99 = scmp.eq.s32.totalorder %s31, 0
    %p100 = por %p98, %p99
    %s102 = sadd.s32 %s101, 1
    %p105 = scmp.eq.s32.totalorder %s25, 1
    %p106 = scmp.ne.s32.totalorder %s101, %s103
    %p107 = scmp.eq.s32.totalorder %s25, 0
    %p108 = por %p106, %p107
    %p109 = scmp.ne.s32.totalorder %s101, %s103
    %p110 = scmp.eq.s32.totalorder %s30, 1
    %p111 = por %p109, %p110
    %p112 = scmp.ne.s32.totalorder %s103, %s104
    %p113 = scmp.eq.s32.totalorder %s30, 0
    %p114 = por %p112, %p113
    %p115 = scmp.ne.s32.totalorder %s103, %s104
    %p116 = scmp.eq.s32.totalorder %s31, 1
    %p117 = por %p115, %p116
    %p119 = scmp.ne.s32.totalorder %s104, %s118
    %p120 = scmp.eq.s32.totalorder %s31, 0
    %p121 = por %p119, %p120
    %s123 = sadd.s32 %s122, 1
    %p126 = scmp.eq.s32.totalorder %s25, 1
    %p127 = scmp.ne.s32.totalorder %s122, %s124
    %p128 = scmp.eq.s32.totalorder %s25, 0
    %p129 = por %p127, %p128
    %p130 = scmp.ne.s32.totalorder %s122, %s124
    %p131 = scmp.eq.s32.totalorder %s30, 1
    %p132 = por %p130, %p131
    %p133 = scmp.ne.s32.totalorder %s124, %s125
    %p134 = scmp.eq.s32.totalorder %s30, 0
    %p135 = por %p133, %p134
    %p136 = scmp.ne.s32.totalorder %s124, %s125
    %p137 = scmp.eq.s32.totalorder %s31, 1
    %p138 = por %p136, %p137
    %p140 = scmp.ne.s32.totalorder %s125, %s139
    %p141 = scmp.eq.s32.totalorder %s31, 0
    %p142 = por %p140, %p141
    %s144 = sadd.s32 %s143, 1
    %p147 = scmp.eq.s32.totalorder %s25, 1
    %p148 = scmp.ne.s32.totalorder %s143, %s145
    %p149 = scmp.eq.s32.totalorder %s25, 0
    %p150 = por %p148, %p149
    %p151 = scmp.ne.s32.totalorder %s143, %s145
    %p152 = scmp.eq.s32.totalorder %s30, 1
    %p153 = por %p151, %p152
    %p154 = scmp.ne.s32.totalorder %s145, %s146
    %p155 = scmp.eq.s32.totalorder %s30, 0
    %p156 = por %p154, %p155
    %p157 = scmp.ne.s32.totalorder %s145, %s146
    %p158 = scmp.eq.s32.totalorder %s31, 1
    %p159 = por %p157, %p158
    %p161 = scmp.ne.s32.totalorder %s146, %s160
    %p162 = scmp.eq.s32.totalorder %s31, 0
    %p163 = por %p161, %p162
    %s165 = sadd.s32 %s164, 1
    %p168 = scmp.eq.s32.totalorder %s25, 1
    %p169 = scmp.ne.s32.totalorder %s164, %s166
    %p170 = scmp.eq.s32.totalorder %s25, 0
    %p171 = por %p169, %p170
    %p172 = scmp.ne.s32.totalorder %s164, %s166
    %p173 = scmp.eq.s32.totalorder %s30, 1
    %p174 = por %p172, %p173
    %p175 = scmp.ne.s32.totalorder %s166, %s167
    %p176 = scmp.eq.s32.totalorder %s30, 0
    %p177 = por %p175, %p176
    %p178 = scmp.ne.s32.totalorder %s166, %s167
    %p179 = scmp.eq.s32.totalorder %s31, 1
    %p180 = por %p178, %p179
    %p182 = scmp.ne.s32.totalorder %s167, %s181
    %p183 = scmp.eq.s32.totalorder %s31, 0
    %p184 = por %p182, %p183
    %s186 = sadd.s32 %s185, 1
    %p189 = scmp.eq.s32.totalorder %s25, 1
    %p190 = scmp.ne.s32.totalorder %s185, %s187
    %p191 = scmp.eq.s32.totalorder %s25, 0
    %p192 = por %p190, %p191
    %p193 = scmp.ne.s32.totalorder %s185, %s187
    %p194 = scmp.eq.s32.totalorder %s30, 1
    %p195 = por %p193, %p194
    %p196 = scmp.ne.s32.totalorder %s187, %s188
    %p197 = scmp.eq.s32.totalorder %s30, 0
    %p198 = por %p196, %p197
    %p199 = scmp.ne.s32.totalorder %s187, %s188
    %p200 = scmp.eq.s32.totalorder %s31, 1
    %p201 = por %p199, %p200
    %p203 = scmp.ne.s32.totalorder %s188, %s202
    %p204 = scmp.eq.s32.totalorder %s31, 0
    %p205 = por %p203, %p204
    %s207 = sadd.s32 %s206, 1
    %p210 = scmp.eq.s32.totalorder %s25, 1
    %p211 = scmp.ne.s32.totalorder %s206, %s208
    %p212 = scmp.eq.s32.totalorder %s25, 0
    %p213 = por %p211, %p212
    %p214 = scmp.ne.s32.totalorder %s206, %s208
    %p215 = scmp.eq.s32.totalorder %s30, 1
    %p216 = por %p214, %p215
    %p217 = scmp.ne.s32.totalorder %s208, %s209
    %p218 = scmp.eq.s32.totalorder %s30, 0
    %p219 = por %p217, %p218
    %p220 = scmp.ne.s32.totalorder %s208, %s209
    %p221 = scmp.eq.s32.totalorder %s31, 1
    %p222 = por %p220, %p221
    %p224 = scmp.ne.s32.totalorder %s209, %s223
    %p225 = scmp.eq.s32.totalorder %s31, 0
    %p226 = por %p224, %p225
    %s228 = sadd.s32 %s227, 1
    %p231 = scmp.eq.s32.totalorder %s25, 1
    %p232 = scmp.ne.s32.totalorder %s227, %s229
    %p233 = scmp.eq.s32.totalorder %s25, 0
    %p234 = por %p232, %p233
    %p235 = scmp.ne.s32.totalorder %s227, %s229
    %p236 = scmp.eq.s32.totalorder %s30, 1
    %p237 = por %p235, %p236
    %p238 = scmp.ne.s32.totalorder %s229, %s230
    %p239 = scmp.eq.s32.totalorder %s30, 0
    %p240 = por %p238, %p239
    %p241 = scmp.ne.s32.totalorder %s229, %s230
    %p242 = scmp.eq.s32.totalorder %s31, 1
    %p243 = por %p241, %p242
    %p245 = scmp.ne.s32.totalorder %s230, %s244
    %p246 = scmp.eq.s32.totalorder %s31, 0
    %p247 = por %p245, %p246
    %s249 = sadd.s32 %s248, 1
    %p252 = scmp.eq.s32.totalorder %s25, 1
    %p253 = scmp.ne.s32.totalorder %s248, %s250
    %p254 = scmp.eq.s32.totalorder %s25, 0
    %p255 = por %p253, %p254
    %p256 = scmp.ne.s32.totalorder %s248, %s250
    %p257 = scmp.eq.s32.totalorder %s30, 1
    %p258 = por %p256, %p257
    %p259 = scmp.ne.s32.totalorder %s250, %s251
    %p260 = scmp.eq.s32.totalorder %s30, 0
    %p261 = por %p259, %p260
    %p262 = scmp.ne.s32.totalorder %s250, %s251
    %p263 = scmp.eq.s32.totalorder %s31, 1
    %p264 = por %p262, %p263
    %p266 = scmp.ne.s32.totalorder %s251, %s265
    %p267 = scmp.eq.s32.totalorder %s31, 0
    %p268 = por %p266, %p267
    %s270 = sadd.s32 %s269, 1
    %p273 = scmp.eq.s32.totalorder %s25, 1
    %p274 = scmp.ne.s32.totalorder %s269, %s271
    %p275 = scmp.eq.s32.totalorder %s25, 0
    %p276 = por %p274, %p275
    %p277 = scmp.ne.s32.totalorder %s269, %s271
    %p278 = scmp.eq.s32.totalorder %s30, 1
    %p279 = por %p277, %p278
    %p280 = scmp.ne.s32.totalorder %s271, %s272
    %p281 = scmp.eq.s32.totalorder %s30, 0
    %p282 = por %p280, %p281
    %p283 = scmp.ne.s32.totalorder %s271, %s272
    %p284 = scmp.eq.s32.totalorder %s31, 1
    %p285 = por %p283, %p284
    %p287 = scmp.ne.s32.totalorder %s272, %s286
    %p288 = scmp.eq.s32.totalorder %s31, 0
    %p289 = por %p287, %p288
    %s291 = sadd.s32 %s290, 1
    %p294 = scmp.eq.s32.totalorder %s25, 1
    %p295 = scmp.ne.s32.totalorder %s290, %s292
    %p296 = scmp.eq.s32.totalorder %s25, 0
    %p297 = por %p295, %p296
    %p298 = scmp.ne.s32.totalorder %s290, %s292
    %p299 = scmp.eq.s32.totalorder %s30, 1
    %p300 = por %p298, %p299
    %p301 = scmp.ne.s32.totalorder %s292, %s293
    %p302 = scmp.eq.s32.totalorder %s30, 0
    %p303 = por %p301, %p302
    %p304 = scmp.ne.s32.totalorder %s292, %s293
    %p305 = scmp.eq.s32.totalorder %s31, 1
    %p306 = por %p304, %p305
    %p308 = scmp.ne.s32.totalorder %s293, %s307
    %p309 = scmp.eq.s32.totalorder %s31, 0
    %p310 = por %p308, %p309
    %s312 = sadd.s32 %s311, 1
    %p315 = scmp.eq.s32.totalorder %s25, 1
    %p316 = scmp.ne.s32.totalorder %s311, %s313
    %p317 = scmp.eq.s32.totalorder %s25, 0
    %p318 = por %p316, %p317
    %p319 = scmp.ne.s32.totalorder %s311, %s313
    %p320 = scmp.eq.s32.totalorder %s30, 1
    %p321 = por %p319, %p320
    %p322 = scmp.ne.s32.totalorder %s313, %s314
    %p323 = scmp.eq.s32.totalorder %s30, 0
    %p324 = por %p322, %p323
    %p325 = scmp.ne.s32.totalorder %s313, %s314
    %p326 = scmp.eq.s32.totalorder %s31, 1
    %p327 = por %p325, %p326
    %p329 = scmp.ne.s32.totalorder %s314, %s328
    %p330 = scmp.eq.s32.totalorder %s31, 0
    %p331 = por %p329, %p330
    %s333 = sadd.s32 %s332, 1
    %p336 = scmp.eq.s32.totalorder %s25, 1
    %p337 = scmp.ne.s32.totalorder %s332, %s334
    %p338 = scmp.eq.s32.totalorder %s25, 0
    %p339 = por %p337, %p338
    %p340 = scmp.ne.s32.totalorder %s332, %s334
    %p341 = scmp.eq.s32.totalorder %s30, 1
    %p342 = por %p340, %p341
    %p343 = scmp.ne.s32.totalorder %s334, %s335
    %p344 = scmp.eq.s32.totalorder %s30, 0
    %p345 = por %p343, %p344
    %p346 = scmp.ne.s32.totalorder %s334, %s335
    %p347 = scmp.eq.s32.totalorder %s31, 1
    %p348 = por %p346, %p347
    %p350 = scmp.ne.s32.totalorder %s335, %s349
    %p351 = scmp.eq.s32.totalorder %s31, 0
    %p352 = por %p350, %p351
    %s354 = sadd.s32 %s353, 1
    %p357 = scmp.eq.s32.totalorder %s25, 1
    %p358 = scmp.ne.s32.totalorder %s353, %s355
    %p359 = scmp.eq.s32.totalorder %s25, 0
    %p360 = por %p358, %p359
    %p361 = scmp.ne.s32.totalorder %s353, %s355
    %p362 = scmp.eq.s32.totalorder %s30, 1
    %p363 = por %p361, %p362
    %p364 = scmp.ne.s32.totalorder %s355, %s356
    %p365 = scmp.eq.s32.totalorder %s30, 0
    %p366 = por %p364, %p365
    %p367 = scmp.ne.s32.totalorder %s355, %s356
    %p368 = scmp.eq.s32.totalorder %s31, 1
    %p369 = por %p367, %p368
    %p371 = scmp.ne.s32.totalorder %s356, %s370
    %p372 = scmp.eq.s32.totalorder %s31, 0
    %p373 = por %p371, %p372
    %s375 = sadd.s32 %s374, 1
    %p378 = scmp.eq.s32.totalorder %s25, 1
    %p379 = scmp.ne.s32.totalorder %s374, %s376
    %p380 = scmp.eq.s32.totalorder %s25, 0
    %p381 = por %p379, %p380
    %p382 = scmp.ne.s32.totalorder %s374, %s376
    %p383 = scmp.eq.s32.totalorder %s30, 1
    %p384 = por %p382, %p383
    %p385 = scmp.ne.s32.totalorder %s376, %s377
    %p386 = scmp.eq.s32.totalorder %s30, 0
    %p387 = por %p385, %p386
    %p388 = scmp.ne.s32.totalorder %s376, %s377
    %p389 = scmp.eq.s32.totalorder %s31, 1
    %p390 = por %p388, %p389
    %p392 = scmp.ne.s32.totalorder %s377, %s391
    %p393 = scmp.eq.s32.totalorder %s31, 0
    %p394 = por %p392, %p393
    %s396 = sadd.s32 %s395, 1
    %p399 = scmp.eq.s32.totalorder %s25, 1
    %p400 = scmp.ne.s32.totalorder %s395, %s397
    %p401 = scmp.eq.s32.totalorder %s25, 0
    %p402 = por %p400, %p401
    %p403 = scmp.ne.s32.totalorder %s395, %s397
    %p404 = scmp.eq.s32.totalorder %s30, 1
    %p405 = por %p403, %p404
    %p406 = scmp.ne.s32.totalorder %s397, %s398
    %p407 = scmp.eq.s32.totalorder %s30, 0
    %p408 = por %p406, %p407
    %p409 = scmp.ne.s32.totalorder %s397, %s398
    %p410 = scmp.eq.s32.totalorder %s31, 1
    %p411 = por %p409, %p410
    %p413 = scmp.ne.s32.totalorder %s398, %s412
    %p414 = scmp.eq.s32.totalorder %s31, 0
    %p415 = por %p413, %p414
    %s417 = sadd.s32 %s416, 1
    %p420 = scmp.eq.s32.totalorder %s25, 1
    %p421 = scmp.ne.s32.totalorder %s416, %s418
    %p422 = scmp.eq.s32.totalorder %s25, 0
    %p423 = por %p421, %p422
    %p424 = scmp.ne.s32.totalorder %s416, %s418
    %p425 = scmp.eq.s32.totalorder %s30, 1
    %p426 = por %p424, %p425
    %p427 = scmp.ne.s32.totalorder %s418, %s419
    %p428 = scmp.eq.s32.totalorder %s30, 0
    %p429 = por %p427, %p428
    %p430 = scmp.ne.s32.totalorder %s418, %s419
    %p431 = scmp.eq.s32.totalorder %s31, 1
    %p432 = por %p430, %p431
    %p434 = scmp.ne.s32.totalorder %s419, %s433
    %p435 = scmp.eq.s32.totalorder %s31, 0
    %p436 = por %p434, %p435
    %s437 = ssub.s32 %s25, %s32
    %p438 = scmp.eq.s32.totalorder %s437, 0
    %s440 = sadd.s32 %s439, 1
    %s441 = scalar_select %p438, %s439, %s440
    %p444 = pneg %p438
    %p445 = scmp.eq.s32.totalorder %s25, 1
    %p446 = por %p444, %p445
    %p447 = scmp.ne.s32.totalorder %s439, %s442
    %p448 = scmp.eq.s32.totalorder %s25, 0
    %p449 = por %p447, %p448
    %p450 = scmp.ne.s32.totalorder %s439, %s442
    %p451 = scmp.eq.s32.totalorder %s30, 1
    %p452 = por %p450, %p451
    %p453 = scmp.ne.s32.totalorder %s442, %s443
    %p454 = scmp.eq.s32.totalorder %s30, 0
    %p455 = por %p453, %p454
    %p456 = scmp.ne.s32.totalorder %s442, %s443
    %p457 = scmp.eq.s32.totalorder %s31, 1
    %p458 = por %p456, %p457
    %p460 = scmp.ne.s32.totalorder %s443, %s459
    %p461 = scmp.eq.s32.totalorder %s31, 0
    %p462 = por %p460, %p461
    %p463 = scmp.le.s32.totalorder 1, %s25
    %p464 = scmp.lt.s32.totalorder %s25, 3
    %p465 = pnand %p463, %p464
    %p466 = pneg %p465
    // Predicated region
    $region9: #{vanilla_ae_forward.1} parent=5 // pred_check
      _
    $region10: #{vanilla_ae_forward.1} parent=5 // pred_check_branch
      %468 = sbr.rel (%p465) target = $region12
    $region11: #{vanilla_ae_forward.1} parent=5 // pred_region
      %s469 = ssub.s32 %s25, 1
      // Predicated region
      $region13: #{vanilla_ae_forward.1} parent=11 // pred_check
        %p470 = pneg %p72
      $region14: #{vanilla_ae_forward.1} parent=11 // pred_check_branch
        %472 = sbr.rel (%p470) target = $region16
      $region15: #{vanilla_ae_forward.1} parent=11 // pred_region
        _
      $region16: #{vanilla_ae_forward.1} parent=11 // pred_fallthru
        _
      // Predicated region
      $region17: #{vanilla_ae_forward.1} parent=11 // pred_check
        %p473 = pneg %p93
      $region18: #{vanilla_ae_forward.1} parent=11 // pred_check_branch
        %475 = sbr.rel (%p473) target = $region20
      $region19: #{vanilla_ae_forward.1} parent=11 // pred_region
        _
      $region20: #{vanilla_ae_forward.1} parent=11 // pred_fallthru
        _
      // Predicated region
      $region21: #{vanilla_ae_forward.1} parent=11 // pred_check
        %p476 = pneg %p114
      $region22: #{vanilla_ae_forward.1} parent=11 // pred_check_branch
        %478 = sbr.rel (%p476) target = $region24
      $region23: #{vanilla_ae_forward.1} parent=11 // pred_region
        _
      $region24: #{vanilla_ae_forward.1} parent=11 // pred_fallthru
        _
      // Predicated region
      $region25: #{vanilla_ae_forward.1} parent=11 // pred_check
        %p479 = pneg %p135
      $region26: #{vanilla_ae_forward.1} parent=11 // pred_check_branch
        %481 = sbr.rel (%p479) target = $region28
      $region27: #{vanilla_ae_forward.1} parent=11 // pred_region
        _
      $region28: #{vanilla_ae_forward.1} parent=11 // pred_fallthru
        _
      // Predicated region
      $region29: #{vanilla_ae_forward.1} parent=11 // pred_check
        %p482 = pneg %p156
      $region30: #{vanilla_ae_forward.1} parent=11 // pred_check_branch
        %484 = sbr.rel (%p482) target = $region32
      $region31: #{vanilla_ae_forward.1} parent=11 // pred_region
        _
      $region32: #{vanilla_ae_forward.1} parent=11 // pred_fallthru
        _
      // Predicated region
      $region33: #{vanilla_ae_forward.1} parent=11 // pred_check
        %p485 = pneg %p177
      $region34: #{vanilla_ae_forward.1} parent=11 // pred_check_branch
        %487 = sbr.rel (%p485) target = $region36
      $region35: #{vanilla_ae_forward.1} parent=11 // pred_region
        _
      $region36: #{vanilla_ae_forward.1} parent=11 // pred_fallthru
        _
      // Predicated region
      $region37: #{vanilla_ae_forward.1} parent=11 // pred_check
        %p488 = pneg %p198
      $region38: #{vanilla_ae_forward.1} parent=11 // pred_check_branch
        %490 = sbr.rel (%p488) target = $region40
      $region39: #{vanilla_ae_forward.1} parent=11 // pred_region
        _
      $region40: #{vanilla_ae_forward.1} parent=11 // pred_fallthru
        _
      // Predicated region
      $region41: #{vanilla_ae_forward.1} parent=11 // pred_check
        %p491 = pneg %p219
      $region42: #{vanilla_ae_forward.1} parent=11 // pred_check_branch
        %493 = sbr.rel (%p491) target = $region44
      $region43: #{vanilla_ae_forward.1} parent=11 // pred_region
        _
      $region44: #{vanilla_ae_forward.1} parent=11 // pred_fallthru
        _
      // Predicated region
      $region45: #{vanilla_ae_forward.1} parent=11 // pred_check
        %p494 = pneg %p240
      $region46: #{vanilla_ae_forward.1} parent=11 // pred_check_branch
        %496 = sbr.rel (%p494) target = $region48
      $region47: #{vanilla_ae_forward.1} parent=11 // pred_region
        _
      $region48: #{vanilla_ae_forward.1} parent=11 // pred_fallthru
        _
      // Predicated region
      $region49: #{vanilla_ae_forward.1} parent=11 // pred_check
        %p497 = pneg %p261
      $region50: #{vanilla_ae_forward.1} parent=11 // pred_check_branch
        %499 = sbr.rel (%p497) target = $region52
      $region51: #{vanilla_ae_forward.1} parent=11 // pred_region
        _
      $region52: #{vanilla_ae_forward.1} parent=11 // pred_fallthru
        _
      // Predicated region
      $region53: #{vanilla_ae_forward.1} parent=11 // pred_check
        %p500 = pneg %p282
      $region54: #{vanilla_ae_forward.1} parent=11 // pred_check_branch
        %502 = sbr.rel (%p500) target = $region56
      $region55: #{vanilla_ae_forward.1} parent=11 // pred_region
        _
      $region56: #{vanilla_ae_forward.1} parent=11 // pred_fallthru
        _
      // Predicated region
      $region57: #{vanilla_ae_forward.1} parent=11 // pred_check
        %p503 = pneg %p303
      $region58: #{vanilla_ae_forward.1} parent=11 // pred_check_branch
        %505 = sbr.rel (%p503) target = $region60
      $region59: #{vanilla_ae_forward.1} parent=11 // pred_region
        _
      $region60: #{vanilla_ae_forward.1} parent=11 // pred_fallthru
        _
      // Predicated region
      $region61: #{vanilla_ae_forward.1} parent=11 // pred_check
        %p506 = pneg %p324
      $region62: #{vanilla_ae_forward.1} parent=11 // pred_check_branch
        %508 = sbr.rel (%p506) target = $region64
      $region63: #{vanilla_ae_forward.1} parent=11 // pred_region
        _
      $region64: #{vanilla_ae_forward.1} parent=11 // pred_fallthru
        _
      // Predicated region
      $region65: #{vanilla_ae_forward.1} parent=11 // pred_check
        %p509 = pneg %p345
      $region66: #{vanilla_ae_forward.1} parent=11 // pred_check_branch
        %511 = sbr.rel (%p509) target = $region68
      $region67: #{vanilla_ae_forward.1} parent=11 // pred_region
        _
      $region68: #{vanilla_ae_forward.1} parent=11 // pred_fallthru
        _
      // Predicated region
      $region69: #{vanilla_ae_forward.1} parent=11 // pred_check
        %p512 = pneg %p366
      $region70: #{vanilla_ae_forward.1} parent=11 // pred_check_branch
        %514 = sbr.rel (%p512) target = $region72
      $region71: #{vanilla_ae_forward.1} parent=11 // pred_region
        _
      $region72: #{vanilla_ae_forward.1} parent=11 // pred_fallthru
        _
      // Predicated region
      $region73: #{vanilla_ae_forward.1} parent=11 // pred_check
        %p515 = pneg %p387
      $region74: #{vanilla_ae_forward.1} parent=11 // pred_check_branch
        %517 = sbr.rel (%p515) target = $region76
      $region75: #{vanilla_ae_forward.1} parent=11 // pred_region
        _
      $region76: #{vanilla_ae_forward.1} parent=11 // pred_fallthru
        _
      // Predicated region
      $region77: #{vanilla_ae_forward.1} parent=11 // pred_check
        %p518 = pneg %p408
      $region78: #{vanilla_ae_forward.1} parent=11 // pred_check_branch
        %520 = sbr.rel (%p518) target = $region80
      $region79: #{vanilla_ae_forward.1} parent=11 // pred_region
        _
      $region80: #{vanilla_ae_forward.1} parent=11 // pred_fallthru
        _
      // Predicated region
      $region81: #{vanilla_ae_forward.1} parent=11 // pred_check
        %p521 = pneg %p429
      $region82: #{vanilla_ae_forward.1} parent=11 // pred_check_branch
        %523 = sbr.rel (%p521) target = $region84
      $region83: #{vanilla_ae_forward.1} parent=11 // pred_region
        _
      $region84: #{vanilla_ae_forward.1} parent=11 // pred_fallthru
        _
    $region12: #{vanilla_ae_forward.1} parent=5 // pred_fallthru
      _
    %p524 = scmp.lt.s32.totalorder %s25, 2
    // Predicated region
    $region85: #{vanilla_ae_forward.1} parent=5 // pred_check
      %p525 = pneg %p524
    $region86: #{vanilla_ae_forward.1} parent=5 // pred_check_branch
      %527 = sbr.rel (%p525) target = $region88
    $region87: #{vanilla_ae_forward.1} parent=5 // pred_region
      // Predicated region
      $region89: #{vanilla_ae_forward.1} parent=87 // pred_check
        %p528 = pneg %p45
      $region90: #{vanilla_ae_forward.1} parent=87 // pred_check_branch
        %530 = sbr.rel (%p528) target = $region92
      $region91: #{vanilla_ae_forward.1} parent=87 // pred_region
        %p531 = scmp.lt.s32.totalorder %s25, 1
        %s532 = scalar_select %p531, %s25, 1
        %s533 = smul.addr %s532, 4
        %s534 = smul.addr %s533, 8
        %s535 = scalar_lea.vmem %s0, %s534
      $region92: #{vanilla_ae_forward.1} parent=87 // pred_fallthru
        _
    $region88: #{vanilla_ae_forward.1} parent=5 // pred_fallthru
      _
    %p536 = scmp.le.s32.totalorder 1, %s25
    %p537 = scmp.lt.s32.totalorder %s25, 3
    %p538 = pnand %p536, %p537
    %p539 = pneg %p538
    // Predicated region
    $region93: #{vanilla_ae_forward.1} parent=5 // pred_check
      _
    $region94: #{vanilla_ae_forward.1} parent=5 // pred_check_branch
      %541 = sbr.rel (%p538) target = $region96
    $region95: #{vanilla_ae_forward.1} parent=5 // pred_region
      %s542 = ssub.s32 %s25, 1
      %p543 = scmp.lt.s32.totalorder %s30, 1
      %s544 = scalar_select %p543, %s30, 1
      %s545 = smul.addr %s544, 4
      %s546 = smul.addr %s545, 8
      %s547 = scalar_lea.vmem %s0, %s546
      %p548 = pneg %p51
      %p549 = pneg %p48
      %p550 = pneg %p72
      %p551 = pneg %p69
      %p552 = pneg %p93
      %p553 = pneg %p90
      %p554 = pneg %p114
      %p555 = pneg %p111
      %p556 = pneg %p135
      %p557 = pneg %p132
      %p558 = pneg %p156
      %p559 = pneg %p153
      %p560 = pneg %p177
      %p561 = pneg %p174
      %p562 = pneg %p198
      %p563 = pneg %p195
      %p564 = pneg %p219
      %p565 = pneg %p216
      %p566 = pneg %p240
      %p567 = pneg %p237
      %p568 = pneg %p261
      %p569 = pneg %p258
      %p570 = pneg %p282
      %p571 = pneg %p279
      %p572 = pneg %p303
      %p573 = pneg %p300
      %p574 = pneg %p324
      %p575 = pneg %p321
      %p576 = pneg %p345
      %p577 = pneg %p342
      %p578 = pneg %p366
      %p579 = pneg %p363
      %p580 = pneg %p387
      %p581 = pneg %p384
      %p582 = pneg %p408
      %p583 = pneg %p405
      %p584 = pneg %p429
      %p585 = pneg %p426
      %p586 = pneg %p455
      %p587 = pneg %p452
      %p588 = scmp.lt.s32.totalorder %s30, 1
      %s589 = scalar_select %p588, %s30, 1
      %s590 = smul.addr %s589, 4
      %s591 = smul.addr %s590, 8
      %s592 = scalar_lea.vmem %s19, %s591
      %p593 = scmp.lt.s32.totalorder %s30, 1
      %s594 = scalar_select %p593, %s30, 1
      %s595 = smul.addr %s594, 4
      %s596 = smul.addr %s595, 8
      %s597 = scalar_lea.vmem %s0, %s596
      %p598 = scmp.lt.s32.totalorder %s30, 1
      %s599 = scalar_select %p598, %s30, 1
      %s600 = smul.addr %s599, 4
      %s601 = smul.addr %s600, 8
      %s602 = scalar_lea.vmem %s19, %s601
      %v604 = vld [vmem:[%s597] sm:$0xff]
      %v605 = vld [vmem:[%s597 + $0x8] sm:$0xff]
      %v606 = vld [vmem:[%s597 + $0x10] sm:$0xff]
      %v607 = vld [vmem:[%s597 + $0x18] sm:$0xff]
      %v608 = vpack.c.bf16 %v605, %v604
      %v609 = vpack.c.bf16 %v607, %v606
      %v610 = vld [vmem:[%s1] sm:$0xf]
      %v611 = vld [vmem:[%s1 + $0x4] sm:$0xf]
      %v612 = vld [vmem:[%s2] sm:$0xff]
      %v613 = vld [vmem:[%s2 + $0x8] sm:$0xff]
      %v614 = vld [vmem:[%s2 + $0x10] sm:$0xff]
      %v615 = vld [vmem:[%s2 + $0x18] sm:$0xff]
      %v616 = vld [vmem:[%s2 + $0x20] sm:$0xff]
      %v617 = vld [vmem:[%s2 + $0x28] sm:$0xff]
      %v618 = vld [vmem:[%s2 + $0x30] sm:$0xff]
      %v619 = vld [vmem:[%s2 + $0x38] sm:$0xff]
      %v620 = vld [vmem:[%s2 + $0x40] sm:$0xff]
      %v621 = vld [vmem:[%s2 + $0x48] sm:$0xff]
      %v622 = vld [vmem:[%s2 + $0x50] sm:$0xff]
      %v623 = vld [vmem:[%s2 + $0x58] sm:$0xff]
      %v626 = vunpack.c.l.b16 %v610
      %v627 = vunpack.c.l.b16 %v611
      %v628 = vpack.c.b16 %v627, %v626
      %vm629 = vcmask 261120
      %v631 = vsel %vm629, %v628, 0
      %633 = vmatprep.subr.bf16.mxu0 0
      %634 = vmatpush1.bf16.msra.mxu0 0
      %635 = vmatprep.subr.bf16.mxu0 0
      %636 = vmatpush1.bf16.msra.mxu0 0
      %637 = vmatprep.subr.bf16.mxu0 0
      %638 = vmatpush1.bf16.msra.mxu0 0
      %639 = vmatprep.subr.bf16.mxu0 0
      %640 = vmatpush1.bf16.msra.mxu0 0
      %641 = vmatprep.subr.bf16.mxu0 0
      %642 = vmatpush1.bf16.msra.mxu0 0
      %643 = vmatprep.subr.bf16.mxu0 0
      %644 = vmatpush1.bf16.msra.mxu0 0
      %645 = vmatprep.subr.bf16.mxu0 0
      %646 = vmatpush1.bf16.msra.mxu0 %v609
      %647 = vmatprep.subr.bf16.mxu0 0
      %648 = vmatpush1.bf16.msra.mxu0 %v608
      %649 = vmatprep.subr.bf16.mxu0 0
      %650 = vmatpush2.bf16.msra.mxu0 0
      %651 = vmatprep.subr.bf16.mxu0 0
      %652 = vmatpush2.bf16.msra.mxu0 0
      %653 = vmatprep.subr.bf16.mxu0 0
      %654 = vmatpush2.bf16.msra.mxu0 0
      %655 = vmatprep.subr.bf16.mxu0 0
      %656 = vmatpush2.bf16.msra.mxu0 0
      %657 = vmatprep.subr.bf16.mxu0 0
      %658 = vmatpush2.bf16.msra.mxu0 0
      %659 = vmatprep.subr.bf16.mxu0 0
      %660 = vmatpush2.bf16.msra.mxu0 0
      %661 = vmatprep.subr.bf16.mxu0 0
      %662 = vmatpush2.bf16.msra.mxu0 0
      %663 = vmatprep.subr.bf16.mxu0 0
      %664 = vmatpush2.bf16.msra.mxu0 0
      %665 = vmatprep.mubr.bf16.mxu0 0
      %666 = vmatmul.mubr.bf16.gmra.mxu0 %v631
      %v667 = vpop.f32.mrf.mxu0
      %v668 = vadd.f32 0.0, %v667
      %v669 = vpop.f32.mrf.mxu0
      %v670 = vpop.f32.mrf.mxu0
      %v671 = vadd.f32 0.0, %v670
      %v672 = vpop.f32.mrf.mxu0
      %673 = vdwg.mxu0
      %v674 = vpack.c.bf16 %v671, %v668
      %s675 = scalar_lea.vmem %s1, 8
      %v676 = vld [vmem:[%s675] sm:$0xf]
      %v677 = vld [vmem:[%s675 + $0x4] sm:$0xf]
      %s678 = scalar_lea.vmem %s2, 96
      %v679 = vld [vmem:[%s678] sm:$0xff]
      %v680 = vld [vmem:[%s678 + $0x8] sm:$0xff]
      %v681 = vld [vmem:[%s678 + $0x10] sm:$0xff]
      %v682 = vld [vmem:[%s678 + $0x18] sm:$0xff]
      %v683 = vld [vmem:[%s678 + $0x20] sm:$0xff]
      %v684 = vld [vmem:[%s678 + $0x28] sm:$0xff]
      %v685 = vld [vmem:[%s678 + $0x30] sm:$0xff]
      %v686 = vld [vmem:[%s678 + $0x38] sm:$0xff]
      %v687 = vld [vmem:[%s678 + $0x40] sm:$0xff]
      %v688 = vld [vmem:[%s678 + $0x48] sm:$0xff]
      %v689 = vld [vmem:[%s678 + $0x50] sm:$0xff]
      %v690 = vld [vmem:[%s678 + $0x58] sm:$0xff]
      %v693 = vunpack.c.l.b16 %v676
      %v694 = vunpack.c.l.b16 %v677
      %v695 = vpack.c.b16 %v694, %v693
      %v697 = vsel %vm629, %v695, 0
      %699 = vmatprep.subr.bf16.mxu0 0
      %700 = vmatpush1.bf16.msra.mxu0 0
      %701 = vmatprep.subr.bf16.mxu0 0
      %702 = vmatpush1.bf16.msra.mxu0 0
      %703 = vmatprep.subr.bf16.mxu0 0
      %704 = vmatpush1.bf16.msra.mxu0 0
      %705 = vmatprep.subr.bf16.mxu0 0
      %706 = vmatpush1.bf16.msra.mxu0 0
      %707 = vmatprep.subr.bf16.mxu0 0
      %708 = vmatpush1.bf16.msra.mxu0 0
      %709 = vmatprep.subr.bf16.mxu0 0
      %710 = vmatpush1.bf16.msra.mxu0 0
      %711 = vmatprep.subr.bf16.mxu0 0
      %712 = vmatpush1.bf16.msra.mxu0 %v609
      %713 = vmatprep.subr.bf16.mxu0 0
      %714 = vmatpush1.bf16.msra.mxu0 %v608
      %715 = vmatprep.subr.bf16.mxu0 0
      %716 = vmatpush2.bf16.msra.mxu0 0
      %717 = vmatprep.subr.bf16.mxu0 0
      %718 = vmatpush2.bf16.msra.mxu0 0
      %719 = vmatprep.subr.bf16.mxu0 0
      %720 = vmatpush2.bf16.msra.mxu0 0
      %721 = vmatprep.subr.bf16.mxu0 0
      %722 = vmatpush2.bf16.msra.mxu0 0
      %723 = vmatprep.subr.bf16.mxu0 0
      %724 = vmatpush2.bf16.msra.mxu0 0
      %725 = vmatprep.subr.bf16.mxu0 0
      %726 = vmatpush2.bf16.msra.mxu0 0
      %727 = vmatprep.subr.bf16.mxu0 0
      %728 = vmatpush2.bf16.msra.mxu0 0
      %729 = vmatprep.subr.bf16.mxu0 0
      %730 = vmatpush2.bf16.msra.mxu0 0
      %731 = vmatprep.mubr.bf16.mxu0 0
      %732 = vmatmul.mubr.bf16.gmra.mxu0 %v697
      %v733 = vpop.f32.mrf.mxu0
      %v734 = vadd.f32 0.0, %v733
      %v735 = vpop.f32.mrf.mxu0
      %v736 = vpop.f32.mrf.mxu0
      %v737 = vadd.f32 0.0, %v736
      %v738 = vpop.f32.mrf.mxu0
      %739 = vdwg.mxu0
      %v740 = vpack.c.bf16 %v737, %v734
      %v753 = vunpack.c.l.b16 %v679
      %v754 = vunpack.c.h.b16 %v679
      %v755 = vunpack.c.l.b16 %v680
      %v756 = vunpack.c.h.b16 %v680
      %v757 = vunpack.c.l.b16 %v681
      %v758 = vunpack.c.h.b16 %v681
      %v759 = vunpack.c.l.b16 %v682
      %v760 = vunpack.c.h.b16 %v682
      %v761 = vunpack.c.l.b16 %v683
      %v762 = vunpack.c.h.b16 %v683
      %v763 = vunpack.c.l.b16 %v684
      %v764 = vunpack.c.h.b16 %v684
      %v765 = vunpack.c.l.b16 %v685
      %v766 = vunpack.c.h.b16 %v685
      %v767 = vunpack.c.l.b16 %v686
      %v768 = vunpack.c.h.b16 %v686
      %v769 = vunpack.c.l.b16 %v687
      %v770 = vunpack.c.h.b16 %v687
      %v771 = vunpack.c.l.b16 %v688
      %v772 = vunpack.c.h.b16 %v688
      %v773 = vunpack.c.l.b16 %v689
      %v774 = vunpack.c.h.b16 %v689
      %v775 = vunpack.c.l.b16 %v690
      %v776 = vunpack.c.h.b16 %v690
      %v777 = vpack.c.b16 %v755, %v753
      %v778 = vpack.c.b16 %v756, %v754
      %v779 = vpack.c.b16 %v759, %v757
      %v780 = vpack.c.b16 %v760, %v758
      %v781 = vpack.c.b16 %v763, %v761
      %v782 = vpack.c.b16 %v764, %v762
      %v783 = vpack.c.b16 %v767, %v765
      %v784 = vpack.c.b16 %v768, %v766
      %v785 = vpack.c.b16 %v771, %v769
      %v786 = vpack.c.b16 %v772, %v770
      %v787 = vpack.c.b16 %v775, %v773
      %v788 = vpack.c.b16 %v776, %v774
      %vm801 = vcmask 785408
      %v803 = vsel %vm801, %v740, 0
      %805 = vmatprep.subr.bf16.mxu0 0
      %806 = vmatpush1.bf16.msra.mxu0 0
      %807 = vmatprep.subr.bf16.mxu0 0
      %808 = vmatpush1.bf16.msra.mxu0 0
      %809 = vmatprep.subr.bf16.mxu0 %v788
      %810 = vmatpush1.bf16.msra.mxu0 %v787
      %811 = vmatprep.subr.bf16.mxu0 %v786
      %812 = vmatpush1.bf16.msra.mxu0 %v785
      %813 = vmatprep.subr.bf16.mxu0 %v784
      %814 = vmatpush1.bf16.msra.mxu0 %v783
      %815 = vmatprep.subr.bf16.mxu0 %v782
      %816 = vmatpush1.bf16.msra.mxu0 %v781
      %817 = vmatprep.subr.bf16.mxu0 %v780
      %818 = vmatpush1.bf16.msra.mxu0 %v779
      %819 = vmatprep.subr.bf16.mxu0 %v778
      %820 = vmatpush1.bf16.msra.mxu0 %v777
      %821 = vmatprep.subr.bf16.mxu0 0
      %822 = vmatpush2.bf16.msra.mxu0 0
      %823 = vmatprep.subr.bf16.mxu0 0
      %824 = vmatpush2.bf16.msra.mxu0 0
      %825 = vmatprep.subr.bf16.mxu0 0
      %826 = vmatpush2.bf16.msra.mxu0 0
      %827 = vmatprep.subr.bf16.mxu0 0
      %828 = vmatpush2.bf16.msra.mxu0 0
      %829 = vmatprep.subr.bf16.mxu0 0
      %830 = vmatpush2.bf16.msra.mxu0 0
      %831 = vmatprep.subr.bf16.mxu0 0
      %832 = vmatpush2.bf16.msra.mxu0 0
      %833 = vmatprep.subr.bf16.mxu0 0
      %834 = vmatpush2.bf16.msra.mxu0 0
      %835 = vmatprep.subr.bf16.mxu0 0
      %836 = vmatpush2.bf16.msra.mxu0 0
      %837 = vmatprep.mubr.bf16.mxu0 0
      %838 = vmatmul.mubr.bf16.gmra.mxu0 %v803
      %v839 = vpop.f32.mrf.mxu0
      %v840 = vadd.f32 0.0, %v839
      %v841 = vpop.f32.mrf.mxu0
      %v842 = vadd.f32 0.0, %v841
      %v843 = vpop.f32.mrf.mxu0
      %v844 = vadd.f32 0.0, %v843
      %v845 = vpop.f32.mrf.mxu0
      %v846 = vadd.f32 0.0, %v845
      %847 = vdwg.mxu0
      %v860 = vunpack.c.l.b16 %v612
      %v861 = vunpack.c.h.b16 %v612
      %v862 = vunpack.c.l.b16 %v613
      %v863 = vunpack.c.h.b16 %v613
      %v864 = vunpack.c.l.b16 %v614
      %v865 = vunpack.c.h.b16 %v614
      %v866 = vunpack.c.l.b16 %v615
      %v867 = vunpack.c.h.b16 %v615
      %v868 = vunpack.c.l.b16 %v616
      %v869 = vunpack.c.h.b16 %v616
      %v870 = vunpack.c.l.b16 %v617
      %v871 = vunpack.c.h.b16 %v617
      %v872 = vunpack.c.l.b16 %v618
      %v873 = vunpack.c.h.b16 %v618
      %v874 = vunpack.c.l.b16 %v619
      %v875 = vunpack.c.h.b16 %v619
      %v876 = vunpack.c.l.b16 %v620
      %v877 = vunpack.c.h.b16 %v620
      %v878 = vunpack.c.l.b16 %v621
      %v879 = vunpack.c.h.b16 %v621
      %v880 = vunpack.c.l.b16 %v622
      %v881 = vunpack.c.h.b16 %v622
      %v882 = vunpack.c.l.b16 %v623
      %v883 = vunpack.c.h.b16 %v623
      %v884 = vpack.c.b16 %v862, %v860
      %v885 = vpack.c.b16 %v863, %v861
      %v886 = vpack.c.b16 %v866, %v864
      %v887 = vpack.c.b16 %v867, %v865
      %v888 = vpack.c.b16 %v870, %v868
      %v889 = vpack.c.b16 %v871, %v869
      %v890 = vpack.c.b16 %v874, %v872
      %v891 = vpack.c.b16 %v875, %v873
      %v892 = vpack.c.b16 %v878, %v876
      %v893 = vpack.c.b16 %v879, %v877
      %v894 = vpack.c.b16 %v882, %v880
      %v895 = vpack.c.b16 %v883, %v881
      %v909 = vsel %vm801, %v674, 0
      %911 = vmatprep.subr.bf16.mxu0 0
      %912 = vmatpush1.bf16.msra.mxu0 0
      %913 = vmatprep.subr.bf16.mxu0 0
      %914 = vmatpush1.bf16.msra.mxu0 0
      %915 = vmatprep.subr.bf16.mxu0 %v895
      %916 = vmatpush1.bf16.msra.mxu0 %v894
      %917 = vmatprep.subr.bf16.mxu0 %v893
      %918 = vmatpush1.bf16.msra.mxu0 %v892
      %919 = vmatprep.subr.bf16.mxu0 %v891
      %920 = vmatpush1.bf16.msra.mxu0 %v890
      %921 = vmatprep.subr.bf16.mxu0 %v889
      %922 = vmatpush1.bf16.msra.mxu0 %v888
      %923 = vmatprep.subr.bf16.mxu0 %v887
      %924 = vmatpush1.bf16.msra.mxu0 %v886
      %925 = vmatprep.subr.bf16.mxu0 %v885
      %926 = vmatpush1.bf16.msra.mxu0 %v884
      %927 = vmatprep.subr.bf16.mxu0 0
      %928 = vmatpush2.bf16.msra.mxu0 0
      %929 = vmatprep.subr.bf16.mxu0 0
      %930 = vmatpush2.bf16.msra.mxu0 0
      %931 = vmatprep.subr.bf16.mxu0 0
      %932 = vmatpush2.bf16.msra.mxu0 0
      %933 = vmatprep.subr.bf16.mxu0 0
      %934 = vmatpush2.bf16.msra.mxu0 0
      %935 = vmatprep.subr.bf16.mxu0 0
      %936 = vmatpush2.bf16.msra.mxu0 0
      %937 = vmatprep.subr.bf16.mxu0 0
      %938 = vmatpush2.bf16.msra.mxu0 0
      %939 = vmatprep.subr.bf16.mxu0 0
      %940 = vmatpush2.bf16.msra.mxu0 0
      %941 = vmatprep.subr.bf16.mxu0 0
      %942 = vmatpush2.bf16.msra.mxu0 0
      %943 = vmatprep.mubr.bf16.mxu0 0
      %944 = vmatmul.mubr.bf16.gmra.mxu0 %v909
      %v945 = vpop.f32.mrf.mxu0
      %v946 = vadd.f32 %v840, %v945
      %v947 = vpop.f32.mrf.mxu0
      %v948 = vadd.f32 %v842, %v947
      %v949 = vpop.f32.mrf.mxu0
      %v950 = vadd.f32 %v844, %v949
      %v951 = vpop.f32.mrf.mxu0
      %v952 = vadd.f32 %v846, %v951
      %953 = vdwg.mxu0
      %s954 = scalar_lea.vmem %s1, 16
      %v955 = vld [vmem:[%s954] sm:$0xf]
      %v956 = vld [vmem:[%s954 + $0x4] sm:$0xf]
      %s957 = scalar_lea.vmem %s2, 192
      %v958 = vld [vmem:[%s957] sm:$0xff]
      %v959 = vld [vmem:[%s957 + $0x8] sm:$0xff]
      %v960 = vld [vmem:[%s957 + $0x10] sm:$0xff]
      %v961 = vld [vmem:[%s957 + $0x18] sm:$0xff]
      %v962 = vld [vmem:[%s957 + $0x20] sm:$0xff]
      %v963 = vld [vmem:[%s957 + $0x28] sm:$0xff]
      %v964 = vld [vmem:[%s957 + $0x30] sm:$0xff]
      %v965 = vld [vmem:[%s957 + $0x38] sm:$0xff]
      %v966 = vld [vmem:[%s957 + $0x40] sm:$0xff]
      %v967 = vld [vmem:[%s957 + $0x48] sm:$0xff]
      %v968 = vld [vmem:[%s957 + $0x50] sm:$0xff]
      %v969 = vld [vmem:[%s957 + $0x58] sm:$0xff]
      %v972 = vunpack.c.l.b16 %v955
      %v973 = vunpack.c.l.b16 %v956
      %v974 = vpack.c.b16 %v973, %v972
      %v976 = vsel %vm629, %v974, 0
      %978 = vmatprep.subr.bf16.mxu0 0
      %979 = vmatpush1.bf16.msra.mxu0 0
      %980 = vmatprep.subr.bf16.mxu0 0
      %981 = vmatpush1.bf16.msra.mxu0 0
      %982 = vmatprep.subr.bf16.mxu0 0
      %983 = vmatpush1.bf16.msra.mxu0 0
      %984 = vmatprep.subr.bf16.mxu0 0
      %985 = vmatpush1.bf16.msra.mxu0 0
      %986 = vmatprep.subr.bf16.mxu0 0
      %987 = vmatpush1.bf16.msra.mxu0 0
      %988 = vmatprep.subr.bf16.mxu0 0
      %989 = vmatpush1.bf16.msra.mxu0 0
      %990 = vmatprep.subr.bf16.mxu0 0
      %991 = vmatpush1.bf16.msra.mxu0 %v609
      %992 = vmatprep.subr.bf16.mxu0 0
      %993 = vmatpush1.bf16.msra.mxu0 %v608
      %994 = vmatprep.subr.bf16.mxu0 0
      %995 = vmatpush2.bf16.msra.mxu0 0
      %996 = vmatprep.subr.bf16.mxu0 0
      %997 = vmatpush2.bf16.msra.mxu0 0
      %998 = vmatprep.subr.bf16.mxu0 0
      %999 = vmatpush2.bf16.msra.mxu0 0
      %1000 = vmatprep.subr.bf16.mxu0 0
      %1001 = vmatpush2.bf16.msra.mxu0 0
      %1002 = vmatprep.subr.bf16.mxu0 0
      %1003 = vmatpush2.bf16.msra.mxu0 0
      %1004 = vmatprep.subr.bf16.mxu0 0
      %1005 = vmatpush2.bf16.msra.mxu0 0
      %1006 = vmatprep.subr.bf16.mxu0 0
      %1007 = vmatpush2.bf16.msra.mxu0 0
      %1008 = vmatprep.subr.bf16.mxu0 0
      %1009 = vmatpush2.bf16.msra.mxu0 0
      %1010 = vmatprep.mubr.bf16.mxu0 0
      %1011 = vmatmul.mubr.bf16.gmra.mxu0 %v976
      %v1012 = vpop.f32.mrf.mxu0
      %v1013 = vadd.f32 0.0, %v1012
      %v1014 = vpop.f32.mrf.mxu0
      %v1015 = vpop.f32.mrf.mxu0
      %v1016 = vadd.f32 0.0, %v1015
      %v1017 = vpop.f32.mrf.mxu0
      %1018 = vdwg.mxu0
      %v1019 = vpack.c.bf16 %v1016, %v1013
      %v1032 = vunpack.c.l.b16 %v958
      %v1033 = vunpack.c.h.b16 %v958
      %v1034 = vunpack.c.l.b16 %v959
      %v1035 = vunpack.c.h.b16 %v959
      %v1036 = vunpack.c.l.b16 %v960
      %v1037 = vunpack.c.h.b16 %v960
      %v1038 = vunpack.c.l.b16 %v961
      %v1039 = vunpack.c.h.b16 %v961
      %v1040 = vunpack.c.l.b16 %v962
      %v1041 = vunpack.c.h.b16 %v962
      %v1042 = vunpack.c.l.b16 %v963
      %v1043 = vunpack.c.h.b16 %v963
      %v1044 = vunpack.c.l.b16 %v964
      %v1045 = vunpack.c.h.b16 %v964
      %v1046 = vunpack.c.l.b16 %v965
      %v1047 = vunpack.c.h.b16 %v965
      %v1048 = vunpack.c.l.b16 %v966
      %v1049 = vunpack.c.h.b16 %v966
      %v1050 = vunpack.c.l.b16 %v967
      %v1051 = vunpack.c.h.b16 %v967
      %v1052 = vunpack.c.l.b16 %v968
      %v1053 = vunpack.c.h.b16 %v968
      %v1054 = vunpack.c.l.b16 %v969
      %v1055 = vunpack.c.h.b16 %v969
      %v1056 = vpack.c.b16 %v1034, %v1032
      %v1057 = vpack.c.b16 %v1035, %v1033
      %v1058 = vpack.c.b16 %v1038, %v1036
      %v1059 = vpack.c.b16 %v1039, %v1037
      %v1060 = vpack.c.b16 %v1042, %v1040
      %v1061 = vpack.c.b16 %v1043, %v1041
      %v1062 = vpack.c.b16 %v1046, %v1044
      %v1063 = vpack.c.b16 %v1047, %v1045
      %v1064 = vpack.c.b16 %v1050, %v1048
      %v1065 = vpack.c.b16 %v1051, %v1049
      %v1066 = vpack.c.b16 %v1054, %v1052
      %v1067 = vpack.c.b16 %v1055, %v1053
      %v1081 = vsel %vm801, %v1019, 0
      %1083 = vmatprep.subr.bf16.mxu0 0
      %1084 = vmatpush1.bf16.msra.mxu0 0
      %1085 = vmatprep.subr.bf16.mxu0 0
      %1086 = vmatpush1.bf16.msra.mxu0 0
      %1087 = vmatprep.subr.bf16.mxu0 %v1067
      %1088 = vmatpush1.bf16.msra.mxu0 %v1066
      %1089 = vmatprep.subr.bf16.mxu0 %v1065
      %1090 = vmatpush1.bf16.msra.mxu0 %v1064
      %1091 = vmatprep.subr.bf16.mxu0 %v1063
      %1092 = vmatpush1.bf16.msra.mxu0 %v1062
      %1093 = vmatprep.subr.bf16.mxu0 %v1061
      %1094 = vmatpush1.bf16.msra.mxu0 %v1060
      %1095 = vmatprep.subr.bf16.mxu0 %v1059
      %1096 = vmatpush1.bf16.msra.mxu0 %v1058
      %1097 = vmatprep.subr.bf16.mxu0 %v1057
      %1098 = vmatpush1.bf16.msra.mxu0 %v1056
      %1099 = vmatprep.subr.bf16.mxu0 0
      %1100 = vmatpush2.bf16.msra.mxu0 0
      %1101 = vmatprep.subr.bf16.mxu0 0
      %1102 = vmatpush2.bf16.msra.mxu0 0
      %1103 = vmatprep.subr.bf16.mxu0 0
      %1104 = vmatpush2.bf16.msra.mxu0 0
      %1105 = vmatprep.subr.bf16.mxu0 0
      %1106 = vmatpush2.bf16.msra.mxu0 0
      %1107 = vmatprep.subr.bf16.mxu0 0
      %1108 = vmatpush2.bf16.msra.mxu0 0
      %1109 = vmatprep.subr.bf16.mxu0 0
      %1110 = vmatpush2.bf16.msra.mxu0 0
      %1111 = vmatprep.subr.bf16.mxu0 0
      %1112 = vmatpush2.bf16.msra.mxu0 0
      %1113 = vmatprep.subr.bf16.mxu0 0
      %1114 = vmatpush2.bf16.msra.mxu0 0
      %1115 = vmatprep.mubr.bf16.mxu0 0
      %1116 = vmatmul.mubr.bf16.gmra.mxu0 %v1081
      %v1117 = vpop.f32.mrf.mxu0
      %v1118 = vadd.f32 0.0, %v1117
      %v1119 = vpop.f32.mrf.mxu0
      %v1120 = vadd.f32 0.0, %v1119
      %v1121 = vpop.f32.mrf.mxu0
      %v1122 = vadd.f32 0.0, %v1121
      %v1123 = vpop.f32.mrf.mxu0
      %v1124 = vadd.f32 0.0, %v1123
      %1125 = vdwg.mxu0
      %v1126 = vadd.f32 %v946, %v1118
      %v1127 = vadd.f32 %v948, %v1120
      %v1128 = vadd.f32 %v950, %v1122
      %v1129 = vadd.f32 %v952, %v1124
      %v1130 = vld [vmem:[%s3] sm:$0x3]
      %v1132 = vlaneseq
      %v1133 = vshrl.u32 %v1132, 7
      %v1134 = vsub.s32 0, %v1133
      %v1135 = vrot.slane %v1130, %v1134
      %v1136 = vlaneseq
      %v1137 = vshrl.u32 %v1136, 7
      %v1138 = vsub.s32 1, %v1137
      %v1139 = vrot.slane %v1130, %v1138
      %v1142 = vadd.f32 %v1126, %v1135
      %v1143 = vadd.f32 %v1127, %v1139
      %v1144 = vadd.f32 %v1128, %v1135
      %v1145 = vadd.f32 %v1129, %v1139
      %v1146 = vmax.f32 %v1142, 0.0
      %v1147 = vmax.f32 %v1143, 0.0
      %v1148 = vmax.f32 %v1144, 0.0
      %v1149 = vmax.f32 %v1145, 0.0
      %v1150 = vpack.c.bf16 %v1148, %v1146
      %v1151 = vpack.c.bf16 %v1149, %v1147
      %v1152 = vld [vmem:[%s4] sm:$0xf]
      %v1153 = vld [vmem:[%s5] sm:$0xff]
      %v1154 = vld [vmem:[%s5 + $0x8] sm:$0xff]
      %v1155 = vld [vmem:[%s5 + $0x10] sm:$0xff]
      %v1156 = vld [vmem:[%s5 + $0x18] sm:$0xff]
      %v1157 = vld [vmem:[%s5 + $0x20] sm:$0xff]
      %v1158 = vld [vmem:[%s5 + $0x28] sm:$0xff]
      %v1159 = vld [vmem:[%s5 + $0x30] sm:$0xff]
      %v1160 = vld [vmem:[%s5 + $0x38] sm:$0xff]
      %v1161 = vld [vmem:[%s5 + $0x40] sm:$0xff]
      %v1162 = vld [vmem:[%s5 + $0x48] sm:$0xff]
      %v1163 = vld [vmem:[%s5 + $0x50] sm:$0xff]
      %v1164 = vld [vmem:[%s5 + $0x58] sm:$0xff]
      %v1165 = vld [vmem:[%s5 + $0x60] sm:$0xff]
      %v1166 = vld [vmem:[%s5 + $0x68] sm:$0xff]
      %v1167 = vld [vmem:[%s5 + $0x70] sm:$0xff]
      %v1168 = vld [vmem:[%s5 + $0x78] sm:$0xff]
      %v1169 = vld [vmem:[%s5 + $0x80] sm:$0xff]
      %v1170 = vld [vmem:[%s5 + $0x88] sm:$0xff]
      %v1171 = vld [vmem:[%s5 + $0x90] sm:$0xff]
      %v1172 = vld [vmem:[%s5 + $0x98] sm:$0xff]
      %v1173 = vld [vmem:[%s5 + $0xa0] sm:$0xff]
      %v1174 = vld [vmem:[%s5 + $0xa8] sm:$0xff]
      %v1175 = vld [vmem:[%s5 + $0xb0] sm:$0xff]
      %v1176 = vld [vmem:[%s5 + $0xb8] sm:$0xff]
      %vm1177 = vcmask 130048
      %v1179 = vsel %vm1177, %v1152, 0
      %1181 = vmatprep.subr.bf16.mxu0 0
      %1182 = vmatpush1.bf16.msra.mxu0 0
      %1183 = vmatprep.subr.bf16.mxu0 0
      %1184 = vmatpush1.bf16.msra.mxu0 0
      %1185 = vmatprep.subr.bf16.mxu0 0
      %1186 = vmatpush1.bf16.msra.mxu0 0
      %1187 = vmatprep.subr.bf16.mxu0 0
      %1188 = vmatpush1.bf16.msra.mxu0 0
      %1189 = vmatprep.subr.bf16.mxu0 0
      %1190 = vmatpush1.bf16.msra.mxu0 0
      %1191 = vmatprep.subr.bf16.mxu0 0
      %1192 = vmatpush1.bf16.msra.mxu0 0
      %1193 = vmatprep.subr.bf16.mxu0 0
      %1194 = vmatpush1.bf16.msra.mxu0 0
      %1195 = vmatprep.subr.bf16.mxu0 %v1151
      %1196 = vmatpush1.bf16.msra.mxu0 %v1150
      %1197 = vmatprep.subr.bf16.mxu0 0
      %1198 = vmatpush2.bf16.msra.mxu0 0
      %1199 = vmatprep.subr.bf16.mxu0 0
      %1200 = vmatpush2.bf16.msra.mxu0 0
      %1201 = vmatprep.subr.bf16.mxu0 0
      %1202 = vmatpush2.bf16.msra.mxu0 0
      %1203 = vmatprep.subr.bf16.mxu0 0
      %1204 = vmatpush2.bf16.msra.mxu0 0
      %1205 = vmatprep.subr.bf16.mxu0 0
      %1206 = vmatpush2.bf16.msra.mxu0 0
      %1207 = vmatprep.subr.bf16.mxu0 0
      %1208 = vmatpush2.bf16.msra.mxu0 0
      %1209 = vmatprep.subr.bf16.mxu0 0
      %1210 = vmatpush2.bf16.msra.mxu0 0
      %1211 = vmatprep.subr.bf16.mxu0 0
      %1212 = vmatpush2.bf16.msra.mxu0 0
      %1213 = vmatprep.mubr.bf16.mxu0 0
      %1214 = vmatmul.mubr.bf16.gmra.mxu0 %v1179
      %v1215 = vpop.f32.mrf.mxu0
      %v1216 = vadd.f32 0.0, %v1215
      %v1217 = vpop.f32.mrf.mxu0
      %v1218 = vadd.f32 0.0, %v1217
      %v1219 = vpop.f32.mrf.mxu0
      %v1220 = vpop.f32.mrf.mxu0
      %1221 = vdwg.mxu0
      %v1222 = vpack.c.bf16 %v1216, %v1216
      %v1223 = vpack.c.bf16 %v1218, %v1218
      %s1224 = scalar_lea.vmem %s4, 4
      %v1225 = vld [vmem:[%s1224] sm:$0xf]
      %s1226 = scalar_lea.vmem %s5, 192
      %v1227 = vld [vmem:[%s1226] sm:$0xff]
      %v1228 = vld [vmem:[%s1226 + $0x8] sm:$0xff]
      %v1229 = vld [vmem:[%s1226 + $0x10] sm:$0xff]
      %v1230 = vld [vmem:[%s1226 + $0x18] sm:$0xff]
      %v1231 = vld [vmem:[%s1226 + $0x20] sm:$0xff]
      %v1232 = vld [vmem:[%s1226 + $0x28] sm:$0xff]
      %v1233 = vld [vmem:[%s1226 + $0x30] sm:$0xff]
      %v1234 = vld [vmem:[%s1226 + $0x38] sm:$0xff]
      %v1235 = vld [vmem:[%s1226 + $0x40] sm:$0xff]
      %v1236 = vld [vmem:[%s1226 + $0x48] sm:$0xff]
      %v1237 = vld [vmem:[%s1226 + $0x50] sm:$0xff]
      %v1238 = vld [vmem:[%s1226 + $0x58] sm:$0xff]
      %v1239 = vld [vmem:[%s1226 + $0x60] sm:$0xff]
      %v1240 = vld [vmem:[%s1226 + $0x68] sm:$0xff]
      %v1241 = vld [vmem:[%s1226 + $0x70] sm:$0xff]
      %v1242 = vld [vmem:[%s1226 + $0x78] sm:$0xff]
      %v1243 = vld [vmem:[%s1226 + $0x80] sm:$0xff]
      %v1244 = vld [vmem:[%s1226 + $0x88] sm:$0xff]
      %v1245 = vld [vmem:[%s1226 + $0x90] sm:$0xff]
      %v1246 = vld [vmem:[%s1226 + $0x98] sm:$0xff]
      %v1247 = vld [vmem:[%s1226 + $0xa0] sm:$0xff]
      %v1248 = vld [vmem:[%s1226 + $0xa8] sm:$0xff]
      %v1249 = vld [vmem:[%s1226 + $0xb0] sm:$0xff]
      %v1250 = vld [vmem:[%s1226 + $0xb8] sm:$0xff]
      %v1252 = vsel %vm1177, %v1225, 0
      %1254 = vmatprep.subr.bf16.mxu0 0
      %1255 = vmatpush1.bf16.msra.mxu0 0
      %1256 = vmatprep.subr.bf16.mxu0 0
      %1257 = vmatpush1.bf16.msra.mxu0 0
      %1258 = vmatprep.subr.bf16.mxu0 0
      %1259 = vmatpush1.bf16.msra.mxu0 0
      %1260 = vmatprep.subr.bf16.mxu0 0
      %1261 = vmatpush1.bf16.msra.mxu0 0
      %1262 = vmatprep.subr.bf16.mxu0 0
      %1263 = vmatpush1.bf16.msra.mxu0 0
      %1264 = vmatprep.subr.bf16.mxu0 0
      %1265 = vmatpush1.bf16.msra.mxu0 0
      %1266 = vmatprep.subr.bf16.mxu0 0
      %1267 = vmatpush1.bf16.msra.mxu0 0
      %1268 = vmatprep.subr.bf16.mxu0 %v1151
      %1269 = vmatpush1.bf16.msra.mxu0 %v1150
      %1270 = vmatprep.subr.bf16.mxu0 0
      %1271 = vmatpush2.bf16.msra.mxu0 0
      %1272 = vmatprep.subr.bf16.mxu0 0
      %1273 = vmatpush2.bf16.msra.mxu0 0
      %1274 = vmatprep.subr.bf16.mxu0 0
      %1275 = vmatpush2.bf16.msra.mxu0 0
      %1276 = vmatprep.subr.bf16.mxu0 0
      %1277 = vmatpush2.bf16.msra.mxu0 0
      %1278 = vmatprep.subr.bf16.mxu0 0
      %1279 = vmatpush2.bf16.msra.mxu0 0
      %1280 = vmatprep.subr.bf16.mxu0 0
      %1281 = vmatpush2.bf16.msra.mxu0 0
      %1282 = vmatprep.subr.bf16.mxu0 0
      %1283 = vmatpush2.bf16.msra.mxu0 0
      %1284 = vmatprep.subr.bf16.mxu0 0
      %1285 = vmatpush2.bf16.msra.mxu0 0
      %1286 = vmatprep.mubr.bf16.mxu0 0
      %1287 = vmatmul.mubr.bf16.gmra.mxu0 %v1252
      %v1288 = vpop.f32.mrf.mxu0
      %v1289 = vadd.f32 0.0, %v1288
      %v1290 = vpop.f32.mrf.mxu0
      %v1291 = vadd.f32 0.0, %v1290
      %v1292 = vpop.f32.mrf.mxu0
      %v1293 = vpop.f32.mrf.mxu0
      %1294 = vdwg.mxu0
      %v1295 = vpack.c.bf16 %v1289, %v1289
      %v1296 = vpack.c.bf16 %v1291, %v1291
      %v1321 = vunpack.c.l.b16 %v1227
      %v1322 = vunpack.c.h.b16 %v1227
      %v1323 = vunpack.c.l.b16 %v1228
      %v1324 = vunpack.c.h.b16 %v1228
      %v1325 = vunpack.c.l.b16 %v1229
      %v1326 = vunpack.c.h.b16 %v1229
      %v1327 = vunpack.c.l.b16 %v1230
      %v1328 = vunpack.c.h.b16 %v1230
      %v1329 = vunpack.c.l.b16 %v1231
      %v1330 = vunpack.c.h.b16 %v1231
      %v1331 = vunpack.c.l.b16 %v1232
      %v1332 = vunpack.c.h.b16 %v1232
      %v1333 = vunpack.c.l.b16 %v1233
      %v1334 = vunpack.c.h.b16 %v1233
      %v1335 = vunpack.c.l.b16 %v1234
      %v1336 = vunpack.c.h.b16 %v1234
      %v1337 = vunpack.c.l.b16 %v1235
      %v1338 = vunpack.c.h.b16 %v1235
      %v1339 = vunpack.c.l.b16 %v1236
      %v1340 = vunpack.c.h.b16 %v1236
      %v1341 = vunpack.c.l.b16 %v1237
      %v1342 = vunpack.c.h.b16 %v1237
      %v1343 = vunpack.c.l.b16 %v1238
      %v1344 = vunpack.c.h.b16 %v1238
      %v1345 = vunpack.c.l.b16 %v1239
      %v1346 = vunpack.c.h.b16 %v1239
      %v1347 = vunpack.c.l.b16 %v1240
      %v1348 = vunpack.c.h.b16 %v1240
      %v1349 = vunpack.c.l.b16 %v1241
      %v1350 = vunpack.c.h.b16 %v1241
      %v1351 = vunpack.c.l.b16 %v1242
      %v1352 = vunpack.c.h.b16 %v1242
      %v1353 = vunpack.c.l.b16 %v1243
      %v1354 = vunpack.c.h.b16 %v1243
      %v1355 = vunpack.c.l.b16 %v1244
      %v1356 = vunpack.c.h.b16 %v1244
      %v1357 = vunpack.c.l.b16 %v1245
      %v1358 = vunpack.c.h.b16 %v1245
      %v1359 = vunpack.c.l.b16 %v1246
      %v1360 = vunpack.c.h.b16 %v1246
      %v1361 = vunpack.c.l.b16 %v1247
      %v1362 = vunpack.c.h.b16 %v1247
      %v1363 = vunpack.c.l.b16 %v1248
      %v1364 = vunpack.c.h.b16 %v1248
      %v1365 = vunpack.c.l.b16 %v1249
      %v1366 = vunpack.c.h.b16 %v1249
      %v1367 = vunpack.c.l.b16 %v1250
      %v1368 = vunpack.c.h.b16 %v1250
      %v1369 = vpack.c.b16 %v1323, %v1321
      %v1370 = vpack.c.b16 %v1324, %v1322
      %v1371 = vpack.c.b16 %v1327, %v1325
      %v1372 = vpack.c.b16 %v1328, %v1326
      %v1373 = vpack.c.b16 %v1331, %v1329
      %v1374 = vpack.c.b16 %v1332, %v1330
      %v1375 = vpack.c.b16 %v1335, %v1333
      %v1376 = vpack.c.b16 %v1336, %v1334
      %v1377 = vpack.c.b16 %v1339, %v1337
      %v1378 = vpack.c.b16 %v1340, %v1338
      %v1379 = vpack.c.b16 %v1343, %v1341
      %v1380 = vpack.c.b16 %v1344, %v1342
      %v1381 = vpack.c.b16 %v1347, %v1345
      %v1382 = vpack.c.b16 %v1348, %v1346
      %v1383 = vpack.c.b16 %v1351, %v1349
      %v1384 = vpack.c.b16 %v1352, %v1350
      %v1385 = vpack.c.b16 %v1355, %v1353
      %v1386 = vpack.c.b16 %v1356, %v1354
      %v1387 = vpack.c.b16 %v1359, %v1357
      %v1388 = vpack.c.b16 %v1360, %v1358
      %v1389 = vpack.c.b16 %v1363, %v1361
      %v1390 = vpack.c.b16 %v1364, %v1362
      %v1391 = vpack.c.b16 %v1367, %v1365
      %v1392 = vpack.c.b16 %v1368, %v1366
      %vm1417 = vcmask 523264
      %v1419 = vsel %vm1417, %v1296, 0
      %1421 = vmatprep.subr.bf16.mxu0 %v1384
      %1422 = vmatpush1.bf16.msra.mxu0 %v1383
      %1423 = vmatprep.subr.bf16.mxu0 %v1382
      %1424 = vmatpush1.bf16.msra.mxu0 %v1381
      %1425 = vmatprep.subr.bf16.mxu0 %v1380
      %1426 = vmatpush1.bf16.msra.mxu0 %v1379
      %1427 = vmatprep.subr.bf16.mxu0 %v1378
      %1428 = vmatpush1.bf16.msra.mxu0 %v1377
      %1429 = vmatprep.subr.bf16.mxu0 %v1376
      %1430 = vmatpush1.bf16.msra.mxu0 %v1375
      %1431 = vmatprep.subr.bf16.mxu0 %v1374
      %1432 = vmatpush1.bf16.msra.mxu0 %v1373
      %1433 = vmatprep.subr.bf16.mxu0 %v1372
      %1434 = vmatpush1.bf16.msra.mxu0 %v1371
      %1435 = vmatprep.subr.bf16.mxu0 %v1370
      %1436 = vmatpush1.bf16.msra.mxu0 %v1369
      %1437 = vmatprep.subr.bf16.mxu0 0
      %1438 = vmatpush2.bf16.msra.mxu0 0
      %1439 = vmatprep.subr.bf16.mxu0 0
      %1440 = vmatpush2.bf16.msra.mxu0 0
      %1441 = vmatprep.subr.bf16.mxu0 0
      %1442 = vmatpush2.bf16.msra.mxu0 0
      %1443 = vmatprep.subr.bf16.mxu0 0
      %1444 = vmatpush2.bf16.msra.mxu0 0
      %1445 = vmatprep.subr.bf16.mxu0 %v1392
      %1446 = vmatpush2.bf16.msra.mxu0 %v1391
      %1447 = vmatprep.subr.bf16.mxu0 %v1390
      %1448 = vmatpush2.bf16.msra.mxu0 %v1389
      %1449 = vmatprep.subr.bf16.mxu0 %v1388
      %1450 = vmatpush2.bf16.msra.mxu0 %v1387
      %1451 = vmatprep.subr.bf16.mxu0 %v1386
      %1452 = vmatpush2.bf16.msra.mxu0 %v1385
      %1453 = vmatprep.mubr.bf16.mxu0 %v1419
      %1454 = vmatmul.mubr.bf16.gmra.mxu0 %v1295
      %v1455 = vpop.f32.mrf.mxu0
      %v1456 = vadd.f32 0.0, %v1455
      %v1457 = vpop.f32.mrf.mxu0
      %v1458 = vadd.f32 0.0, %v1457
      %v1459 = vpop.f32.mrf.mxu0
      %v1460 = vpop.f32.mrf.mxu0
      %1461 = vdwg.mxu0
      %v1486 = vunpack.c.l.b16 %v1153
      %v1487 = vunpack.c.h.b16 %v1153
      %v1488 = vunpack.c.l.b16 %v1154
      %v1489 = vunpack.c.h.b16 %v1154
      %v1490 = vunpack.c.l.b16 %v1155
      %v1491 = vunpack.c.h.b16 %v1155
      %v1492 = vunpack.c.l.b16 %v1156
      %v1493 = vunpack.c.h.b16 %v1156
      %v1494 = vunpack.c.l.b16 %v1157
      %v1495 = vunpack.c.h.b16 %v1157
      %v1496 = vunpack.c.l.b16 %v1158
      %v1497 = vunpack.c.h.b16 %v1158
      %v1498 = vunpack.c.l.b16 %v1159
      %v1499 = vunpack.c.h.b16 %v1159
      %v1500 = vunpack.c.l.b16 %v1160
      %v1501 = vunpack.c.h.b16 %v1160
      %v1502 = vunpack.c.l.b16 %v1161
      %v1503 = vunpack.c.h.b16 %v1161
      %v1504 = vunpack.c.l.b16 %v1162
      %v1505 = vunpack.c.h.b16 %v1162
      %v1506 = vunpack.c.l.b16 %v1163
      %v1507 = vunpack.c.h.b16 %v1163
      %v1508 = vunpack.c.l.b16 %v1164
      %v1509 = vunpack.c.h.b16 %v1164
      %v1510 = vunpack.c.l.b16 %v1165
      %v1511 = vunpack.c.h.b16 %v1165
      %v1512 = vunpack.c.l.b16 %v1166
      %v1513 = vunpack.c.h.b16 %v1166
      %v1514 = vunpack.c.l.b16 %v1167
      %v1515 = vunpack.c.h.b16 %v1167
      %v1516 = vunpack.c.l.b16 %v1168
      %v1517 = vunpack.c.h.b16 %v1168
      %v1518 = vunpack.c.l.b16 %v1169
      %v1519 = vunpack.c.h.b16 %v1169
      %v1520 = vunpack.c.l.b16 %v1170
      %v1521 = vunpack.c.h.b16 %v1170
      %v1522 = vunpack.c.l.b16 %v1171
      %v1523 = vunpack.c.h.b16 %v1171
      %v1524 = vunpack.c.l.b16 %v1172
      %v1525 = vunpack.c.h.b16 %v1172
      %v1526 = vunpack.c.l.b16 %v1173
      %v1527 = vunpack.c.h.b16 %v1173
      %v1528 = vunpack.c.l.b16 %v1174
      %v1529 = vunpack.c.h.b16 %v1174
      %v1530 = vunpack.c.l.b16 %v1175
      %v1531 = vunpack.c.h.b16 %v1175
      %v1532 = vunpack.c.l.b16 %v1176
      %v1533 = vunpack.c.h.b16 %v1176
      %v1534 = vpack.c.b16 %v1488, %v1486
      %v1535 = vpack.c.b16 %v1489, %v1487
      %v1536 = vpack.c.b16 %v1492, %v1490
      %v1537 = vpack.c.b16 %v1493, %v1491
      %v1538 = vpack.c.b16 %v1496, %v1494
      %v1539 = vpack.c.b16 %v1497, %v1495
      %v1540 = vpack.c.b16 %v1500, %v1498
      %v1541 = vpack.c.b16 %v1501, %v1499
      %v1542 = vpack.c.b16 %v1504, %v1502
      %v1543 = vpack.c.b16 %v1505, %v1503
      %v1544 = vpack.c.b16 %v1508, %v1506
      %v1545 = vpack.c.b16 %v1509, %v1507
      %v1546 = vpack.c.b16 %v1512, %v1510
      %v1547 = vpack.c.b16 %v1513, %v1511
      %v1548 = vpack.c.b16 %v1516, %v1514
      %v1549 = vpack.c.b16 %v1517, %v1515
      %v1550 = vpack.c.b16 %v1520, %v1518
      %v1551 = vpack.c.b16 %v1521, %v1519
      %v1552 = vpack.c.b16 %v1524, %v1522
      %v1553 = vpack.c.b16 %v1525, %v1523
      %v1554 = vpack.c.b16 %v1528, %v1526
      %v1555 = vpack.c.b16 %v1529, %v1527
      %v1556 = vpack.c.b16 %v1532, %v1530
      %v1557 = vpack.c.b16 %v1533, %v1531
      %v1583 = vsel %vm1417, %v1223, 0
      %1585 = vmatprep.subr.bf16.mxu0 %v1549
      %1586 = vmatpush1.bf16.msra.mxu0 %v1548
      %1587 = vmatprep.subr.bf16.mxu0 %v1547
      %1588 = vmatpush1.bf16.msra.mxu0 %v1546
      %1589 = vmatprep.subr.bf16.mxu0 %v1545
      %1590 = vmatpush1.bf16.msra.mxu0 %v1544
      %1591 = vmatprep.subr.bf16.mxu0 %v1543
      %1592 = vmatpush1.bf16.msra.mxu0 %v1542
      %1593 = vmatprep.subr.bf16.mxu0 %v1541
      %1594 = vmatpush1.bf16.msra.mxu0 %v1540
      %1595 = vmatprep.subr.bf16.mxu0 %v1539
      %1596 = vmatpush1.bf16.msra.mxu0 %v1538
      %1597 = vmatprep.subr.bf16.mxu0 %v1537
      %1598 = vmatpush1.bf16.msra.mxu0 %v1536
      %1599 = vmatprep.subr.bf16.mxu0 %v1535
      %1600 = vmatpush1.bf16.msra.mxu0 %v1534
      %1601 = vmatprep.subr.bf16.mxu0 0
      %1602 = vmatpush2.bf16.msra.mxu0 0
      %1603 = vmatprep.subr.bf16.mxu0 0
      %1604 = vmatpush2.bf16.msra.mxu0 0
      %1605 = vmatprep.subr.bf16.mxu0 0
      %1606 = vmatpush2.bf16.msra.mxu0 0
      %1607 = vmatprep.subr.bf16.mxu0 0
      %1608 = vmatpush2.bf16.msra.mxu0 0
      %1609 = vmatprep.subr.bf16.mxu0 %v1557
      %1610 = vmatpush2.bf16.msra.mxu0 %v1556
      %1611 = vmatprep.subr.bf16.mxu0 %v1555
      %1612 = vmatpush2.bf16.msra.mxu0 %v1554
      %1613 = vmatprep.subr.bf16.mxu0 %v1553
      %1614 = vmatpush2.bf16.msra.mxu0 %v1552
      %1615 = vmatprep.subr.bf16.mxu0 %v1551
      %1616 = vmatpush2.bf16.msra.mxu0 %v1550
      %1617 = vmatprep.mubr.bf16.mxu0 %v1583
      %1618 = vmatmul.mubr.bf16.gmra.mxu0 %v1222
      %v1619 = vpop.f32.mrf.mxu0
      %v1620 = vadd.f32 %v1456, %v1619
      %v1621 = vpop.f32.mrf.mxu0
      %v1622 = vadd.f32 %v1458, %v1621
      %v1623 = vpop.f32.mrf.mxu0
      %v1624 = vpop.f32.mrf.mxu0
      %1625 = vdwg.mxu0
      %s1626 = scalar_lea.vmem %s4, 8
      %v1627 = vld [vmem:[%s1626] sm:$0xf]
      %s1628 = scalar_lea.vmem %s5, 384
      %v1629 = vld [vmem:[%s1628] sm:$0xff]
      %v1630 = vld [vmem:[%s1628 + $0x8] sm:$0xff]
      %v1631 = vld [vmem:[%s1628 + $0x10] sm:$0xff]
      %v1632 = vld [vmem:[%s1628 + $0x18] sm:$0xff]
      %v1633 = vld [vmem:[%s1628 + $0x20] sm:$0xff]
      %v1634 = vld [vmem:[%s1628 + $0x28] sm:$0xff]
      %v1635 = vld [vmem:[%s1628 + $0x30] sm:$0xff]
      %v1636 = vld [vmem:[%s1628 + $0x38] sm:$0xff]
      %v1637 = vld [vmem:[%s1628 + $0x40] sm:$0xff]
      %v1638 = vld [vmem:[%s1628 + $0x48] sm:$0xff]
      %v1639 = vld [vmem:[%s1628 + $0x50] sm:$0xff]
      %v1640 = vld [vmem:[%s1628 + $0x58] sm:$0xff]
      %v1641 = vld [vmem:[%s1628 + $0x60] sm:$0xff]
      %v1642 = vld [vmem:[%s1628 + $0x68] sm:$0xff]
      %v1643 = vld [vmem:[%s1628 + $0x70] sm:$0xff]
      %v1644 = vld [vmem:[%s1628 + $0x78] sm:$0xff]
      %v1645 = vld [vmem:[%s1628 + $0x80] sm:$0xff]
      %v1646 = vld [vmem:[%s1628 + $0x88] sm:$0xff]
      %v1647 = vld [vmem:[%s1628 + $0x90] sm:$0xff]
      %v1648 = vld [vmem:[%s1628 + $0x98] sm:$0xff]
      %v1649 = vld [vmem:[%s1628 + $0xa0] sm:$0xff]
      %v1650 = vld [vmem:[%s1628 + $0xa8] sm:$0xff]
      %v1651 = vld [vmem:[%s1628 + $0xb0] sm:$0xff]
      %v1652 = vld [vmem:[%s1628 + $0xb8] sm:$0xff]
      %v1654 = vsel %vm1177, %v1627, 0
      %1656 = vmatprep.subr.bf16.mxu0 0
      %1657 = vmatpush1.bf16.msra.mxu0 0
      %1658 = vmatprep.subr.bf16.mxu0 0
      %1659 = vmatpush1.bf16.msra.mxu0 0
      %1660 = vmatprep.subr.bf16.mxu0 0
      %1661 = vmatpush1.bf16.msra.mxu0 0
      %1662 = vmatprep.subr.bf16.mxu0 0
      %1663 = vmatpush1.bf16.msra.mxu0 0
      %1664 = vmatprep.subr.bf16.mxu0 0
      %1665 = vmatpush1.bf16.msra.mxu0 0
      %1666 = vmatprep.subr.bf16.mxu0 0
      %1667 = vmatpush1.bf16.msra.mxu0 0
      %1668 = vmatprep.subr.bf16.mxu0 0
      %1669 = vmatpush1.bf16.msra.mxu0 0
      %1670 = vmatprep.subr.bf16.mxu0 %v1151
      %1671 = vmatpush1.bf16.msra.mxu0 %v1150
      %1672 = vmatprep.subr.bf16.mxu0 0
      %1673 = vmatpush2.bf16.msra.mxu0 0
      %1674 = vmatprep.subr.bf16.mxu0 0
      %1675 = vmatpush2.bf16.msra.mxu0 0
      %1676 = vmatprep.subr.bf16.mxu0 0
      %1677 = vmatpush2.bf16.msra.mxu0 0
      %1678 = vmatprep.subr.bf16.mxu0 0
      %1679 = vmatpush2.bf16.msra.mxu0 0
      %1680 = vmatprep.subr.bf16.mxu0 0
      %1681 = vmatpush2.bf16.msra.mxu0 0
      %1682 = vmatprep.subr.bf16.mxu0 0
      %1683 = vmatpush2.bf16.msra.mxu0 0
      %1684 = vmatprep.subr.bf16.mxu0 0
      %1685 = vmatpush2.bf16.msra.mxu0 0
      %1686 = vmatprep.subr.bf16.mxu0 0
      %1687 = vmatpush2.bf16.msra.mxu0 0
      %1688 = vmatprep.mubr.bf16.mxu0 0
      %1689 = vmatmul.mubr.bf16.gmra.mxu0 %v1654
      %v1690 = vpop.f32.mrf.mxu0
      %v1691 = vadd.f32 0.0, %v1690
      %v1692 = vpop.f32.mrf.mxu0
      %v1693 = vadd.f32 0.0, %v1692
      %v1694 = vpop.f32.mrf.mxu0
      %v1695 = vpop.f32.mrf.mxu0
      %1696 = vdwg.mxu0
      %v1697 = vpack.c.bf16 %v1691, %v1691
      %v1698 = vpack.c.bf16 %v1693, %v1693
      %v1723 = vunpack.c.l.b16 %v1629
      %v1724 = vunpack.c.h.b16 %v1629
      %v1725 = vunpack.c.l.b16 %v1630
      %v1726 = vunpack.c.h.b16 %v1630
      %v1727 = vunpack.c.l.b16 %v1631
      %v1728 = vunpack.c.h.b16 %v1631
      %v1729 = vunpack.c.l.b16 %v1632
      %v1730 = vunpack.c.h.b16 %v1632
      %v1731 = vunpack.c.l.b16 %v1633
      %v1732 = vunpack.c.h.b16 %v1633
      %v1733 = vunpack.c.l.b16 %v1634
      %v1734 = vunpack.c.h.b16 %v1634
      %v1735 = vunpack.c.l.b16 %v1635
      %v1736 = vunpack.c.h.b16 %v1635
      %v1737 = vunpack.c.l.b16 %v1636
      %v1738 = vunpack.c.h.b16 %v1636
      %v1739 = vunpack.c.l.b16 %v1637
      %v1740 = vunpack.c.h.b16 %v1637
      %v1741 = vunpack.c.l.b16 %v1638
      %v1742 = vunpack.c.h.b16 %v1638
      %v1743 = vunpack.c.l.b16 %v1639
      %v1744 = vunpack.c.h.b16 %v1639
      %v1745 = vunpack.c.l.b16 %v1640
      %v1746 = vunpack.c.h.b16 %v1640
      %v1747 = vunpack.c.l.b16 %v1641
      %v1748 = vunpack.c.h.b16 %v1641
      %v1749 = vunpack.c.l.b16 %v1642
      %v1750 = vunpack.c.h.b16 %v1642
      %v1751 = vunpack.c.l.b16 %v1643
      %v1752 = vunpack.c.h.b16 %v1643
      %v1753 = vunpack.c.l.b16 %v1644
      %v1754 = vunpack.c.h.b16 %v1644
      %v1755 = vunpack.c.l.b16 %v1645
      %v1756 = vunpack.c.h.b16 %v1645
      %v1757 = vunpack.c.l.b16 %v1646
      %v1758 = vunpack.c.h.b16 %v1646
      %v1759 = vunpack.c.l.b16 %v1647
      %v1760 = vunpack.c.h.b16 %v1647
      %v1761 = vunpack.c.l.b16 %v1648
      %v1762 = vunpack.c.h.b16 %v1648
      %v1763 = vunpack.c.l.b16 %v1649
      %v1764 = vunpack.c.h.b16 %v1649
      %v1765 = vunpack.c.l.b16 %v1650
      %v1766 = vunpack.c.h.b16 %v1650
      %v1767 = vunpack.c.l.b16 %v1651
      %v1768 = vunpack.c.h.b16 %v1651
      %v1769 = vunpack.c.l.b16 %v1652
      %v1770 = vunpack.c.h.b16 %v1652
      %v1771 = vpack.c.b16 %v1725, %v1723
      %v1772 = vpack.c.b16 %v1726, %v1724
      %v1773 = vpack.c.b16 %v1729, %v1727
      %v1774 = vpack.c.b16 %v1730, %v1728
      %v1775 = vpack.c.b16 %v1733, %v1731
      %v1776 = vpack.c.b16 %v1734, %v1732
      %v1777 = vpack.c.b16 %v1737, %v1735
      %v1778 = vpack.c.b16 %v1738, %v1736
      %v1779 = vpack.c.b16 %v1741, %v1739
      %v1780 = vpack.c.b16 %v1742, %v1740
      %v1781 = vpack.c.b16 %v1745, %v1743
      %v1782 = vpack.c.b16 %v1746, %v1744
      %v1783 = vpack.c.b16 %v1749, %v1747
      %v1784 = vpack.c.b16 %v1750, %v1748
      %v1785 = vpack.c.b16 %v1753, %v1751
      %v1786 = vpack.c.b16 %v1754, %v1752
      %v1787 = vpack.c.b16 %v1757, %v1755
      %v1788 = vpack.c.b16 %v1758, %v1756
      %v1789 = vpack.c.b16 %v1761, %v1759
      %v1790 = vpack.c.b16 %v1762, %v1760
      %v1791 = vpack.c.b16 %v1765, %v1763
      %v1792 = vpack.c.b16 %v1766, %v1764
      %v1793 = vpack.c.b16 %v1769, %v1767
      %v1794 = vpack.c.b16 %v1770, %v1768
      %v1820 = vsel %vm1417, %v1698, 0
      %1822 = vmatprep.subr.bf16.mxu0 %v1786
      %1823 = vmatpush1.bf16.msra.mxu0 %v1785
      %1824 = vmatprep.subr.bf16.mxu0 %v1784
      %1825 = vmatpush1.bf16.msra.mxu0 %v1783
      %1826 = vmatprep.subr.bf16.mxu0 %v1782
      %1827 = vmatpush1.bf16.msra.mxu0 %v1781
      %1828 = vmatprep.subr.bf16.mxu0 %v1780
      %1829 = vmatpush1.bf16.msra.mxu0 %v1779
      %1830 = vmatprep.subr.bf16.mxu0 %v1778
      %1831 = vmatpush1.bf16.msra.mxu0 %v1777
      %1832 = vmatprep.subr.bf16.mxu0 %v1776
      %1833 = vmatpush1.bf16.msra.mxu0 %v1775
      %1834 = vmatprep.subr.bf16.mxu0 %v1774
      %1835 = vmatpush1.bf16.msra.mxu0 %v1773
      %1836 = vmatprep.subr.bf16.mxu0 %v1772
      %1837 = vmatpush1.bf16.msra.mxu0 %v1771
      %1838 = vmatprep.subr.bf16.mxu0 0
      %1839 = vmatpush2.bf16.msra.mxu0 0
      %1840 = vmatprep.subr.bf16.mxu0 0
      %1841 = vmatpush2.bf16.msra.mxu0 0
      %1842 = vmatprep.subr.bf16.mxu0 0
      %1843 = vmatpush2.bf16.msra.mxu0 0
      %1844 = vmatprep.subr.bf16.mxu0 0
      %1845 = vmatpush2.bf16.msra.mxu0 0
      %1846 = vmatprep.subr.bf16.mxu0 %v1794
      %1847 = vmatpush2.bf16.msra.mxu0 %v1793
      %1848 = vmatprep.subr.bf16.mxu0 %v1792
      %1849 = vmatpush2.bf16.msra.mxu0 %v1791
      %1850 = vmatprep.subr.bf16.mxu0 %v1790
      %1851 = vmatpush2.bf16.msra.mxu0 %v1789
      %1852 = vmatprep.subr.bf16.mxu0 %v1788
      %1853 = vmatpush2.bf16.msra.mxu0 %v1787
      %1854 = vmatprep.mubr.bf16.mxu0 %v1820
      %1855 = vmatmul.mubr.bf16.gmra.mxu0 %v1697
      %v1856 = vpop.f32.mrf.mxu0
      %v1857 = vadd.f32 0.0, %v1856
      %v1858 = vpop.f32.mrf.mxu0
      %v1859 = vadd.f32 0.0, %v1858
      %v1860 = vpop.f32.mrf.mxu0
      %v1861 = vpop.f32.mrf.mxu0
      %1862 = vdwg.mxu0
      %v1863 = vadd.f32 %v1620, %v1857
      %v1864 = vadd.f32 %v1622, %v1859
      %v1865 = vld [vmem:[%s6] sm:$0x3]
      %v1867 = vlaneseq
      %v1868 = vshrl.u32 %v1867, 7
      %v1869 = vsub.s32 0, %v1868
      %v1870 = vrot.slane %v1865, %v1869
      %v1871 = vlaneseq
      %v1872 = vshrl.u32 %v1871, 7
      %v1873 = vsub.s32 1, %v1872
      %v1874 = vrot.slane %v1865, %v1873
      %v1877 = vadd.f32 %v1863, %v1870
      %v1878 = vadd.f32 %v1864, %v1874
      %v1879 = vmax.f32 %v1877, 0.0
      %v1880 = vmax.f32 %v1878, 0.0
      %v1881 = vpack.c.bf16 %v1879, %v1879
      %v1882 = vpack.c.bf16 %v1880, %v1880
      %v1883 = vld [vmem:[%s7] sm:$0x3]
      %v1884 = vld [vmem:[%s8] sm:$0xff]
      %v1885 = vld [vmem:[%s8 + $0x8] sm:$0xff]
      %v1886 = vld [vmem:[%s8 + $0x10] sm:$0xff]
      %v1887 = vld [vmem:[%s8 + $0x18] sm:$0xff]
      %v1888 = vld [vmem:[%s8 + $0x20] sm:$0xff]
      %v1889 = vld [vmem:[%s8 + $0x28] sm:$0xff]
      %v1890 = vld [vmem:[%s8 + $0x30] sm:$0xff]
      %v1891 = vld [vmem:[%s8 + $0x38] sm:$0xff]
      %v1892 = vld [vmem:[%s8 + $0x40] sm:$0xff]
      %v1893 = vld [vmem:[%s8 + $0x48] sm:$0xff]
      %v1894 = vld [vmem:[%s8 + $0x50] sm:$0xff]
      %v1895 = vld [vmem:[%s8 + $0x58] sm:$0xff]
      %v1896 = vld [vmem:[%s8 + $0x60] sm:$0xff]
      %v1897 = vld [vmem:[%s8 + $0x68] sm:$0xff]
      %v1898 = vld [vmem:[%s8 + $0x70] sm:$0xff]
      %v1899 = vld [vmem:[%s8 + $0x78] sm:$0xff]
      %v1900 = vld [vmem:[%s8 + $0x80] sm:$0xff]
      %v1901 = vld [vmem:[%s8 + $0x88] sm:$0xff]
      %v1902 = vld [vmem:[%s8 + $0x90] sm:$0xff]
      %v1903 = vld [vmem:[%s8 + $0x98] sm:$0xff]
      %v1904 = vld [vmem:[%s8 + $0xa0] sm:$0xff]
      %v1905 = vld [vmem:[%s8 + $0xa8] sm:$0xff]
      %v1906 = vld [vmem:[%s8 + $0xb0] sm:$0xff]
      %v1907 = vld [vmem:[%s8 + $0xb8] sm:$0xff]
      %vm1908 = vcmask 64512
      %v1910 = vsel %vm1908, %v1883, 0
      %vm1912 = vcmask 1043456
      %v1914 = vsel %vm1912, %v1881, 0
      %v1917 = vsel %vm1912, %v1882, 0
      %1919 = vmatprep.subr.bf16.mxu0 0
      %1920 = vmatpush1.bf16.msra.mxu0 0
      %1921 = vmatprep.subr.bf16.mxu0 0
      %1922 = vmatpush1.bf16.msra.mxu0 0
      %1923 = vmatprep.subr.bf16.mxu0 0
      %1924 = vmatpush1.bf16.msra.mxu0 0
      %1925 = vmatprep.subr.bf16.mxu0 0
      %1926 = vmatpush1.bf16.msra.mxu0 0
      %1927 = vmatprep.subr.bf16.mxu0 0
      %1928 = vmatpush1.bf16.msra.mxu0 0
      %1929 = vmatprep.subr.bf16.mxu0 0
      %1930 = vmatpush1.bf16.msra.mxu0 0
      %1931 = vmatprep.subr.bf16.mxu0 0
      %1932 = vmatpush1.bf16.msra.mxu0 0
      %1933 = vmatprep.subr.bf16.mxu0 %v1917
      %1934 = vmatpush1.bf16.msra.mxu0 %v1914
      %1935 = vmatprep.subr.bf16.mxu0 0
      %1936 = vmatpush2.bf16.msra.mxu0 0
      %1937 = vmatprep.subr.bf16.mxu0 0
      %1938 = vmatpush2.bf16.msra.mxu0 0
      %1939 = vmatprep.subr.bf16.mxu0 0
      %1940 = vmatpush2.bf16.msra.mxu0 0
      %1941 = vmatprep.subr.bf16.mxu0 0
      %1942 = vmatpush2.bf16.msra.mxu0 0
      %1943 = vmatprep.subr.bf16.mxu0 0
      %1944 = vmatpush2.bf16.msra.mxu0 0
      %1945 = vmatprep.subr.bf16.mxu0 0
      %1946 = vmatpush2.bf16.msra.mxu0 0
      %1947 = vmatprep.subr.bf16.mxu0 0
      %1948 = vmatpush2.bf16.msra.mxu0 0
      %1949 = vmatprep.subr.bf16.mxu0 0
      %1950 = vmatpush2.bf16.msra.mxu0 0
      %1951 = vmatprep.mubr.bf16.mxu0 0
      %1952 = vmatmul.mubr.bf16.gmra.mxu0 %v1910
      %v1953 = vpop.f32.mrf.mxu0
      %v1954 = vadd.f32 0.0, %v1953
      %v1955 = vpop.f32.mrf.mxu0
      %v1956 = vadd.f32 0.0, %v1955
      %v1957 = vpop.f32.mrf.mxu0
      %v1958 = vpop.f32.mrf.mxu0
      %1959 = vdwg.mxu0
      %v1960 = vpack.c.bf16 %v1954, %v1954
      %v1961 = vpack.c.bf16 %v1956, %v1956
      %s1962 = scalar_lea.vmem %s7, 2
      %v1963 = vld [vmem:[%s1962] sm:$0x3]
      %s1964 = scalar_lea.vmem %s8, 192
      %v1965 = vld [vmem:[%s1964] sm:$0xff]
      %v1966 = vld [vmem:[%s1964 + $0x8] sm:$0xff]
      %v1967 = vld [vmem:[%s1964 + $0x10] sm:$0xff]
      %v1968 = vld [vmem:[%s1964 + $0x18] sm:$0xff]
      %v1969 = vld [vmem:[%s1964 + $0x20] sm:$0xff]
      %v1970 = vld [vmem:[%s1964 + $0x28] sm:$0xff]
      %v1971 = vld [vmem:[%s1964 + $0x30] sm:$0xff]
      %v1972 = vld [vmem:[%s1964 + $0x38] sm:$0xff]
      %v1973 = vld [vmem:[%s1964 + $0x40] sm:$0xff]
      %v1974 = vld [vmem:[%s1964 + $0x48] sm:$0xff]
      %v1975 = vld [vmem:[%s1964 + $0x50] sm:$0xff]
      %v1976 = vld [vmem:[%s1964 + $0x58] sm:$0xff]
      %v1977 = vld [vmem:[%s1964 + $0x60] sm:$0xff]
      %v1978 = vld [vmem:[%s1964 + $0x68] sm:$0xff]
      %v1979 = vld [vmem:[%s1964 + $0x70] sm:$0xff]
      %v1980 = vld [vmem:[%s1964 + $0x78] sm:$0xff]
      %v1981 = vld [vmem:[%s1964 + $0x80] sm:$0xff]
      %v1982 = vld [vmem:[%s1964 + $0x88] sm:$0xff]
      %v1983 = vld [vmem:[%s1964 + $0x90] sm:$0xff]
      %v1984 = vld [vmem:[%s1964 + $0x98] sm:$0xff]
      %v1985 = vld [vmem:[%s1964 + $0xa0] sm:$0xff]
      %v1986 = vld [vmem:[%s1964 + $0xa8] sm:$0xff]
      %v1987 = vld [vmem:[%s1964 + $0xb0] sm:$0xff]
      %v1988 = vld [vmem:[%s1964 + $0xb8] sm:$0xff]
      %v1990 = vsel %vm1908, %v1963, 0
      %1992 = vmatprep.subr.bf16.mxu0 0
      %1993 = vmatpush1.bf16.msra.mxu0 0
      %1994 = vmatprep.subr.bf16.mxu0 0
      %1995 = vmatpush1.bf16.msra.mxu0 0
      %1996 = vmatprep.subr.bf16.mxu0 0
      %1997 = vmatpush1.bf16.msra.mxu0 0
      %1998 = vmatprep.subr.bf16.mxu0 0
      %1999 = vmatpush1.bf16.msra.mxu0 0
      %2000 = vmatprep.subr.bf16.mxu0 0
      %2001 = vmatpush1.bf16.msra.mxu0 0
      %2002 = vmatprep.subr.bf16.mxu0 0
      %2003 = vmatpush1.bf16.msra.mxu0 0
      %2004 = vmatprep.subr.bf16.mxu0 0
      %2005 = vmatpush1.bf16.msra.mxu0 0
      %2006 = vmatprep.subr.bf16.mxu0 %v1917
      %2007 = vmatpush1.bf16.msra.mxu0 %v1914
      %2008 = vmatprep.subr.bf16.mxu0 0
      %2009 = vmatpush2.bf16.msra.mxu0 0
      %2010 = vmatprep.subr.bf16.mxu0 0
      %2011 = vmatpush2.bf16.msra.mxu0 0
      %2012 = vmatprep.subr.bf16.mxu0 0
      %2013 = vmatpush2.bf16.msra.mxu0 0
      %2014 = vmatprep.subr.bf16.mxu0 0
      %2015 = vmatpush2.bf16.msra.mxu0 0
      %2016 = vmatprep.subr.bf16.mxu0 0
      %2017 = vmatpush2.bf16.msra.mxu0 0
      %2018 = vmatprep.subr.bf16.mxu0 0
      %2019 = vmatpush2.bf16.msra.mxu0 0
      %2020 = vmatprep.subr.bf16.mxu0 0
      %2021 = vmatpush2.bf16.msra.mxu0 0
      %2022 = vmatprep.subr.bf16.mxu0 0
      %2023 = vmatpush2.bf16.msra.mxu0 0
      %2024 = vmatprep.mubr.bf16.mxu0 0
      %2025 = vmatmul.mubr.bf16.gmra.mxu0 %v1990
      %v2026 = vpop.f32.mrf.mxu0
      %v2027 = vadd.f32 0.0, %v2026
      %v2028 = vpop.f32.mrf.mxu0
      %v2029 = vadd.f32 0.0, %v2028
      %v2030 = vpop.f32.mrf.mxu0
      %v2031 = vpop.f32.mrf.mxu0
      %2032 = vdwg.mxu0
      %v2033 = vpack.c.bf16 %v2027, %v2027
      %v2034 = vpack.c.bf16 %v2029, %v2029
      %v2059 = vunpack.c.l.b16 %v1965
      %v2060 = vunpack.c.h.b16 %v1965
      %v2061 = vunpack.c.l.b16 %v1966
      %v2062 = vunpack.c.h.b16 %v1966
      %v2063 = vunpack.c.l.b16 %v1967
      %v2064 = vunpack.c.h.b16 %v1967
      %v2065 = vunpack.c.l.b16 %v1968
      %v2066 = vunpack.c.h.b16 %v1968
      %v2067 = vunpack.c.l.b16 %v1969
      %v2068 = vunpack.c.h.b16 %v1969
      %v2069 = vunpack.c.l.b16 %v1970
      %v2070 = vunpack.c.h.b16 %v1970
      %v2071 = vunpack.c.l.b16 %v1971
      %v2072 = vunpack.c.h.b16 %v1971
      %v2073 = vunpack.c.l.b16 %v1972
      %v2074 = vunpack.c.h.b16 %v1972
      %v2075 = vunpack.c.l.b16 %v1973
      %v2076 = vunpack.c.h.b16 %v1973
      %v2077 = vunpack.c.l.b16 %v1974
      %v2078 = vunpack.c.h.b16 %v1974
      %v2079 = vunpack.c.l.b16 %v1975
      %v2080 = vunpack.c.h.b16 %v1975
      %v2081 = vunpack.c.l.b16 %v1976
      %v2082 = vunpack.c.h.b16 %v1976
      %v2083 = vunpack.c.l.b16 %v1977
      %v2084 = vunpack.c.h.b16 %v1977
      %v2085 = vunpack.c.l.b16 %v1978
      %v2086 = vunpack.c.h.b16 %v1978
      %v2087 = vunpack.c.l.b16 %v1979
      %v2088 = vunpack.c.h.b16 %v1979
      %v2089 = vunpack.c.l.b16 %v1980
      %v2090 = vunpack.c.h.b16 %v1980
      %v2091 = vunpack.c.l.b16 %v1981
      %v2092 = vunpack.c.h.b16 %v1981
      %v2093 = vunpack.c.l.b16 %v1982
      %v2094 = vunpack.c.h.b16 %v1982
      %v2095 = vunpack.c.l.b16 %v1983
      %v2096 = vunpack.c.h.b16 %v1983
      %v2097 = vunpack.c.l.b16 %v1984
      %v2098 = vunpack.c.h.b16 %v1984
      %v2099 = vunpack.c.l.b16 %v1985
      %v2100 = vunpack.c.h.b16 %v1985
      %v2101 = vunpack.c.l.b16 %v1986
      %v2102 = vunpack.c.h.b16 %v1986
      %v2103 = vunpack.c.l.b16 %v1987
      %v2104 = vunpack.c.h.b16 %v1987
      %v2105 = vunpack.c.l.b16 %v1988
      %v2106 = vunpack.c.h.b16 %v1988
      %v2107 = vpack.c.b16 %v2061, %v2059
      %v2108 = vpack.c.b16 %v2062, %v2060
      %v2109 = vpack.c.b16 %v2065, %v2063
      %v2110 = vpack.c.b16 %v2066, %v2064
      %v2111 = vpack.c.b16 %v2069, %v2067
      %v2112 = vpack.c.b16 %v2070, %v2068
      %v2113 = vpack.c.b16 %v2073, %v2071
      %v2114 = vpack.c.b16 %v2074, %v2072
      %v2115 = vpack.c.b16 %v2077, %v2075
      %v2116 = vpack.c.b16 %v2078, %v2076
      %v2117 = vpack.c.b16 %v2081, %v2079
      %v2118 = vpack.c.b16 %v2082, %v2080
      %v2119 = vpack.c.b16 %v2085, %v2083
      %v2120 = vpack.c.b16 %v2086, %v2084
      %v2121 = vpack.c.b16 %v2089, %v2087
      %v2122 = vpack.c.b16 %v2090, %v2088
      %v2123 = vpack.c.b16 %v2093, %v2091
      %v2124 = vpack.c.b16 %v2094, %v2092
      %v2125 = vpack.c.b16 %v2097, %v2095
      %v2126 = vpack.c.b16 %v2098, %v2096
      %v2127 = vpack.c.b16 %v2101, %v2099
      %v2128 = vpack.c.b16 %v2102, %v2100
      %v2129 = vpack.c.b16 %v2105, %v2103
      %v2130 = vpack.c.b16 %v2106, %v2104
      %v2156 = vsel %vm1417, %v2034, 0
      %2158 = vmatprep.subr.bf16.mxu0 %v2122
      %2159 = vmatpush1.bf16.msra.mxu0 %v2121
      %2160 = vmatprep.subr.bf16.mxu0 %v2120
      %2161 = vmatpush1.bf16.msra.mxu0 %v2119
      %2162 = vmatprep.subr.bf16.mxu0 %v2118
      %2163 = vmatpush1.bf16.msra.mxu0 %v2117
      %2164 = vmatprep.subr.bf16.mxu0 %v2116
      %2165 = vmatpush1.bf16.msra.mxu0 %v2115
      %2166 = vmatprep.subr.bf16.mxu0 %v2114
      %2167 = vmatpush1.bf16.msra.mxu0 %v2113
      %2168 = vmatprep.subr.bf16.mxu0 %v2112
      %2169 = vmatpush1.bf16.msra.mxu0 %v2111
      %2170 = vmatprep.subr.bf16.mxu0 %v2110
      %2171 = vmatpush1.bf16.msra.mxu0 %v2109
      %2172 = vmatprep.subr.bf16.mxu0 %v2108
      %2173 = vmatpush1.bf16.msra.mxu0 %v2107
      %2174 = vmatprep.subr.bf16.mxu0 0
      %2175 = vmatpush2.bf16.msra.mxu0 0
      %2176 = vmatprep.subr.bf16.mxu0 0
      %2177 = vmatpush2.bf16.msra.mxu0 0
      %2178 = vmatprep.subr.bf16.mxu0 0
      %2179 = vmatpush2.bf16.msra.mxu0 0
      %2180 = vmatprep.subr.bf16.mxu0 0
      %2181 = vmatpush2.bf16.msra.mxu0 0
      %2182 = vmatprep.subr.bf16.mxu0 %v2130
      %2183 = vmatpush2.bf16.msra.mxu0 %v2129
      %2184 = vmatprep.subr.bf16.mxu0 %v2128
      %2185 = vmatpush2.bf16.msra.mxu0 %v2127
      %2186 = vmatprep.subr.bf16.mxu0 %v2126
      %2187 = vmatpush2.bf16.msra.mxu0 %v2125
      %2188 = vmatprep.subr.bf16.mxu0 %v2124
      %2189 = vmatpush2.bf16.msra.mxu0 %v2123
      %2190 = vmatprep.mubr.bf16.mxu0 %v2156
      %2191 = vmatmul.mubr.bf16.gmra.mxu0 %v2033
      %v2192 = vpop.f32.mrf.mxu0
      %v2193 = vadd.f32 0.0, %v2192
      %v2194 = vpop.f32.mrf.mxu0
      %v2195 = vadd.f32 0.0, %v2194
      %v2196 = vpop.f32.mrf.mxu0
      %v2197 = vpop.f32.mrf.mxu0
      %2198 = vdwg.mxu0
      %v2223 = vunpack.c.l.b16 %v1884
      %v2224 = vunpack.c.h.b16 %v1884
      %v2225 = vunpack.c.l.b16 %v1885
      %v2226 = vunpack.c.h.b16 %v1885
      %v2227 = vunpack.c.l.b16 %v1886
      %v2228 = vunpack.c.h.b16 %v1886
      %v2229 = vunpack.c.l.b16 %v1887
      %v2230 = vunpack.c.h.b16 %v1887
      %v2231 = vunpack.c.l.b16 %v1888
      %v2232 = vunpack.c.h.b16 %v1888
      %v2233 = vunpack.c.l.b16 %v1889
      %v2234 = vunpack.c.h.b16 %v1889
      %v2235 = vunpack.c.l.b16 %v1890
      %v2236 = vunpack.c.h.b16 %v1890
      %v2237 = vunpack.c.l.b16 %v1891
      %v2238 = vunpack.c.h.b16 %v1891
      %v2239 = vunpack.c.l.b16 %v1892
      %v2240 = vunpack.c.h.b16 %v1892
      %v2241 = vunpack.c.l.b16 %v1893
      %v2242 = vunpack.c.h.b16 %v1893
      %v2243 = vunpack.c.l.b16 %v1894
      %v2244 = vunpack.c.h.b16 %v1894
      %v2245 = vunpack.c.l.b16 %v1895
      %v2246 = vunpack.c.h.b16 %v1895
      %v2247 = vunpack.c.l.b16 %v1896
      %v2248 = vunpack.c.h.b16 %v1896
      %v2249 = vunpack.c.l.b16 %v1897
      %v2250 = vunpack.c.h.b16 %v1897
      %v2251 = vunpack.c.l.b16 %v1898
      %v2252 = vunpack.c.h.b16 %v1898
      %v2253 = vunpack.c.l.b16 %v1899
      %v2254 = vunpack.c.h.b16 %v1899
      %v2255 = vunpack.c.l.b16 %v1900
      %v2256 = vunpack.c.h.b16 %v1900
      %v2257 = vunpack.c.l.b16 %v1901
      %v2258 = vunpack.c.h.b16 %v1901
      %v2259 = vunpack.c.l.b16 %v1902
      %v2260 = vunpack.c.h.b16 %v1902
      %v2261 = vunpack.c.l.b16 %v1903
      %v2262 = vunpack.c.h.b16 %v1903
      %v2263 = vunpack.c.l.b16 %v1904
      %v2264 = vunpack.c.h.b16 %v1904
      %v2265 = vunpack.c.l.b16 %v1905
      %v2266 = vunpack.c.h.b16 %v1905
      %v2267 = vunpack.c.l.b16 %v1906
      %v2268 = vunpack.c.h.b16 %v1906
      %v2269 = vunpack.c.l.b16 %v1907
      %v2270 = vunpack.c.h.b16 %v1907
      %v2271 = vpack.c.b16 %v2225, %v2223
      %v2272 = vpack.c.b16 %v2226, %v2224
      %v2273 = vpack.c.b16 %v2229, %v2227
      %v2274 = vpack.c.b16 %v2230, %v2228
      %v2275 = vpack.c.b16 %v2233, %v2231
      %v2276 = vpack.c.b16 %v2234, %v2232
      %v2277 = vpack.c.b16 %v2237, %v2235
      %v2278 = vpack.c.b16 %v2238, %v2236
      %v2279 = vpack.c.b16 %v2241, %v2239
      %v2280 = vpack.c.b16 %v2242, %v2240
      %v2281 = vpack.c.b16 %v2245, %v2243
      %v2282 = vpack.c.b16 %v2246, %v2244
      %v2283 = vpack.c.b16 %v2249, %v2247
      %v2284 = vpack.c.b16 %v2250, %v2248
      %v2285 = vpack.c.b16 %v2253, %v2251
      %v2286 = vpack.c.b16 %v2254, %v2252
      %v2287 = vpack.c.b16 %v2257, %v2255
      %v2288 = vpack.c.b16 %v2258, %v2256
      %v2289 = vpack.c.b16 %v2261, %v2259
      %v2290 = vpack.c.b16 %v2262, %v2260
      %v2291 = vpack.c.b16 %v2265, %v2263
      %v2292 = vpack.c.b16 %v2266, %v2264
      %v2293 = vpack.c.b16 %v2269, %v2267
      %v2294 = vpack.c.b16 %v2270, %v2268
      %v2320 = vsel %vm1417, %v1961, 0
      %2322 = vmatprep.subr.bf16.mxu0 %v2286
      %2323 = vmatpush1.bf16.msra.mxu0 %v2285
      %2324 = vmatprep.subr.bf16.mxu0 %v2284
      %2325 = vmatpush1.bf16.msra.mxu0 %v2283
      %2326 = vmatprep.subr.bf16.mxu0 %v2282
      %2327 = vmatpush1.bf16.msra.mxu0 %v2281
      %2328 = vmatprep.subr.bf16.mxu0 %v2280
      %2329 = vmatpush1.bf16.msra.mxu0 %v2279
      %2330 = vmatprep.subr.bf16.mxu0 %v2278
      %2331 = vmatpush1.bf16.msra.mxu0 %v2277
      %2332 = vmatprep.subr.bf16.mxu0 %v2276
      %2333 = vmatpush1.bf16.msra.mxu0 %v2275
      %2334 = vmatprep.subr.bf16.mxu0 %v2274
      %2335 = vmatpush1.bf16.msra.mxu0 %v2273
      %2336 = vmatprep.subr.bf16.mxu0 %v2272
      %2337 = vmatpush1.bf16.msra.mxu0 %v2271
      %2338 = vmatprep.subr.bf16.mxu0 0
      %2339 = vmatpush2.bf16.msra.mxu0 0
      %2340 = vmatprep.subr.bf16.mxu0 0
      %2341 = vmatpush2.bf16.msra.mxu0 0
      %2342 = vmatprep.subr.bf16.mxu0 0
      %2343 = vmatpush2.bf16.msra.mxu0 0
      %2344 = vmatprep.subr.bf16.mxu0 0
      %2345 = vmatpush2.bf16.msra.mxu0 0
      %2346 = vmatprep.subr.bf16.mxu0 %v2294
      %2347 = vmatpush2.bf16.msra.mxu0 %v2293
      %2348 = vmatprep.subr.bf16.mxu0 %v2292
      %2349 = vmatpush2.bf16.msra.mxu0 %v2291
      %2350 = vmatprep.subr.bf16.mxu0 %v2290
      %2351 = vmatpush2.bf16.msra.mxu0 %v2289
      %2352 = vmatprep.subr.bf16.mxu0 %v2288
      %2353 = vmatpush2.bf16.msra.mxu0 %v2287
      %2354 = vmatprep.mubr.bf16.mxu0 %v2320
      %2355 = vmatmul.mubr.bf16.gmra.mxu0 %v1960
      %v2356 = vpop.f32.mrf.mxu0
      %v2357 = vadd.f32 %v2193, %v2356
      %v2358 = vpop.f32.mrf.mxu0
      %v2359 = vadd.f32 %v2195, %v2358
      %v2360 = vpop.f32.mrf.mxu0
      %v2361 = vpop.f32.mrf.mxu0
      %2362 = vdwg.mxu0
      %s2363 = scalar_lea.vmem %s7, 4
      %v2364 = vld [vmem:[%s2363] sm:$0x3]
      %s2365 = scalar_lea.vmem %s8, 384
      %v2366 = vld [vmem:[%s2365] sm:$0xff]
      %v2367 = vld [vmem:[%s2365 + $0x8] sm:$0xff]
      %v2368 = vld [vmem:[%s2365 + $0x10] sm:$0xff]
      %v2369 = vld [vmem:[%s2365 + $0x18] sm:$0xff]
      %v2370 = vld [vmem:[%s2365 + $0x20] sm:$0xff]
      %v2371 = vld [vmem:[%s2365 + $0x28] sm:$0xff]
      %v2372 = vld [vmem:[%s2365 + $0x30] sm:$0xff]
      %v2373 = vld [vmem:[%s2365 + $0x38] sm:$0xff]
      %v2374 = vld [vmem:[%s2365 + $0x40] sm:$0xff]
      %v2375 = vld [vmem:[%s2365 + $0x48] sm:$0xff]
      %v2376 = vld [vmem:[%s2365 + $0x50] sm:$0xff]
      %v2377 = vld [vmem:[%s2365 + $0x58] sm:$0xff]
      %v2378 = vld [vmem:[%s2365 + $0x60] sm:$0xff]
      %v2379 = vld [vmem:[%s2365 + $0x68] sm:$0xff]
      %v2380 = vld [vmem:[%s2365 + $0x70] sm:$0xff]
      %v2381 = vld [vmem:[%s2365 + $0x78] sm:$0xff]
      %v2382 = vld [vmem:[%s2365 + $0x80] sm:$0xff]
      %v2383 = vld [vmem:[%s2365 + $0x88] sm:$0xff]
      %v2384 = vld [vmem:[%s2365 + $0x90] sm:$0xff]
      %v2385 = vld [vmem:[%s2365 + $0x98] sm:$0xff]
      %v2386 = vld [vmem:[%s2365 + $0xa0] sm:$0xff]
      %v2387 = vld [vmem:[%s2365 + $0xa8] sm:$0xff]
      %v2388 = vld [vmem:[%s2365 + $0xb0] sm:$0xff]
      %v2389 = vld [vmem:[%s2365 + $0xb8] sm:$0xff]
      %v2391 = vsel %vm1908, %v2364, 0
      %2393 = vmatprep.subr.bf16.mxu0 0
      %2394 = vmatpush1.bf16.msra.mxu0 0
      %2395 = vmatprep.subr.bf16.mxu0 0
      %2396 = vmatpush1.bf16.msra.mxu0 0
      %2397 = vmatprep.subr.bf16.mxu0 0
      %2398 = vmatpush1.bf16.msra.mxu0 0
      %2399 = vmatprep.subr.bf16.mxu0 0
      %2400 = vmatpush1.bf16.msra.mxu0 0
      %2401 = vmatprep.subr.bf16.mxu0 0
      %2402 = vmatpush1.bf16.msra.mxu0 0
      %2403 = vmatprep.subr.bf16.mxu0 0
      %2404 = vmatpush1.bf16.msra.mxu0 0
      %2405 = vmatprep.subr.bf16.mxu0 0
      %2406 = vmatpush1.bf16.msra.mxu0 0
      %2407 = vmatprep.subr.bf16.mxu0 %v1917
      %2408 = vmatpush1.bf16.msra.mxu0 %v1914
      %2409 = vmatprep.subr.bf16.mxu0 0
      %2410 = vmatpush2.bf16.msra.mxu0 0
      %2411 = vmatprep.subr.bf16.mxu0 0
      %2412 = vmatpush2.bf16.msra.mxu0 0
      %2413 = vmatprep.subr.bf16.mxu0 0
      %2414 = vmatpush2.bf16.msra.mxu0 0
      %2415 = vmatprep.subr.bf16.mxu0 0
      %2416 = vmatpush2.bf16.msra.mxu0 0
      %2417 = vmatprep.subr.bf16.mxu0 0
      %2418 = vmatpush2.bf16.msra.mxu0 0
      %2419 = vmatprep.subr.bf16.mxu0 0
      %2420 = vmatpush2.bf16.msra.mxu0 0
      %2421 = vmatprep.subr.bf16.mxu0 0
      %2422 = vmatpush2.bf16.msra.mxu0 0
      %2423 = vmatprep.subr.bf16.mxu0 0
      %2424 = vmatpush2.bf16.msra.mxu0 0
      %2425 = vmatprep.mubr.bf16.mxu0 0
      %2426 = vmatmul.mubr.bf16.gmra.mxu0 %v2391
      %v2427 = vpop.f32.mrf.mxu0
      %v2428 = vadd.f32 0.0, %v2427
      %v2429 = vpop.f32.mrf.mxu0
      %v2430 = vadd.f32 0.0, %v2429
      %v2431 = vpop.f32.mrf.mxu0
      %v2432 = vpop.f32.mrf.mxu0
      %2433 = vdwg.mxu0
      %v2434 = vpack.c.bf16 %v2428, %v2428
      %v2435 = vpack.c.bf16 %v2430, %v2430
      %v2460 = vunpack.c.l.b16 %v2366
      %v2461 = vunpack.c.h.b16 %v2366
      %v2462 = vunpack.c.l.b16 %v2367
      %v2463 = vunpack.c.h.b16 %v2367
      %v2464 = vunpack.c.l.b16 %v2368
      %v2465 = vunpack.c.h.b16 %v2368
      %v2466 = vunpack.c.l.b16 %v2369
      %v2467 = vunpack.c.h.b16 %v2369
      %v2468 = vunpack.c.l.b16 %v2370
      %v2469 = vunpack.c.h.b16 %v2370
      %v2470 = vunpack.c.l.b16 %v2371
      %v2471 = vunpack.c.h.b16 %v2371
      %v2472 = vunpack.c.l.b16 %v2372
      %v2473 = vunpack.c.h.b16 %v2372
      %v2474 = vunpack.c.l.b16 %v2373
      %v2475 = vunpack.c.h.b16 %v2373
      %v2476 = vunpack.c.l.b16 %v2374
      %v2477 = vunpack.c.h.b16 %v2374
      %v2478 = vunpack.c.l.b16 %v2375
      %v2479 = vunpack.c.h.b16 %v2375
      %v2480 = vunpack.c.l.b16 %v2376
      %v2481 = vunpack.c.h.b16 %v2376
      %v2482 = vunpack.c.l.b16 %v2377
      %v2483 = vunpack.c.h.b16 %v2377
      %v2484 = vunpack.c.l.b16 %v2378
      %v2485 = vunpack.c.h.b16 %v2378
      %v2486 = vunpack.c.l.b16 %v2379
      %v2487 = vunpack.c.h.b16 %v2379
      %v2488 = vunpack.c.l.b16 %v2380
      %v2489 = vunpack.c.h.b16 %v2380
      %v2490 = vunpack.c.l.b16 %v2381
      %v2491 = vunpack.c.h.b16 %v2381
      %v2492 = vunpack.c.l.b16 %v2382
      %v2493 = vunpack.c.h.b16 %v2382
      %v2494 = vunpack.c.l.b16 %v2383
      %v2495 = vunpack.c.h.b16 %v2383
      %v2496 = vunpack.c.l.b16 %v2384
      %v2497 = vunpack.c.h.b16 %v2384
      %v2498 = vunpack.c.l.b16 %v2385
      %v2499 = vunpack.c.h.b16 %v2385
      %v2500 = vunpack.c.l.b16 %v2386
      %v2501 = vunpack.c.h.b16 %v2386
      %v2502 = vunpack.c.l.b16 %v2387
      %v2503 = vunpack.c.h.b16 %v2387
      %v2504 = vunpack.c.l.b16 %v2388
      %v2505 = vunpack.c.h.b16 %v2388
      %v2506 = vunpack.c.l.b16 %v2389
      %v2507 = vunpack.c.h.b16 %v2389
      %v2508 = vpack.c.b16 %v2462, %v2460
      %v2509 = vpack.c.b16 %v2463, %v2461
      %v2510 = vpack.c.b16 %v2466, %v2464
      %v2511 = vpack.c.b16 %v2467, %v2465
      %v2512 = vpack.c.b16 %v2470, %v2468
      %v2513 = vpack.c.b16 %v2471, %v2469
      %v2514 = vpack.c.b16 %v2474, %v2472
      %v2515 = vpack.c.b16 %v2475, %v2473
      %v2516 = vpack.c.b16 %v2478, %v2476
      %v2517 = vpack.c.b16 %v2479, %v2477
      %v2518 = vpack.c.b16 %v2482, %v2480
      %v2519 = vpack.c.b16 %v2483, %v2481
      %v2520 = vpack.c.b16 %v2486, %v2484
      %v2521 = vpack.c.b16 %v2487, %v2485
      %v2522 = vpack.c.b16 %v2490, %v2488
      %v2523 = vpack.c.b16 %v2491, %v2489
      %v2524 = vpack.c.b16 %v2494, %v2492
      %v2525 = vpack.c.b16 %v2495, %v2493
      %v2526 = vpack.c.b16 %v2498, %v2496
      %v2527 = vpack.c.b16 %v2499, %v2497
      %v2528 = vpack.c.b16 %v2502, %v2500
      %v2529 = vpack.c.b16 %v2503, %v2501
      %v2530 = vpack.c.b16 %v2506, %v2504
      %v2531 = vpack.c.b16 %v2507, %v2505
      %v2557 = vsel %vm1417, %v2435, 0
      %2559 = vmatprep.subr.bf16.mxu0 %v2523
      %2560 = vmatpush1.bf16.msra.mxu0 %v2522
      %2561 = vmatprep.subr.bf16.mxu0 %v2521
      %2562 = vmatpush1.bf16.msra.mxu0 %v2520
      %2563 = vmatprep.subr.bf16.mxu0 %v2519
      %2564 = vmatpush1.bf16.msra.mxu0 %v2518
      %2565 = vmatprep.subr.bf16.mxu0 %v2517
      %2566 = vmatpush1.bf16.msra.mxu0 %v2516
      %2567 = vmatprep.subr.bf16.mxu0 %v2515
      %2568 = vmatpush1.bf16.msra.mxu0 %v2514
      %2569 = vmatprep.subr.bf16.mxu0 %v2513
      %2570 = vmatpush1.bf16.msra.mxu0 %v2512
      %2571 = vmatprep.subr.bf16.mxu0 %v2511
      %2572 = vmatpush1.bf16.msra.mxu0 %v2510
      %2573 = vmatprep.subr.bf16.mxu0 %v2509
      %2574 = vmatpush1.bf16.msra.mxu0 %v2508
      %2575 = vmatprep.subr.bf16.mxu0 0
      %2576 = vmatpush2.bf16.msra.mxu0 0
      %2577 = vmatprep.subr.bf16.mxu0 0
      %2578 = vmatpush2.bf16.msra.mxu0 0
      %2579 = vmatprep.subr.bf16.mxu0 0
      %2580 = vmatpush2.bf16.msra.mxu0 0
      %2581 = vmatprep.subr.bf16.mxu0 0
      %2582 = vmatpush2.bf16.msra.mxu0 0
      %2583 = vmatprep.subr.bf16.mxu0 %v2531
      %2584 = vmatpush2.bf16.msra.mxu0 %v2530
      %2585 = vmatprep.subr.bf16.mxu0 %v2529
      %2586 = vmatpush2.bf16.msra.mxu0 %v2528
      %2587 = vmatprep.subr.bf16.mxu0 %v2527
      %2588 = vmatpush2.bf16.msra.mxu0 %v2526
      %2589 = vmatprep.subr.bf16.mxu0 %v2525
      %2590 = vmatpush2.bf16.msra.mxu0 %v2524
      %2591 = vmatprep.mubr.bf16.mxu0 %v2557
      %2592 = vmatmul.mubr.bf16.gmra.mxu0 %v2434
      %v2593 = vpop.f32.mrf.mxu0
      %v2594 = vadd.f32 0.0, %v2593
      %v2595 = vpop.f32.mrf.mxu0
      %v2596 = vadd.f32 0.0, %v2595
      %v2597 = vpop.f32.mrf.mxu0
      %v2598 = vpop.f32.mrf.mxu0
      %2599 = vdwg.mxu0
      %v2600 = vadd.f32 %v2357, %v2594
      %v2601 = vadd.f32 %v2359, %v2596
      %v2602 = vld [vmem:[%s9] sm:$0x3]
      %v2604 = vlaneseq
      %v2605 = vshrl.u32 %v2604, 7
      %v2606 = vsub.s32 0, %v2605
      %v2607 = vrot.slane %v2602, %v2606
      %v2608 = vlaneseq
      %v2609 = vshrl.u32 %v2608, 7
      %v2610 = vsub.s32 1, %v2609
      %v2611 = vrot.slane %v2602, %v2610
      %v2614 = vadd.f32 %v2600, %v2607
      %v2615 = vadd.f32 %v2601, %v2611
      %v2616 = vmax.f32 %v2614, 0.0
      %v2617 = vmax.f32 %v2615, 0.0
      %v2618 = vpack.c.bf16 %v2616, %v2616
      %v2619 = vpack.c.bf16 %v2617, %v2617
      %v2620 = vld [vmem:[%s10] sm:$0xf]
      %v2621 = vld [vmem:[%s11] sm:$0xff]
      %v2622 = vld [vmem:[%s11 + $0x8] sm:$0xff]
      %v2623 = vld [vmem:[%s11 + $0x10] sm:$0xff]
      %v2624 = vld [vmem:[%s11 + $0x18] sm:$0xff]
      %v2625 = vld [vmem:[%s11 + $0x20] sm:$0xff]
      %v2626 = vld [vmem:[%s11 + $0x28] sm:$0xff]
      %v2627 = vld [vmem:[%s11 + $0x30] sm:$0xff]
      %v2628 = vld [vmem:[%s11 + $0x38] sm:$0xff]
      %v2629 = vld [vmem:[%s11 + $0x40] sm:$0xff]
      %v2630 = vld [vmem:[%s11 + $0x48] sm:$0xff]
      %v2631 = vld [vmem:[%s11 + $0x50] sm:$0xff]
      %v2632 = vld [vmem:[%s11 + $0x58] sm:$0xff]
      %v2633 = vld [vmem:[%s11 + $0x60] sm:$0xff]
      %v2634 = vld [vmem:[%s11 + $0x68] sm:$0xff]
      %v2635 = vld [vmem:[%s11 + $0x70] sm:$0xff]
      %v2636 = vld [vmem:[%s11 + $0x78] sm:$0xff]
      %v2637 = vld [vmem:[%s11 + $0x80] sm:$0xff]
      %v2638 = vld [vmem:[%s11 + $0x88] sm:$0xff]
      %v2639 = vld [vmem:[%s11 + $0x90] sm:$0xff]
      %v2640 = vld [vmem:[%s11 + $0x98] sm:$0xff]
      %v2641 = vld [vmem:[%s11 + $0xa0] sm:$0xff]
      %v2642 = vld [vmem:[%s11 + $0xa8] sm:$0xff]
      %v2643 = vld [vmem:[%s11 + $0xb0] sm:$0xff]
      %v2644 = vld [vmem:[%s11 + $0xb8] sm:$0xff]
      %v2669 = vunpack.c.l.b16 %v2621
      %v2670 = vunpack.c.h.b16 %v2621
      %v2671 = vunpack.c.l.b16 %v2622
      %v2672 = vunpack.c.h.b16 %v2622
      %v2673 = vunpack.c.l.b16 %v2623
      %v2674 = vunpack.c.h.b16 %v2623
      %v2675 = vunpack.c.l.b16 %v2624
      %v2676 = vunpack.c.h.b16 %v2624
      %v2677 = vunpack.c.l.b16 %v2625
      %v2678 = vunpack.c.h.b16 %v2625
      %v2679 = vunpack.c.l.b16 %v2626
      %v2680 = vunpack.c.h.b16 %v2626
      %v2681 = vunpack.c.l.b16 %v2627
      %v2682 = vunpack.c.h.b16 %v2627
      %v2683 = vunpack.c.l.b16 %v2628
      %v2684 = vunpack.c.h.b16 %v2628
      %v2685 = vunpack.c.l.b16 %v2629
      %v2686 = vunpack.c.h.b16 %v2629
      %v2687 = vunpack.c.l.b16 %v2630
      %v2688 = vunpack.c.h.b16 %v2630
      %v2689 = vunpack.c.l.b16 %v2631
      %v2690 = vunpack.c.h.b16 %v2631
      %v2691 = vunpack.c.l.b16 %v2632
      %v2692 = vunpack.c.h.b16 %v2632
      %v2693 = vunpack.c.l.b16 %v2633
      %v2694 = vunpack.c.h.b16 %v2633
      %v2695 = vunpack.c.l.b16 %v2634
      %v2696 = vunpack.c.h.b16 %v2634
      %v2697 = vunpack.c.l.b16 %v2635
      %v2698 = vunpack.c.h.b16 %v2635
      %v2699 = vunpack.c.l.b16 %v2636
      %v2700 = vunpack.c.h.b16 %v2636
      %v2701 = vunpack.c.l.b16 %v2637
      %v2702 = vunpack.c.h.b16 %v2637
      %v2703 = vunpack.c.l.b16 %v2638
      %v2704 = vunpack.c.h.b16 %v2638
      %v2705 = vunpack.c.l.b16 %v2639
      %v2706 = vunpack.c.h.b16 %v2639
      %v2707 = vunpack.c.l.b16 %v2640
      %v2708 = vunpack.c.h.b16 %v2640
      %v2709 = vunpack.c.l.b16 %v2641
      %v2710 = vunpack.c.h.b16 %v2641
      %v2711 = vunpack.c.l.b16 %v2642
      %v2712 = vunpack.c.h.b16 %v2642
      %v2713 = vunpack.c.l.b16 %v2643
      %v2714 = vunpack.c.h.b16 %v2643
      %v2715 = vunpack.c.l.b16 %v2644
      %v2716 = vunpack.c.h.b16 %v2644
      %v2717 = vpack.c.b16 %v2671, %v2669
      %v2718 = vpack.c.b16 %v2672, %v2670
      %v2719 = vpack.c.b16 %v2675, %v2673
      %v2720 = vpack.c.b16 %v2676, %v2674
      %v2721 = vpack.c.b16 %v2679, %v2677
      %v2722 = vpack.c.b16 %v2680, %v2678
      %v2723 = vpack.c.b16 %v2683, %v2681
      %v2724 = vpack.c.b16 %v2684, %v2682
      %v2725 = vpack.c.b16 %v2687, %v2685
      %v2726 = vpack.c.b16 %v2688, %v2686
      %v2727 = vpack.c.b16 %v2691, %v2689
      %v2728 = vpack.c.b16 %v2692, %v2690
      %v2729 = vpack.c.b16 %v2695, %v2693
      %v2730 = vpack.c.b16 %v2696, %v2694
      %v2731 = vpack.c.b16 %v2699, %v2697
      %v2732 = vpack.c.b16 %v2700, %v2698
      %v2733 = vpack.c.b16 %v2703, %v2701
      %v2734 = vpack.c.b16 %v2704, %v2702
      %v2735 = vpack.c.b16 %v2707, %v2705
      %v2736 = vpack.c.b16 %v2708, %v2706
      %v2737 = vpack.c.b16 %v2711, %v2709
      %v2738 = vpack.c.b16 %v2712, %v2710
      %v2739 = vpack.c.b16 %v2715, %v2713
      %v2740 = vpack.c.b16 %v2716, %v2714
      %v2766 = vsel %vm1417, %v2619, 0
      %2768 = vmatprep.subr.bf16.mxu0 %v2732
      %2769 = vmatpush1.bf16.msra.mxu0 %v2731
      %2770 = vmatprep.subr.bf16.mxu0 %v2730
      %2771 = vmatpush1.bf16.msra.mxu0 %v2729
      %2772 = vmatprep.subr.bf16.mxu0 %v2728
      %2773 = vmatpush1.bf16.msra.mxu0 %v2727
      %2774 = vmatprep.subr.bf16.mxu0 %v2726
      %2775 = vmatpush1.bf16.msra.mxu0 %v2725
      %2776 = vmatprep.subr.bf16.mxu0 %v2724
      %2777 = vmatpush1.bf16.msra.mxu0 %v2723
      %2778 = vmatprep.subr.bf16.mxu0 %v2722
      %2779 = vmatpush1.bf16.msra.mxu0 %v2721
      %2780 = vmatprep.subr.bf16.mxu0 %v2720
      %2781 = vmatpush1.bf16.msra.mxu0 %v2719
      %2782 = vmatprep.subr.bf16.mxu0 %v2718
      %2783 = vmatpush1.bf16.msra.mxu0 %v2717
      %2784 = vmatprep.subr.bf16.mxu0 0
      %2785 = vmatpush2.bf16.msra.mxu0 0
      %2786 = vmatprep.subr.bf16.mxu0 0
      %2787 = vmatpush2.bf16.msra.mxu0 0
      %2788 = vmatprep.subr.bf16.mxu0 0
      %2789 = vmatpush2.bf16.msra.mxu0 0
      %2790 = vmatprep.subr.bf16.mxu0 0
      %2791 = vmatpush2.bf16.msra.mxu0 0
      %2792 = vmatprep.subr.bf16.mxu0 %v2740
      %2793 = vmatpush2.bf16.msra.mxu0 %v2739
      %2794 = vmatprep.subr.bf16.mxu0 %v2738
      %2795 = vmatpush2.bf16.msra.mxu0 %v2737
      %2796 = vmatprep.subr.bf16.mxu0 %v2736
      %2797 = vmatpush2.bf16.msra.mxu0 %v2735
      %2798 = vmatprep.subr.bf16.mxu0 %v2734
      %2799 = vmatpush2.bf16.msra.mxu0 %v2733
      %2800 = vmatprep.mubr.bf16.mxu0 %v2766
      %2801 = vmatmul.mubr.bf16.gmra.mxu0 %v2618
      %v2802 = vpop.f32.mrf.mxu0
      %v2803 = vadd.f32 0.0, %v2802
      %v2804 = vpop.f32.mrf.mxu0
      %v2805 = vadd.f32 0.0, %v2804
      %v2806 = vpop.f32.mrf.mxu0
      %v2807 = vpop.f32.mrf.mxu0
      %2808 = vdwg.mxu0
      %v2809 = vpack.c.bf16 %v2803, %v2803
      %v2810 = vpack.c.bf16 %v2805, %v2805
      %s2811 = scalar_lea.vmem %s10, 4
      %v2812 = vld [vmem:[%s2811] sm:$0xf]
      %s2813 = scalar_lea.vmem %s11, 192
      %v2814 = vld [vmem:[%s2813] sm:$0xff]
      %v2815 = vld [vmem:[%s2813 + $0x8] sm:$0xff]
      %v2816 = vld [vmem:[%s2813 + $0x10] sm:$0xff]
      %v2817 = vld [vmem:[%s2813 + $0x18] sm:$0xff]
      %v2818 = vld [vmem:[%s2813 + $0x20] sm:$0xff]
      %v2819 = vld [vmem:[%s2813 + $0x28] sm:$0xff]
      %v2820 = vld [vmem:[%s2813 + $0x30] sm:$0xff]
      %v2821 = vld [vmem:[%s2813 + $0x38] sm:$0xff]
      %v2822 = vld [vmem:[%s2813 + $0x40] sm:$0xff]
      %v2823 = vld [vmem:[%s2813 + $0x48] sm:$0xff]
      %v2824 = vld [vmem:[%s2813 + $0x50] sm:$0xff]
      %v2825 = vld [vmem:[%s2813 + $0x58] sm:$0xff]
      %v2826 = vld [vmem:[%s2813 + $0x60] sm:$0xff]
      %v2827 = vld [vmem:[%s2813 + $0x68] sm:$0xff]
      %v2828 = vld [vmem:[%s2813 + $0x70] sm:$0xff]
      %v2829 = vld [vmem:[%s2813 + $0x78] sm:$0xff]
      %v2830 = vld [vmem:[%s2813 + $0x80] sm:$0xff]
      %v2831 = vld [vmem:[%s2813 + $0x88] sm:$0xff]
      %v2832 = vld [vmem:[%s2813 + $0x90] sm:$0xff]
      %v2833 = vld [vmem:[%s2813 + $0x98] sm:$0xff]
      %v2834 = vld [vmem:[%s2813 + $0xa0] sm:$0xff]
      %v2835 = vld [vmem:[%s2813 + $0xa8] sm:$0xff]
      %v2836 = vld [vmem:[%s2813 + $0xb0] sm:$0xff]
      %v2837 = vld [vmem:[%s2813 + $0xb8] sm:$0xff]
      %v2862 = vunpack.c.l.b16 %v2814
      %v2863 = vunpack.c.h.b16 %v2814
      %v2864 = vunpack.c.l.b16 %v2815
      %v2865 = vunpack.c.h.b16 %v2815
      %v2866 = vunpack.c.l.b16 %v2816
      %v2867 = vunpack.c.h.b16 %v2816
      %v2868 = vunpack.c.l.b16 %v2817
      %v2869 = vunpack.c.h.b16 %v2817
      %v2870 = vunpack.c.l.b16 %v2818
      %v2871 = vunpack.c.h.b16 %v2818
      %v2872 = vunpack.c.l.b16 %v2819
      %v2873 = vunpack.c.h.b16 %v2819
      %v2874 = vunpack.c.l.b16 %v2820
      %v2875 = vunpack.c.h.b16 %v2820
      %v2876 = vunpack.c.l.b16 %v2821
      %v2877 = vunpack.c.h.b16 %v2821
      %v2878 = vunpack.c.l.b16 %v2822
      %v2879 = vunpack.c.h.b16 %v2822
      %v2880 = vunpack.c.l.b16 %v2823
      %v2881 = vunpack.c.h.b16 %v2823
      %v2882 = vunpack.c.l.b16 %v2824
      %v2883 = vunpack.c.h.b16 %v2824
      %v2884 = vunpack.c.l.b16 %v2825
      %v2885 = vunpack.c.h.b16 %v2825
      %v2886 = vunpack.c.l.b16 %v2826
      %v2887 = vunpack.c.h.b16 %v2826
      %v2888 = vunpack.c.l.b16 %v2827
      %v2889 = vunpack.c.h.b16 %v2827
      %v2890 = vunpack.c.l.b16 %v2828
      %v2891 = vunpack.c.h.b16 %v2828
      %v2892 = vunpack.c.l.b16 %v2829
      %v2893 = vunpack.c.h.b16 %v2829
      %v2894 = vunpack.c.l.b16 %v2830
      %v2895 = vunpack.c.h.b16 %v2830
      %v2896 = vunpack.c.l.b16 %v2831
      %v2897 = vunpack.c.h.b16 %v2831
      %v2898 = vunpack.c.l.b16 %v2832
      %v2899 = vunpack.c.h.b16 %v2832
      %v2900 = vunpack.c.l.b16 %v2833
      %v2901 = vunpack.c.h.b16 %v2833
      %v2902 = vunpack.c.l.b16 %v2834
      %v2903 = vunpack.c.h.b16 %v2834
      %v2904 = vunpack.c.l.b16 %v2835
      %v2905 = vunpack.c.h.b16 %v2835
      %v2906 = vunpack.c.l.b16 %v2836
      %v2907 = vunpack.c.h.b16 %v2836
      %v2908 = vunpack.c.l.b16 %v2837
      %v2909 = vunpack.c.h.b16 %v2837
      %v2910 = vpack.c.b16 %v2864, %v2862
      %v2911 = vpack.c.b16 %v2865, %v2863
      %v2912 = vpack.c.b16 %v2868, %v2866
      %v2913 = vpack.c.b16 %v2869, %v2867
      %v2914 = vpack.c.b16 %v2872, %v2870
      %v2915 = vpack.c.b16 %v2873, %v2871
      %v2916 = vpack.c.b16 %v2876, %v2874
      %v2917 = vpack.c.b16 %v2877, %v2875
      %v2918 = vpack.c.b16 %v2880, %v2878
      %v2919 = vpack.c.b16 %v2881, %v2879
      %v2920 = vpack.c.b16 %v2884, %v2882
      %v2921 = vpack.c.b16 %v2885, %v2883
      %v2922 = vpack.c.b16 %v2888, %v2886
      %v2923 = vpack.c.b16 %v2889, %v2887
      %v2924 = vpack.c.b16 %v2892, %v2890
      %v2925 = vpack.c.b16 %v2893, %v2891
      %v2926 = vpack.c.b16 %v2896, %v2894
      %v2927 = vpack.c.b16 %v2897, %v2895
      %v2928 = vpack.c.b16 %v2900, %v2898
      %v2929 = vpack.c.b16 %v2901, %v2899
      %v2930 = vpack.c.b16 %v2904, %v2902
      %v2931 = vpack.c.b16 %v2905, %v2903
      %v2932 = vpack.c.b16 %v2908, %v2906
      %v2933 = vpack.c.b16 %v2909, %v2907
      %2958 = vmatprep.subr.bf16.mxu0 %v2925
      %2959 = vmatpush1.bf16.msra.mxu0 %v2924
      %2960 = vmatprep.subr.bf16.mxu0 %v2923
      %2961 = vmatpush1.bf16.msra.mxu0 %v2922
      %2962 = vmatprep.subr.bf16.mxu0 %v2921
      %2963 = vmatpush1.bf16.msra.mxu0 %v2920
      %2964 = vmatprep.subr.bf16.mxu0 %v2919
      %2965 = vmatpush1.bf16.msra.mxu0 %v2918
      %2966 = vmatprep.subr.bf16.mxu0 %v2917
      %2967 = vmatpush1.bf16.msra.mxu0 %v2916
      %2968 = vmatprep.subr.bf16.mxu0 %v2915
      %2969 = vmatpush1.bf16.msra.mxu0 %v2914
      %2970 = vmatprep.subr.bf16.mxu0 %v2913
      %2971 = vmatpush1.bf16.msra.mxu0 %v2912
      %2972 = vmatprep.subr.bf16.mxu0 %v2911
      %2973 = vmatpush1.bf16.msra.mxu0 %v2910
      %2974 = vmatprep.subr.bf16.mxu0 0
      %2975 = vmatpush2.bf16.msra.mxu0 0
      %2976 = vmatprep.subr.bf16.mxu0 0
      %2977 = vmatpush2.bf16.msra.mxu0 0
      %2978 = vmatprep.subr.bf16.mxu0 0
      %2979 = vmatpush2.bf16.msra.mxu0 0
      %2980 = vmatprep.subr.bf16.mxu0 0
      %2981 = vmatpush2.bf16.msra.mxu0 0
      %2982 = vmatprep.subr.bf16.mxu0 %v2933
      %2983 = vmatpush2.bf16.msra.mxu0 %v2932
      %2984 = vmatprep.subr.bf16.mxu0 %v2931
      %2985 = vmatpush2.bf16.msra.mxu0 %v2930
      %2986 = vmatprep.subr.bf16.mxu0 %v2929
      %2987 = vmatpush2.bf16.msra.mxu0 %v2928
      %2988 = vmatprep.subr.bf16.mxu0 %v2927
      %2989 = vmatpush2.bf16.msra.mxu0 %v2926
      %2990 = vmatprep.mubr.bf16.mxu0 %v2766
      %2991 = vmatmul.mubr.bf16.gmra.mxu0 %v2618
      %v2992 = vpop.f32.mrf.mxu0
      %v2993 = vadd.f32 0.0, %v2992
      %v2994 = vpop.f32.mrf.mxu0
      %v2995 = vadd.f32 0.0, %v2994
      %v2996 = vpop.f32.mrf.mxu0
      %v2997 = vpop.f32.mrf.mxu0
      %2998 = vdwg.mxu0
      %v2999 = vpack.c.bf16 %v2993, %v2993
      %v3000 = vpack.c.bf16 %v2995, %v2995
      %vm3001 = vcmask 31744
      %v3003 = vsel %vm3001, %v2812, 0
      %vm3005 = vcmask 1041408
      %v3007 = vsel %vm3005, %v2999, 0
      %v3010 = vsel %vm3005, %v3000, 0
      %3012 = vmatprep.subr.bf16.mxu0 0
      %3013 = vmatpush1.bf16.msra.mxu0 0
      %3014 = vmatprep.subr.bf16.mxu0 0
      %3015 = vmatpush1.bf16.msra.mxu0 0
      %3016 = vmatprep.subr.bf16.mxu0 0
      %3017 = vmatpush1.bf16.msra.mxu0 0
      %3018 = vmatprep.subr.bf16.mxu0 0
      %3019 = vmatpush1.bf16.msra.mxu0 0
      %3020 = vmatprep.subr.bf16.mxu0 0
      %3021 = vmatpush1.bf16.msra.mxu0 0
      %3022 = vmatprep.subr.bf16.mxu0 0
      %3023 = vmatpush1.bf16.msra.mxu0 0
      %3024 = vmatprep.subr.bf16.mxu0 0
      %3025 = vmatpush1.bf16.msra.mxu0 0
      %3026 = vmatprep.subr.bf16.mxu0 %v3010
      %3027 = vmatpush1.bf16.msra.mxu0 %v3007
      %3028 = vmatprep.subr.bf16.mxu0 0
      %3029 = vmatpush2.bf16.msra.mxu0 0
      %3030 = vmatprep.subr.bf16.mxu0 0
      %3031 = vmatpush2.bf16.msra.mxu0 0
      %3032 = vmatprep.subr.bf16.mxu0 0
      %3033 = vmatpush2.bf16.msra.mxu0 0
      %3034 = vmatprep.subr.bf16.mxu0 0
      %3035 = vmatpush2.bf16.msra.mxu0 0
      %3036 = vmatprep.subr.bf16.mxu0 0
      %3037 = vmatpush2.bf16.msra.mxu0 0
      %3038 = vmatprep.subr.bf16.mxu0 0
      %3039 = vmatpush2.bf16.msra.mxu0 0
      %3040 = vmatprep.subr.bf16.mxu0 0
      %3041 = vmatpush2.bf16.msra.mxu0 0
      %3042 = vmatprep.subr.bf16.mxu0 0
      %3043 = vmatpush2.bf16.msra.mxu0 0
      %3044 = vmatprep.mubr.bf16.mxu0 0
      %3045 = vmatmul.mubr.bf16.gmra.mxu0 %v3003
      %v3046 = vpop.f32.mrf.mxu0
      %v3047 = vadd.f32 0.0, %v3046
      %v3048 = vpop.f32.mrf.mxu0
      %v3049 = vadd.f32 0.0, %v3048
      %v3050 = vpop.f32.mrf.mxu0
      %v3051 = vpop.f32.mrf.mxu0
      %3052 = vdwg.mxu0
      %v3054 = vsel %vm3001, %v2620, 0
      %v3057 = vsel %vm3005, %v2809, 0
      %v3060 = vsel %vm3005, %v2810, 0
      %3062 = vmatprep.subr.bf16.mxu0 0
      %3063 = vmatpush1.bf16.msra.mxu0 0
      %3064 = vmatprep.subr.bf16.mxu0 0
      %3065 = vmatpush1.bf16.msra.mxu0 0
      %3066 = vmatprep.subr.bf16.mxu0 0
      %3067 = vmatpush1.bf16.msra.mxu0 0
      %3068 = vmatprep.subr.bf16.mxu0 0
      %3069 = vmatpush1.bf16.msra.mxu0 0
      %3070 = vmatprep.subr.bf16.mxu0 0
      %3071 = vmatpush1.bf16.msra.mxu0 0
      %3072 = vmatprep.subr.bf16.mxu0 0
      %3073 = vmatpush1.bf16.msra.mxu0 0
      %3074 = vmatprep.subr.bf16.mxu0 0
      %3075 = vmatpush1.bf16.msra.mxu0 0
      %3076 = vmatprep.subr.bf16.mxu0 %v3060
      %3077 = vmatpush1.bf16.msra.mxu0 %v3057
      %3078 = vmatprep.subr.bf16.mxu0 0
      %3079 = vmatpush2.bf16.msra.mxu0 0
      %3080 = vmatprep.subr.bf16.mxu0 0
      %3081 = vmatpush2.bf16.msra.mxu0 0
      %3082 = vmatprep.subr.bf16.mxu0 0
      %3083 = vmatpush2.bf16.msra.mxu0 0
      %3084 = vmatprep.subr.bf16.mxu0 0
      %3085 = vmatpush2.bf16.msra.mxu0 0
      %3086 = vmatprep.subr.bf16.mxu0 0
      %3087 = vmatpush2.bf16.msra.mxu0 0
      %3088 = vmatprep.subr.bf16.mxu0 0
      %3089 = vmatpush2.bf16.msra.mxu0 0
      %3090 = vmatprep.subr.bf16.mxu0 0
      %3091 = vmatpush2.bf16.msra.mxu0 0
      %3092 = vmatprep.subr.bf16.mxu0 0
      %3093 = vmatpush2.bf16.msra.mxu0 0
      %3094 = vmatprep.mubr.bf16.mxu0 0
      %3095 = vmatmul.mubr.bf16.gmra.mxu0 %v3054
      %v3096 = vpop.f32.mrf.mxu0
      %v3097 = vadd.f32 %v3047, %v3096
      %v3098 = vpop.f32.mrf.mxu0
      %v3099 = vadd.f32 %v3049, %v3098
      %v3100 = vpop.f32.mrf.mxu0
      %v3101 = vpop.f32.mrf.mxu0
      %3102 = vdwg.mxu0
      %s3103 = scalar_lea.vmem %s10, 8
      %v3104 = vld [vmem:[%s3103] sm:$0xf]
      %s3105 = scalar_lea.vmem %s11, 384
      %v3106 = vld [vmem:[%s3105] sm:$0xff]
      %v3107 = vld [vmem:[%s3105 + $0x8] sm:$0xff]
      %v3108 = vld [vmem:[%s3105 + $0x10] sm:$0xff]
      %v3109 = vld [vmem:[%s3105 + $0x18] sm:$0xff]
      %v3110 = vld [vmem:[%s3105 + $0x20] sm:$0xff]
      %v3111 = vld [vmem:[%s3105 + $0x28] sm:$0xff]
      %v3112 = vld [vmem:[%s3105 + $0x30] sm:$0xff]
      %v3113 = vld [vmem:[%s3105 + $0x38] sm:$0xff]
      %v3114 = vld [vmem:[%s3105 + $0x40] sm:$0xff]
      %v3115 = vld [vmem:[%s3105 + $0x48] sm:$0xff]
      %v3116 = vld [vmem:[%s3105 + $0x50] sm:$0xff]
      %v3117 = vld [vmem:[%s3105 + $0x58] sm:$0xff]
      %v3118 = vld [vmem:[%s3105 + $0x60] sm:$0xff]
      %v3119 = vld [vmem:[%s3105 + $0x68] sm:$0xff]
      %v3120 = vld [vmem:[%s3105 + $0x70] sm:$0xff]
      %v3121 = vld [vmem:[%s3105 + $0x78] sm:$0xff]
      %v3122 = vld [vmem:[%s3105 + $0x80] sm:$0xff]
      %v3123 = vld [vmem:[%s3105 + $0x88] sm:$0xff]
      %v3124 = vld [vmem:[%s3105 + $0x90] sm:$0xff]
      %v3125 = vld [vmem:[%s3105 + $0x98] sm:$0xff]
      %v3126 = vld [vmem:[%s3105 + $0xa0] sm:$0xff]
      %v3127 = vld [vmem:[%s3105 + $0xa8] sm:$0xff]
      %v3128 = vld [vmem:[%s3105 + $0xb0] sm:$0xff]
      %v3129 = vld [vmem:[%s3105 + $0xb8] sm:$0xff]
      %v3154 = vunpack.c.l.b16 %v3106
      %v3155 = vunpack.c.h.b16 %v3106
      %v3156 = vunpack.c.l.b16 %v3107
      %v3157 = vunpack.c.h.b16 %v3107
      %v3158 = vunpack.c.l.b16 %v3108
      %v3159 = vunpack.c.h.b16 %v3108
      %v3160 = vunpack.c.l.b16 %v3109
      %v3161 = vunpack.c.h.b16 %v3109
      %v3162 = vunpack.c.l.b16 %v3110
      %v3163 = vunpack.c.h.b16 %v3110
      %v3164 = vunpack.c.l.b16 %v3111
      %v3165 = vunpack.c.h.b16 %v3111
      %v3166 = vunpack.c.l.b16 %v3112
      %v3167 = vunpack.c.h.b16 %v3112
      %v3168 = vunpack.c.l.b16 %v3113
      %v3169 = vunpack.c.h.b16 %v3113
      %v3170 = vunpack.c.l.b16 %v3114
      %v3171 = vunpack.c.h.b16 %v3114
      %v3172 = vunpack.c.l.b16 %v3115
      %v3173 = vunpack.c.h.b16 %v3115
      %v3174 = vunpack.c.l.b16 %v3116
      %v3175 = vunpack.c.h.b16 %v3116
      %v3176 = vunpack.c.l.b16 %v3117
      %v3177 = vunpack.c.h.b16 %v3117
      %v3178 = vunpack.c.l.b16 %v3118
      %v3179 = vunpack.c.h.b16 %v3118
      %v3180 = vunpack.c.l.b16 %v3119
      %v3181 = vunpack.c.h.b16 %v3119
      %v3182 = vunpack.c.l.b16 %v3120
      %v3183 = vunpack.c.h.b16 %v3120
      %v3184 = vunpack.c.l.b16 %v3121
      %v3185 = vunpack.c.h.b16 %v3121
      %v3186 = vunpack.c.l.b16 %v3122
      %v3187 = vunpack.c.h.b16 %v3122
      %v3188 = vunpack.c.l.b16 %v3123
      %v3189 = vunpack.c.h.b16 %v3123
      %v3190 = vunpack.c.l.b16 %v3124
      %v3191 = vunpack.c.h.b16 %v3124
      %v3192 = vunpack.c.l.b16 %v3125
      %v3193 = vunpack.c.h.b16 %v3125
      %v3194 = vunpack.c.l.b16 %v3126
      %v3195 = vunpack.c.h.b16 %v3126
      %v3196 = vunpack.c.l.b16 %v3127
      %v3197 = vunpack.c.h.b16 %v3127
      %v3198 = vunpack.c.l.b16 %v3128
      %v3199 = vunpack.c.h.b16 %v3128
      %v3200 = vunpack.c.l.b16 %v3129
      %v3201 = vunpack.c.h.b16 %v3129
      %v3202 = vpack.c.b16 %v3156, %v3154
      %v3203 = vpack.c.b16 %v3157, %v3155
      %v3204 = vpack.c.b16 %v3160, %v3158
      %v3205 = vpack.c.b16 %v3161, %v3159
      %v3206 = vpack.c.b16 %v3164, %v3162
      %v3207 = vpack.c.b16 %v3165, %v3163
      %v3208 = vpack.c.b16 %v3168, %v3166
      %v3209 = vpack.c.b16 %v3169, %v3167
      %v3210 = vpack.c.b16 %v3172, %v3170
      %v3211 = vpack.c.b16 %v3173, %v3171
      %v3212 = vpack.c.b16 %v3176, %v3174
      %v3213 = vpack.c.b16 %v3177, %v3175
      %v3214 = vpack.c.b16 %v3180, %v3178
      %v3215 = vpack.c.b16 %v3181, %v3179
      %v3216 = vpack.c.b16 %v3184, %v3182
      %v3217 = vpack.c.b16 %v3185, %v3183
      %v3218 = vpack.c.b16 %v3188, %v3186
      %v3219 = vpack.c.b16 %v3189, %v3187
      %v3220 = vpack.c.b16 %v3192, %v3190
      %v3221 = vpack.c.b16 %v3193, %v3191
      %v3222 = vpack.c.b16 %v3196, %v3194
      %v3223 = vpack.c.b16 %v3197, %v3195
      %v3224 = vpack.c.b16 %v3200, %v3198
      %v3225 = vpack.c.b16 %v3201, %v3199
      %3250 = vmatprep.subr.bf16.mxu0 %v3217
      %3251 = vmatpush1.bf16.msra.mxu0 %v3216
      %3252 = vmatprep.subr.bf16.mxu0 %v3215
      %3253 = vmatpush1.bf16.msra.mxu0 %v3214
      %3254 = vmatprep.subr.bf16.mxu0 %v3213
      %3255 = vmatpush1.bf16.msra.mxu0 %v3212
      %3256 = vmatprep.subr.bf16.mxu0 %v3211
      %3257 = vmatpush1.bf16.msra.mxu0 %v3210
      %3258 = vmatprep.subr.bf16.mxu0 %v3209
      %3259 = vmatpush1.bf16.msra.mxu0 %v3208
      %3260 = vmatprep.subr.bf16.mxu0 %v3207
      %3261 = vmatpush1.bf16.msra.mxu0 %v3206
      %3262 = vmatprep.subr.bf16.mxu0 %v3205
      %3263 = vmatpush1.bf16.msra.mxu0 %v3204
      %3264 = vmatprep.subr.bf16.mxu0 %v3203
      %3265 = vmatpush1.bf16.msra.mxu0 %v3202
      %3266 = vmatprep.subr.bf16.mxu0 0
      %3267 = vmatpush2.bf16.msra.mxu0 0
      %3268 = vmatprep.subr.bf16.mxu0 0
      %3269 = vmatpush2.bf16.msra.mxu0 0
      %3270 = vmatprep.subr.bf16.mxu0 0
      %3271 = vmatpush2.bf16.msra.mxu0 0
      %3272 = vmatprep.subr.bf16.mxu0 0
      %3273 = vmatpush2.bf16.msra.mxu0 0
      %3274 = vmatprep.subr.bf16.mxu0 %v3225
      %3275 = vmatpush2.bf16.msra.mxu0 %v3224
      %3276 = vmatprep.subr.bf16.mxu0 %v3223
      %3277 = vmatpush2.bf16.msra.mxu0 %v3222
      %3278 = vmatprep.subr.bf16.mxu0 %v3221
      %3279 = vmatpush2.bf16.msra.mxu0 %v3220
      %3280 = vmatprep.subr.bf16.mxu0 %v3219
      %3281 = vmatpush2.bf16.msra.mxu0 %v3218
      %3282 = vmatprep.mubr.bf16.mxu0 %v2766
      %3283 = vmatmul.mubr.bf16.gmra.mxu0 %v2618
      %v3284 = vpop.f32.mrf.mxu0
      %v3285 = vadd.f32 0.0, %v3284
      %v3286 = vpop.f32.mrf.mxu0
      %v3287 = vadd.f32 0.0, %v3286
      %v3288 = vpop.f32.mrf.mxu0
      %v3289 = vpop.f32.mrf.mxu0
      %3290 = vdwg.mxu0
      %v3291 = vpack.c.bf16 %v3285, %v3285
      %v3292 = vpack.c.bf16 %v3287, %v3287
      %v3294 = vsel %vm3001, %v3104, 0
      %v3297 = vsel %vm3005, %v3291, 0
      %v3300 = vsel %vm3005, %v3292, 0
      %3302 = vmatprep.subr.bf16.mxu0 0
      %3303 = vmatpush1.bf16.msra.mxu0 0
      %3304 = vmatprep.subr.bf16.mxu0 0
      %3305 = vmatpush1.bf16.msra.mxu0 0
      %3306 = vmatprep.subr.bf16.mxu0 0
      %3307 = vmatpush1.bf16.msra.mxu0 0
      %3308 = vmatprep.subr.bf16.mxu0 0
      %3309 = vmatpush1.bf16.msra.mxu0 0
      %3310 = vmatprep.subr.bf16.mxu0 0
      %3311 = vmatpush1.bf16.msra.mxu0 0
      %3312 = vmatprep.subr.bf16.mxu0 0
      %3313 = vmatpush1.bf16.msra.mxu0 0
      %3314 = vmatprep.subr.bf16.mxu0 0
      %3315 = vmatpush1.bf16.msra.mxu0 0
      %3316 = vmatprep.subr.bf16.mxu0 %v3300
      %3317 = vmatpush1.bf16.msra.mxu0 %v3297
      %3318 = vmatprep.subr.bf16.mxu0 0
      %3319 = vmatpush2.bf16.msra.mxu0 0
      %3320 = vmatprep.subr.bf16.mxu0 0
      %3321 = vmatpush2.bf16.msra.mxu0 0
      %3322 = vmatprep.subr.bf16.mxu0 0
      %3323 = vmatpush2.bf16.msra.mxu0 0
      %3324 = vmatprep.subr.bf16.mxu0 0
      %3325 = vmatpush2.bf16.msra.mxu0 0
      %3326 = vmatprep.subr.bf16.mxu0 0
      %3327 = vmatpush2.bf16.msra.mxu0 0
      %3328 = vmatprep.subr.bf16.mxu0 0
      %3329 = vmatpush2.bf16.msra.mxu0 0
      %3330 = vmatprep.subr.bf16.mxu0 0
      %3331 = vmatpush2.bf16.msra.mxu0 0
      %3332 = vmatprep.subr.bf16.mxu0 0
      %3333 = vmatpush2.bf16.msra.mxu0 0
      %3334 = vmatprep.mubr.bf16.mxu0 0
      %3335 = vmatmul.mubr.bf16.gmra.mxu0 %v3294
      %v3336 = vpop.f32.mrf.mxu0
      %v3337 = vadd.f32 0.0, %v3336
      %v3338 = vpop.f32.mrf.mxu0
      %v3339 = vadd.f32 0.0, %v3338
      %v3340 = vpop.f32.mrf.mxu0
      %v3341 = vpop.f32.mrf.mxu0
      %3342 = vdwg.mxu0
      %v3343 = vadd.f32 %v3097, %v3337
      %v3344 = vadd.f32 %v3099, %v3339
      %v3345 = vld [vmem:[%s12] sm:$0x3]
      %v3347 = vlaneseq
      %v3348 = vshrl.u32 %v3347, 7
      %v3349 = vsub.s32 0, %v3348
      %v3350 = vrot.slane %v3345, %v3349
      %v3351 = vlaneseq
      %v3352 = vshrl.u32 %v3351, 7
      %v3353 = vsub.s32 1, %v3352
      %v3354 = vrot.slane %v3345, %v3353
      %v3357 = vadd.f32 %v3343, %v3350
      %v3358 = vadd.f32 %v3344, %v3354
      %v3359 = vmax.f32 %v3357, 0.0
      %v3360 = vmax.f32 %v3358, 0.0
      %v3361 = vpack.c.bf16 %v3359, %v3359
      %v3362 = vpack.c.bf16 %v3360, %v3360
      %v3363 = vld [vmem:[%s13] sm:$0xf]
      %v3364 = vld [vmem:[%s13 + $0x4] sm:$0xf]
      %v3365 = vld [vmem:[%s14] sm:$0xff]
      %v3366 = vld [vmem:[%s14 + $0x8] sm:$0xff]
      %v3367 = vld [vmem:[%s14 + $0x10] sm:$0xff]
      %v3368 = vld [vmem:[%s14 + $0x18] sm:$0xff]
      %v3369 = vld [vmem:[%s14 + $0x20] sm:$0xff]
      %v3370 = vld [vmem:[%s14 + $0x28] sm:$0xff]
      %v3371 = vld [vmem:[%s14 + $0x30] sm:$0xff]
      %v3372 = vld [vmem:[%s14 + $0x38] sm:$0xff]
      %v3373 = vld [vmem:[%s14 + $0x40] sm:$0xff]
      %v3374 = vld [vmem:[%s14 + $0x48] sm:$0xff]
      %v3375 = vld [vmem:[%s14 + $0x50] sm:$0xff]
      %v3376 = vld [vmem:[%s14 + $0x58] sm:$0xff]
      %v3377 = vld [vmem:[%s14 + $0x60] sm:$0xff]
      %v3378 = vld [vmem:[%s14 + $0x68] sm:$0xff]
      %v3379 = vld [vmem:[%s14 + $0x70] sm:$0xff]
      %v3380 = vld [vmem:[%s14 + $0x78] sm:$0xff]
      %v3381 = vld [vmem:[%s14 + $0x80] sm:$0xff]
      %v3382 = vld [vmem:[%s14 + $0x88] sm:$0xff]
      %v3383 = vld [vmem:[%s14 + $0x90] sm:$0xff]
      %v3384 = vld [vmem:[%s14 + $0x98] sm:$0xff]
      %v3385 = vld [vmem:[%s14 + $0xa0] sm:$0xff]
      %v3386 = vld [vmem:[%s14 + $0xa8] sm:$0xff]
      %v3387 = vld [vmem:[%s14 + $0xb0] sm:$0xff]
      %v3388 = vld [vmem:[%s14 + $0xb8] sm:$0xff]
      %v3413 = vunpack.c.l.b16 %v3365
      %v3414 = vunpack.c.h.b16 %v3365
      %v3415 = vunpack.c.l.b16 %v3366
      %v3416 = vunpack.c.h.b16 %v3366
      %v3417 = vunpack.c.l.b16 %v3367
      %v3418 = vunpack.c.h.b16 %v3367
      %v3419 = vunpack.c.l.b16 %v3368
      %v3420 = vunpack.c.h.b16 %v3368
      %v3421 = vunpack.c.l.b16 %v3369
      %v3422 = vunpack.c.h.b16 %v3369
      %v3423 = vunpack.c.l.b16 %v3370
      %v3424 = vunpack.c.h.b16 %v3370
      %v3425 = vunpack.c.l.b16 %v3371
      %v3426 = vunpack.c.h.b16 %v3371
      %v3427 = vunpack.c.l.b16 %v3372
      %v3428 = vunpack.c.h.b16 %v3372
      %v3429 = vunpack.c.l.b16 %v3373
      %v3430 = vunpack.c.h.b16 %v3373
      %v3431 = vunpack.c.l.b16 %v3374
      %v3432 = vunpack.c.h.b16 %v3374
      %v3433 = vunpack.c.l.b16 %v3375
      %v3434 = vunpack.c.h.b16 %v3375
      %v3435 = vunpack.c.l.b16 %v3376
      %v3436 = vunpack.c.h.b16 %v3376
      %v3437 = vunpack.c.l.b16 %v3377
      %v3438 = vunpack.c.h.b16 %v3377
      %v3439 = vunpack.c.l.b16 %v3378
      %v3440 = vunpack.c.h.b16 %v3378
      %v3441 = vunpack.c.l.b16 %v3379
      %v3442 = vunpack.c.h.b16 %v3379
      %v3443 = vunpack.c.l.b16 %v3380
      %v3444 = vunpack.c.h.b16 %v3380
      %v3445 = vunpack.c.l.b16 %v3381
      %v3446 = vunpack.c.h.b16 %v3381
      %v3447 = vunpack.c.l.b16 %v3382
      %v3448 = vunpack.c.h.b16 %v3382
      %v3449 = vunpack.c.l.b16 %v3383
      %v3450 = vunpack.c.h.b16 %v3383
      %v3451 = vunpack.c.l.b16 %v3384
      %v3452 = vunpack.c.h.b16 %v3384
      %v3453 = vunpack.c.l.b16 %v3385
      %v3454 = vunpack.c.h.b16 %v3385
      %v3455 = vunpack.c.l.b16 %v3386
      %v3456 = vunpack.c.h.b16 %v3386
      %v3457 = vunpack.c.l.b16 %v3387
      %v3458 = vunpack.c.h.b16 %v3387
      %v3459 = vunpack.c.l.b16 %v3388
      %v3460 = vunpack.c.h.b16 %v3388
      %v3461 = vpack.c.b16 %v3415, %v3413
      %v3462 = vpack.c.b16 %v3416, %v3414
      %v3463 = vpack.c.b16 %v3419, %v3417
      %v3464 = vpack.c.b16 %v3420, %v3418
      %v3465 = vpack.c.b16 %v3423, %v3421
      %v3466 = vpack.c.b16 %v3424, %v3422
      %v3467 = vpack.c.b16 %v3427, %v3425
      %v3468 = vpack.c.b16 %v3428, %v3426
      %v3469 = vpack.c.b16 %v3431, %v3429
      %v3470 = vpack.c.b16 %v3432, %v3430
      %v3471 = vpack.c.b16 %v3435, %v3433
      %v3472 = vpack.c.b16 %v3436, %v3434
      %v3473 = vpack.c.b16 %v3439, %v3437
      %v3474 = vpack.c.b16 %v3440, %v3438
      %v3475 = vpack.c.b16 %v3443, %v3441
      %v3476 = vpack.c.b16 %v3444, %v3442
      %v3477 = vpack.c.b16 %v3447, %v3445
      %v3478 = vpack.c.b16 %v3448, %v3446
      %v3479 = vpack.c.b16 %v3451, %v3449
      %v3480 = vpack.c.b16 %v3452, %v3450
      %v3481 = vpack.c.b16 %v3455, %v3453
      %v3482 = vpack.c.b16 %v3456, %v3454
      %v3483 = vpack.c.b16 %v3459, %v3457
      %v3484 = vpack.c.b16 %v3460, %v3458
      %v3510 = vsel %vm1417, %v3362, 0
      %3512 = vmatprep.subr.bf16.mxu0 %v3476
      %3513 = vmatpush1.bf16.msra.mxu0 %v3475
      %3514 = vmatprep.subr.bf16.mxu0 %v3474
      %3515 = vmatpush1.bf16.msra.mxu0 %v3473
      %3516 = vmatprep.subr.bf16.mxu0 %v3472
      %3517 = vmatpush1.bf16.msra.mxu0 %v3471
      %3518 = vmatprep.subr.bf16.mxu0 %v3470
      %3519 = vmatpush1.bf16.msra.mxu0 %v3469
      %3520 = vmatprep.subr.bf16.mxu0 %v3468
      %3521 = vmatpush1.bf16.msra.mxu0 %v3467
      %3522 = vmatprep.subr.bf16.mxu0 %v3466
      %3523 = vmatpush1.bf16.msra.mxu0 %v3465
      %3524 = vmatprep.subr.bf16.mxu0 %v3464
      %3525 = vmatpush1.bf16.msra.mxu0 %v3463
      %3526 = vmatprep.subr.bf16.mxu0 %v3462
      %3527 = vmatpush1.bf16.msra.mxu0 %v3461
      %3528 = vmatprep.subr.bf16.mxu0 0
      %3529 = vmatpush2.bf16.msra.mxu0 0
      %3530 = vmatprep.subr.bf16.mxu0 0
      %3531 = vmatpush2.bf16.msra.mxu0 0
      %3532 = vmatprep.subr.bf16.mxu0 0
      %3533 = vmatpush2.bf16.msra.mxu0 0
      %3534 = vmatprep.subr.bf16.mxu0 0
      %3535 = vmatpush2.bf16.msra.mxu0 0
      %3536 = vmatprep.subr.bf16.mxu0 %v3484
      %3537 = vmatpush2.bf16.msra.mxu0 %v3483
      %3538 = vmatprep.subr.bf16.mxu0 %v3482
      %3539 = vmatpush2.bf16.msra.mxu0 %v3481
      %3540 = vmatprep.subr.bf16.mxu0 %v3480
      %3541 = vmatpush2.bf16.msra.mxu0 %v3479
      %3542 = vmatprep.subr.bf16.mxu0 %v3478
      %3543 = vmatpush2.bf16.msra.mxu0 %v3477
      %3544 = vmatprep.mubr.bf16.mxu0 %v3510
      %3545 = vmatmul.mubr.bf16.gmra.mxu0 %v3361
      %v3546 = vpop.f32.mrf.mxu0
      %v3547 = vadd.f32 0.0, %v3546
      %v3548 = vpop.f32.mrf.mxu0
      %v3549 = vadd.f32 0.0, %v3548
      %v3550 = vpop.f32.mrf.mxu0
      %v3551 = vpop.f32.mrf.mxu0
      %3552 = vdwg.mxu0
      %v3553 = vpack.c.bf16 %v3547, %v3547
      %v3554 = vpack.c.bf16 %v3549, %v3549
      %s3555 = scalar_lea.vmem %s13, 8
      %v3556 = vld [vmem:[%s3555] sm:$0xf]
      %v3557 = vld [vmem:[%s3555 + $0x4] sm:$0xf]
      %s3558 = scalar_lea.vmem %s14, 192
      %v3559 = vld [vmem:[%s3558] sm:$0xff]
      %v3560 = vld [vmem:[%s3558 + $0x8] sm:$0xff]
      %v3561 = vld [vmem:[%s3558 + $0x10] sm:$0xff]
      %v3562 = vld [vmem:[%s3558 + $0x18] sm:$0xff]
      %v3563 = vld [vmem:[%s3558 + $0x20] sm:$0xff]
      %v3564 = vld [vmem:[%s3558 + $0x28] sm:$0xff]
      %v3565 = vld [vmem:[%s3558 + $0x30] sm:$0xff]
      %v3566 = vld [vmem:[%s3558 + $0x38] sm:$0xff]
      %v3567 = vld [vmem:[%s3558 + $0x40] sm:$0xff]
      %v3568 = vld [vmem:[%s3558 + $0x48] sm:$0xff]
      %v3569 = vld [vmem:[%s3558 + $0x50] sm:$0xff]
      %v3570 = vld [vmem:[%s3558 + $0x58] sm:$0xff]
      %v3571 = vld [vmem:[%s3558 + $0x60] sm:$0xff]
      %v3572 = vld [vmem:[%s3558 + $0x68] sm:$0xff]
      %v3573 = vld [vmem:[%s3558 + $0x70] sm:$0xff]
      %v3574 = vld [vmem:[%s3558 + $0x78] sm:$0xff]
      %v3575 = vld [vmem:[%s3558 + $0x80] sm:$0xff]
      %v3576 = vld [vmem:[%s3558 + $0x88] sm:$0xff]
      %v3577 = vld [vmem:[%s3558 + $0x90] sm:$0xff]
      %v3578 = vld [vmem:[%s3558 + $0x98] sm:$0xff]
      %v3579 = vld [vmem:[%s3558 + $0xa0] sm:$0xff]
      %v3580 = vld [vmem:[%s3558 + $0xa8] sm:$0xff]
      %v3581 = vld [vmem:[%s3558 + $0xb0] sm:$0xff]
      %v3582 = vld [vmem:[%s3558 + $0xb8] sm:$0xff]
      %v3607 = vunpack.c.l.b16 %v3559
      %v3608 = vunpack.c.h.b16 %v3559
      %v3609 = vunpack.c.l.b16 %v3560
      %v3610 = vunpack.c.h.b16 %v3560
      %v3611 = vunpack.c.l.b16 %v3561
      %v3612 = vunpack.c.h.b16 %v3561
      %v3613 = vunpack.c.l.b16 %v3562
      %v3614 = vunpack.c.h.b16 %v3562
      %v3615 = vunpack.c.l.b16 %v3563
      %v3616 = vunpack.c.h.b16 %v3563
      %v3617 = vunpack.c.l.b16 %v3564
      %v3618 = vunpack.c.h.b16 %v3564
      %v3619 = vunpack.c.l.b16 %v3565
      %v3620 = vunpack.c.h.b16 %v3565
      %v3621 = vunpack.c.l.b16 %v3566
      %v3622 = vunpack.c.h.b16 %v3566
      %v3623 = vunpack.c.l.b16 %v3567
      %v3624 = vunpack.c.h.b16 %v3567
      %v3625 = vunpack.c.l.b16 %v3568
      %v3626 = vunpack.c.h.b16 %v3568
      %v3627 = vunpack.c.l.b16 %v3569
      %v3628 = vunpack.c.h.b16 %v3569
      %v3629 = vunpack.c.l.b16 %v3570
      %v3630 = vunpack.c.h.b16 %v3570
      %v3631 = vunpack.c.l.b16 %v3571
      %v3632 = vunpack.c.h.b16 %v3571
      %v3633 = vunpack.c.l.b16 %v3572
      %v3634 = vunpack.c.h.b16 %v3572
      %v3635 = vunpack.c.l.b16 %v3573
      %v3636 = vunpack.c.h.b16 %v3573
      %v3637 = vunpack.c.l.b16 %v3574
      %v3638 = vunpack.c.h.b16 %v3574
      %v3639 = vunpack.c.l.b16 %v3575
      %v3640 = vunpack.c.h.b16 %v3575
      %v3641 = vunpack.c.l.b16 %v3576
      %v3642 = vunpack.c.h.b16 %v3576
      %v3643 = vunpack.c.l.b16 %v3577
      %v3644 = vunpack.c.h.b16 %v3577
      %v3645 = vunpack.c.l.b16 %v3578
      %v3646 = vunpack.c.h.b16 %v3578
      %v3647 = vunpack.c.l.b16 %v3579
      %v3648 = vunpack.c.h.b16 %v3579
      %v3649 = vunpack.c.l.b16 %v3580
      %v3650 = vunpack.c.h.b16 %v3580
      %v3651 = vunpack.c.l.b16 %v3581
      %v3652 = vunpack.c.h.b16 %v3581
      %v3653 = vunpack.c.l.b16 %v3582
      %v3654 = vunpack.c.h.b16 %v3582
      %v3655 = vpack.c.b16 %v3609, %v3607
      %v3656 = vpack.c.b16 %v3610, %v3608
      %v3657 = vpack.c.b16 %v3613, %v3611
      %v3658 = vpack.c.b16 %v3614, %v3612
      %v3659 = vpack.c.b16 %v3617, %v3615
      %v3660 = vpack.c.b16 %v3618, %v3616
      %v3661 = vpack.c.b16 %v3621, %v3619
      %v3662 = vpack.c.b16 %v3622, %v3620
      %v3663 = vpack.c.b16 %v3625, %v3623
      %v3664 = vpack.c.b16 %v3626, %v3624
      %v3665 = vpack.c.b16 %v3629, %v3627
      %v3666 = vpack.c.b16 %v3630, %v3628
      %v3667 = vpack.c.b16 %v3633, %v3631
      %v3668 = vpack.c.b16 %v3634, %v3632
      %v3669 = vpack.c.b16 %v3637, %v3635
      %v3670 = vpack.c.b16 %v3638, %v3636
      %v3671 = vpack.c.b16 %v3641, %v3639
      %v3672 = vpack.c.b16 %v3642, %v3640
      %v3673 = vpack.c.b16 %v3645, %v3643
      %v3674 = vpack.c.b16 %v3646, %v3644
      %v3675 = vpack.c.b16 %v3649, %v3647
      %v3676 = vpack.c.b16 %v3650, %v3648
      %v3677 = vpack.c.b16 %v3653, %v3651
      %v3678 = vpack.c.b16 %v3654, %v3652
      %3703 = vmatprep.subr.bf16.mxu0 %v3670
      %3704 = vmatpush1.bf16.msra.mxu0 %v3669
      %3705 = vmatprep.subr.bf16.mxu0 %v3668
      %3706 = vmatpush1.bf16.msra.mxu0 %v3667
      %3707 = vmatprep.subr.bf16.mxu0 %v3666
      %3708 = vmatpush1.bf16.msra.mxu0 %v3665
      %3709 = vmatprep.subr.bf16.mxu0 %v3664
      %3710 = vmatpush1.bf16.msra.mxu0 %v3663
      %3711 = vmatprep.subr.bf16.mxu0 %v3662
      %3712 = vmatpush1.bf16.msra.mxu0 %v3661
      %3713 = vmatprep.subr.bf16.mxu0 %v3660
      %3714 = vmatpush1.bf16.msra.mxu0 %v3659
      %3715 = vmatprep.subr.bf16.mxu0 %v3658
      %3716 = vmatpush1.bf16.msra.mxu0 %v3657
      %3717 = vmatprep.subr.bf16.mxu0 %v3656
      %3718 = vmatpush1.bf16.msra.mxu0 %v3655
      %3719 = vmatprep.subr.bf16.mxu0 0
      %3720 = vmatpush2.bf16.msra.mxu0 0
      %3721 = vmatprep.subr.bf16.mxu0 0
      %3722 = vmatpush2.bf16.msra.mxu0 0
      %3723 = vmatprep.subr.bf16.mxu0 0
      %3724 = vmatpush2.bf16.msra.mxu0 0
      %3725 = vmatprep.subr.bf16.mxu0 0
      %3726 = vmatpush2.bf16.msra.mxu0 0
      %3727 = vmatprep.subr.bf16.mxu0 %v3678
      %3728 = vmatpush2.bf16.msra.mxu0 %v3677
      %3729 = vmatprep.subr.bf16.mxu0 %v3676
      %3730 = vmatpush2.bf16.msra.mxu0 %v3675
      %3731 = vmatprep.subr.bf16.mxu0 %v3674
      %3732 = vmatpush2.bf16.msra.mxu0 %v3673
      %3733 = vmatprep.subr.bf16.mxu0 %v3672
      %3734 = vmatpush2.bf16.msra.mxu0 %v3671
      %3735 = vmatprep.mubr.bf16.mxu0 %v3510
      %3736 = vmatmul.mubr.bf16.gmra.mxu0 %v3361
      %v3737 = vpop.f32.mrf.mxu0
      %v3738 = vadd.f32 0.0, %v3737
      %v3739 = vpop.f32.mrf.mxu0
      %v3740 = vadd.f32 0.0, %v3739
      %v3741 = vpop.f32.mrf.mxu0
      %v3742 = vpop.f32.mrf.mxu0
      %3743 = vdwg.mxu0
      %v3744 = vpack.c.bf16 %v3738, %v3738
      %v3745 = vpack.c.bf16 %v3740, %v3740
      %v3748 = vunpack.c.l.b16 %v3556
      %v3749 = vunpack.c.l.b16 %v3557
      %v3750 = vpack.c.b16 %v3749, %v3748
      %v3752 = vsel %vm1908, %v3750, 0
      %v3755 = vsel %vm1912, %v3744, 0
      %v3758 = vsel %vm1912, %v3745, 0
      %3760 = vmatprep.subr.bf16.mxu0 0
      %3761 = vmatpush1.bf16.msra.mxu0 0
      %3762 = vmatprep.subr.bf16.mxu0 0
      %3763 = vmatpush1.bf16.msra.mxu0 0
      %3764 = vmatprep.subr.bf16.mxu0 0
      %3765 = vmatpush1.bf16.msra.mxu0 0
      %3766 = vmatprep.subr.bf16.mxu0 0
      %3767 = vmatpush1.bf16.msra.mxu0 0
      %3768 = vmatprep.subr.bf16.mxu0 0
      %3769 = vmatpush1.bf16.msra.mxu0 0
      %3770 = vmatprep.subr.bf16.mxu0 0
      %3771 = vmatpush1.bf16.msra.mxu0 0
      %3772 = vmatprep.subr.bf16.mxu0 0
      %3773 = vmatpush1.bf16.msra.mxu0 0
      %3774 = vmatprep.subr.bf16.mxu0 %v3758
      %3775 = vmatpush1.bf16.msra.mxu0 %v3755
      %3776 = vmatprep.subr.bf16.mxu0 0
      %3777 = vmatpush2.bf16.msra.mxu0 0
      %3778 = vmatprep.subr.bf16.mxu0 0
      %3779 = vmatpush2.bf16.msra.mxu0 0
      %3780 = vmatprep.subr.bf16.mxu0 0
      %3781 = vmatpush2.bf16.msra.mxu0 0
      %3782 = vmatprep.subr.bf16.mxu0 0
      %3783 = vmatpush2.bf16.msra.mxu0 0
      %3784 = vmatprep.subr.bf16.mxu0 0
      %3785 = vmatpush2.bf16.msra.mxu0 0
      %3786 = vmatprep.subr.bf16.mxu0 0
      %3787 = vmatpush2.bf16.msra.mxu0 0
      %3788 = vmatprep.subr.bf16.mxu0 0
      %3789 = vmatpush2.bf16.msra.mxu0 0
      %3790 = vmatprep.subr.bf16.mxu0 0
      %3791 = vmatpush2.bf16.msra.mxu0 0
      %3792 = vmatprep.mubr.bf16.mxu0 0
      %3793 = vmatmul.mubr.bf16.gmra.mxu0 %v3752
      %v3794 = vpop.f32.mrf.mxu0
      %v3795 = vadd.f32 0.0, %v3794
      %v3796 = vpop.f32.mrf.mxu0
      %v3797 = vadd.f32 0.0, %v3796
      %v3798 = vpop.f32.mrf.mxu0
      %v3799 = vadd.f32 0.0, %v3798
      %v3800 = vpop.f32.mrf.mxu0
      %v3801 = vadd.f32 0.0, %v3800
      %3802 = vdwg.mxu0
      %v3805 = vunpack.c.l.b16 %v3363
      %v3806 = vunpack.c.l.b16 %v3364
      %v3807 = vpack.c.b16 %v3806, %v3805
      %v3809 = vsel %vm1908, %v3807, 0
      %v3812 = vsel %vm1912, %v3553, 0
      %v3815 = vsel %vm1912, %v3554, 0
      %3817 = vmatprep.subr.bf16.mxu0 0
      %3818 = vmatpush1.bf16.msra.mxu0 0
      %3819 = vmatprep.subr.bf16.mxu0 0
      %3820 = vmatpush1.bf16.msra.mxu0 0
      %3821 = vmatprep.subr.bf16.mxu0 0
      %3822 = vmatpush1.bf16.msra.mxu0 0
      %3823 = vmatprep.subr.bf16.mxu0 0
      %3824 = vmatpush1.bf16.msra.mxu0 0
      %3825 = vmatprep.subr.bf16.mxu0 0
      %3826 = vmatpush1.bf16.msra.mxu0 0
      %3827 = vmatprep.subr.bf16.mxu0 0
      %3828 = vmatpush1.bf16.msra.mxu0 0
      %3829 = vmatprep.subr.bf16.mxu0 0
      %3830 = vmatpush1.bf16.msra.mxu0 0
      %3831 = vmatprep.subr.bf16.mxu0 %v3815
      %3832 = vmatpush1.bf16.msra.mxu0 %v3812
      %3833 = vmatprep.subr.bf16.mxu0 0
      %3834 = vmatpush2.bf16.msra.mxu0 0
      %3835 = vmatprep.subr.bf16.mxu0 0
      %3836 = vmatpush2.bf16.msra.mxu0 0
      %3837 = vmatprep.subr.bf16.mxu0 0
      %3838 = vmatpush2.bf16.msra.mxu0 0
      %3839 = vmatprep.subr.bf16.mxu0 0
      %3840 = vmatpush2.bf16.msra.mxu0 0
      %3841 = vmatprep.subr.bf16.mxu0 0
      %3842 = vmatpush2.bf16.msra.mxu0 0
      %3843 = vmatprep.subr.bf16.mxu0 0
      %3844 = vmatpush2.bf16.msra.mxu0 0
      %3845 = vmatprep.subr.bf16.mxu0 0
      %3846 = vmatpush2.bf16.msra.mxu0 0
      %3847 = vmatprep.subr.bf16.mxu0 0
      %3848 = vmatpush2.bf16.msra.mxu0 0
      %3849 = vmatprep.mubr.bf16.mxu0 0
      %3850 = vmatmul.mubr.bf16.gmra.mxu0 %v3809
      %v3851 = vpop.f32.mrf.mxu0
      %v3852 = vadd.f32 %v3795, %v3851
      %v3853 = vpop.f32.mrf.mxu0
      %v3854 = vadd.f32 %v3797, %v3853
      %v3855 = vpop.f32.mrf.mxu0
      %v3856 = vadd.f32 %v3799, %v3855
      %v3857 = vpop.f32.mrf.mxu0
      %v3858 = vadd.f32 %v3801, %v3857
      %3859 = vdwg.mxu0
      %s3860 = scalar_lea.vmem %s13, 16
      %v3861 = vld [vmem:[%s3860] sm:$0xf]
      %v3862 = vld [vmem:[%s3860 + $0x4] sm:$0xf]
      %s3863 = scalar_lea.vmem %s14, 384
      %v3864 = vld [vmem:[%s3863] sm:$0xff]
      %v3865 = vld [vmem:[%s3863 + $0x8] sm:$0xff]
      %v3866 = vld [vmem:[%s3863 + $0x10] sm:$0xff]
      %v3867 = vld [vmem:[%s3863 + $0x18] sm:$0xff]
      %v3868 = vld [vmem:[%s3863 + $0x20] sm:$0xff]
      %v3869 = vld [vmem:[%s3863 + $0x28] sm:$0xff]
      %v3870 = vld [vmem:[%s3863 + $0x30] sm:$0xff]
      %v3871 = vld [vmem:[%s3863 + $0x38] sm:$0xff]
      %v3872 = vld [vmem:[%s3863 + $0x40] sm:$0xff]
      %v3873 = vld [vmem:[%s3863 + $0x48] sm:$0xff]
      %v3874 = vld [vmem:[%s3863 + $0x50] sm:$0xff]
      %v3875 = vld [vmem:[%s3863 + $0x58] sm:$0xff]
      %v3876 = vld [vmem:[%s3863 + $0x60] sm:$0xff]
      %v3877 = vld [vmem:[%s3863 + $0x68] sm:$0xff]
      %v3878 = vld [vmem:[%s3863 + $0x70] sm:$0xff]
      %v3879 = vld [vmem:[%s3863 + $0x78] sm:$0xff]
      %v3880 = vld [vmem:[%s3863 + $0x80] sm:$0xff]
      %v3881 = vld [vmem:[%s3863 + $0x88] sm:$0xff]
      %v3882 = vld [vmem:[%s3863 + $0x90] sm:$0xff]
      %v3883 = vld [vmem:[%s3863 + $0x98] sm:$0xff]
      %v3884 = vld [vmem:[%s3863 + $0xa0] sm:$0xff]
      %v3885 = vld [vmem:[%s3863 + $0xa8] sm:$0xff]
      %v3886 = vld [vmem:[%s3863 + $0xb0] sm:$0xff]
      %v3887 = vld [vmem:[%s3863 + $0xb8] sm:$0xff]
      %v3912 = vunpack.c.l.b16 %v3864
      %v3913 = vunpack.c.h.b16 %v3864
      %v3914 = vunpack.c.l.b16 %v3865
      %v3915 = vunpack.c.h.b16 %v3865
      %v3916 = vunpack.c.l.b16 %v3866
      %v3917 = vunpack.c.h.b16 %v3866
      %v3918 = vunpack.c.l.b16 %v3867
      %v3919 = vunpack.c.h.b16 %v3867
      %v3920 = vunpack.c.l.b16 %v3868
      %v3921 = vunpack.c.h.b16 %v3868
      %v3922 = vunpack.c.l.b16 %v3869
      %v3923 = vunpack.c.h.b16 %v3869
      %v3924 = vunpack.c.l.b16 %v3870
      %v3925 = vunpack.c.h.b16 %v3870
      %v3926 = vunpack.c.l.b16 %v3871
      %v3927 = vunpack.c.h.b16 %v3871
      %v3928 = vunpack.c.l.b16 %v3872
      %v3929 = vunpack.c.h.b16 %v3872
      %v3930 = vunpack.c.l.b16 %v3873
      %v3931 = vunpack.c.h.b16 %v3873
      %v3932 = vunpack.c.l.b16 %v3874
      %v3933 = vunpack.c.h.b16 %v3874
      %v3934 = vunpack.c.l.b16 %v3875
      %v3935 = vunpack.c.h.b16 %v3875
      %v3936 = vunpack.c.l.b16 %v3876
      %v3937 = vunpack.c.h.b16 %v3876
      %v3938 = vunpack.c.l.b16 %v3877
      %v3939 = vunpack.c.h.b16 %v3877
      %v3940 = vunpack.c.l.b16 %v3878
      %v3941 = vunpack.c.h.b16 %v3878
      %v3942 = vunpack.c.l.b16 %v3879
      %v3943 = vunpack.c.h.b16 %v3879
      %v3944 = vunpack.c.l.b16 %v3880
      %v3945 = vunpack.c.h.b16 %v3880
      %v3946 = vunpack.c.l.b16 %v3881
      %v3947 = vunpack.c.h.b16 %v3881
      %v3948 = vunpack.c.l.b16 %v3882
      %v3949 = vunpack.c.h.b16 %v3882
      %v3950 = vunpack.c.l.b16 %v3883
      %v3951 = vunpack.c.h.b16 %v3883
      %v3952 = vunpack.c.l.b16 %v3884
      %v3953 = vunpack.c.h.b16 %v3884
      %v3954 = vunpack.c.l.b16 %v3885
      %v3955 = vunpack.c.h.b16 %v3885
      %v3956 = vunpack.c.l.b16 %v3886
      %v3957 = vunpack.c.h.b16 %v3886
      %v3958 = vunpack.c.l.b16 %v3887
      %v3959 = vunpack.c.h.b16 %v3887
      %v3960 = vpack.c.b16 %v3914, %v3912
      %v3961 = vpack.c.b16 %v3915, %v3913
      %v3962 = vpack.c.b16 %v3918, %v3916
      %v3963 = vpack.c.b16 %v3919, %v3917
      %v3964 = vpack.c.b16 %v3922, %v3920
      %v3965 = vpack.c.b16 %v3923, %v3921
      %v3966 = vpack.c.b16 %v3926, %v3924
      %v3967 = vpack.c.b16 %v3927, %v3925
      %v3968 = vpack.c.b16 %v3930, %v3928
      %v3969 = vpack.c.b16 %v3931, %v3929
      %v3970 = vpack.c.b16 %v3934, %v3932
      %v3971 = vpack.c.b16 %v3935, %v3933
      %v3972 = vpack.c.b16 %v3938, %v3936
      %v3973 = vpack.c.b16 %v3939, %v3937
      %v3974 = vpack.c.b16 %v3942, %v3940
      %v3975 = vpack.c.b16 %v3943, %v3941
      %v3976 = vpack.c.b16 %v3946, %v3944
      %v3977 = vpack.c.b16 %v3947, %v3945
      %v3978 = vpack.c.b16 %v3950, %v3948
      %v3979 = vpack.c.b16 %v3951, %v3949
      %v3980 = vpack.c.b16 %v3954, %v3952
      %v3981 = vpack.c.b16 %v3955, %v3953
      %v3982 = vpack.c.b16 %v3958, %v3956
      %v3983 = vpack.c.b16 %v3959, %v3957
      %4008 = vmatprep.subr.bf16.mxu0 %v3975
      %4009 = vmatpush1.bf16.msra.mxu0 %v3974
      %4010 = vmatprep.subr.bf16.mxu0 %v3973
      %4011 = vmatpush1.bf16.msra.mxu0 %v3972
      %4012 = vmatprep.subr.bf16.mxu0 %v3971
      %4013 = vmatpush1.bf16.msra.mxu0 %v3970
      %4014 = vmatprep.subr.bf16.mxu0 %v3969
      %4015 = vmatpush1.bf16.msra.mxu0 %v3968
      %4016 = vmatprep.subr.bf16.mxu0 %v3967
      %4017 = vmatpush1.bf16.msra.mxu0 %v3966
      %4018 = vmatprep.subr.bf16.mxu0 %v3965
      %4019 = vmatpush1.bf16.msra.mxu0 %v3964
      %4020 = vmatprep.subr.bf16.mxu0 %v3963
      %4021 = vmatpush1.bf16.msra.mxu0 %v3962
      %4022 = vmatprep.subr.bf16.mxu0 %v3961
      %4023 = vmatpush1.bf16.msra.mxu0 %v3960
      %4024 = vmatprep.subr.bf16.mxu0 0
      %4025 = vmatpush2.bf16.msra.mxu0 0
      %4026 = vmatprep.subr.bf16.mxu0 0
      %4027 = vmatpush2.bf16.msra.mxu0 0
      %4028 = vmatprep.subr.bf16.mxu0 0
      %4029 = vmatpush2.bf16.msra.mxu0 0
      %4030 = vmatprep.subr.bf16.mxu0 0
      %4031 = vmatpush2.bf16.msra.mxu0 0
      %4032 = vmatprep.subr.bf16.mxu0 %v3983
      %4033 = vmatpush2.bf16.msra.mxu0 %v3982
      %4034 = vmatprep.subr.bf16.mxu0 %v3981
      %4035 = vmatpush2.bf16.msra.mxu0 %v3980
      %4036 = vmatprep.subr.bf16.mxu0 %v3979
      %4037 = vmatpush2.bf16.msra.mxu0 %v3978
      %4038 = vmatprep.subr.bf16.mxu0 %v3977
      %4039 = vmatpush2.bf16.msra.mxu0 %v3976
      %4040 = vmatprep.mubr.bf16.mxu0 %v3510
      %4041 = vmatmul.mubr.bf16.gmra.mxu0 %v3361
      %v4042 = vpop.f32.mrf.mxu0
      %v4043 = vadd.f32 0.0, %v4042
      %v4044 = vpop.f32.mrf.mxu0
      %v4045 = vadd.f32 0.0, %v4044
      %v4046 = vpop.f32.mrf.mxu0
      %v4047 = vpop.f32.mrf.mxu0
      %4048 = vdwg.mxu0
      %v4049 = vpack.c.bf16 %v4043, %v4043
      %v4050 = vpack.c.bf16 %v4045, %v4045
      %v4053 = vunpack.c.l.b16 %v3861
      %v4054 = vunpack.c.l.b16 %v3862
      %v4055 = vpack.c.b16 %v4054, %v4053
      %v4057 = vsel %vm1908, %v4055, 0
      %v4060 = vsel %vm1912, %v4049, 0
      %v4063 = vsel %vm1912, %v4050, 0
      %4065 = vmatprep.subr.bf16.mxu0 0
      %4066 = vmatpush1.bf16.msra.mxu0 0
      %4067 = vmatprep.subr.bf16.mxu0 0
      %4068 = vmatpush1.bf16.msra.mxu0 0
      %4069 = vmatprep.subr.bf16.mxu0 0
      %4070 = vmatpush1.bf16.msra.mxu0 0
      %4071 = vmatprep.subr.bf16.mxu0 0
      %4072 = vmatpush1.bf16.msra.mxu0 0
      %4073 = vmatprep.subr.bf16.mxu0 0
      %4074 = vmatpush1.bf16.msra.mxu0 0
      %4075 = vmatprep.subr.bf16.mxu0 0
      %4076 = vmatpush1.bf16.msra.mxu0 0
      %4077 = vmatprep.subr.bf16.mxu0 0
      %4078 = vmatpush1.bf16.msra.mxu0 0
      %4079 = vmatprep.subr.bf16.mxu0 %v4063
      %4080 = vmatpush1.bf16.msra.mxu0 %v4060
      %4081 = vmatprep.subr.bf16.mxu0 0
      %4082 = vmatpush2.bf16.msra.mxu0 0
      %4083 = vmatprep.subr.bf16.mxu0 0
      %4084 = vmatpush2.bf16.msra.mxu0 0
      %4085 = vmatprep.subr.bf16.mxu0 0
      %4086 = vmatpush2.bf16.msra.mxu0 0
      %4087 = vmatprep.subr.bf16.mxu0 0
      %4088 = vmatpush2.bf16.msra.mxu0 0
      %4089 = vmatprep.subr.bf16.mxu0 0
      %4090 = vmatpush2.bf16.msra.mxu0 0
      %4091 = vmatprep.subr.bf16.mxu0 0
      %4092 = vmatpush2.bf16.msra.mxu0 0
      %4093 = vmatprep.subr.bf16.mxu0 0
      %4094 = vmatpush2.bf16.msra.mxu0 0
      %4095 = vmatprep.subr.bf16.mxu0 0
      %4096 = vmatpush2.bf16.msra.mxu0 0
      %4097 = vmatprep.mubr.bf16.mxu0 0
      %4098 = vmatmul.mubr.bf16.gmra.mxu0 %v4057
      %v4099 = vpop.f32.mrf.mxu0
      %v4100 = vadd.f32 0.0, %v4099
      %v4101 = vpop.f32.mrf.mxu0
      %v4102 = vadd.f32 0.0, %v4101
      %v4103 = vpop.f32.mrf.mxu0
      %v4104 = vadd.f32 0.0, %v4103
      %v4105 = vpop.f32.mrf.mxu0
      %v4106 = vadd.f32 0.0, %v4105
      %4107 = vdwg.mxu0
      %v4108 = vadd.f32 %v3852, %v4100
      %v4109 = vadd.f32 %v3854, %v4102
      %v4110 = vadd.f32 %v3856, %v4104
      %v4111 = vadd.f32 %v3858, %v4106
      %v4112 = vld [vmem:[%s15] sm:$0x3]
      %v4114 = vlaneseq
      %v4115 = vshrl.u32 %v4114, 7
      %v4116 = vsub.s32 0, %v4115
      %v4117 = vrot.slane %v4112, %v4116
      %v4118 = vlaneseq
      %v4119 = vshrl.u32 %v4118, 7
      %v4120 = vsub.s32 1, %v4119
      %v4121 = vrot.slane %v4112, %v4120
      %v4124 = vadd.f32 %v4108, %v4117
      %v4125 = vadd.f32 %v4109, %v4121
      %v4126 = vadd.f32 %v4110, %v4117
      %v4127 = vadd.f32 %v4111, %v4121
      %v4128 = vmax.f32 %v4124, 0.0
      %v4129 = vmax.f32 %v4125, 0.0
      %v4130 = vmax.f32 %v4126, 0.0
      %v4131 = vmax.f32 %v4127, 0.0
      %v4132 = vpack.c.bf16 %v4130, %v4128
      %v4133 = vpack.c.bf16 %v4131, %v4129
      %v4134 = vld [vmem:[%s16] sm:$0xf]
      %v4135 = vld [vmem:[%s16 + $0x4] sm:$0xf]
      %v4136 = vld [vmem:[%s16 + $0x8] sm:$0xf]
      %v4137 = vld [vmem:[%s16 + $0xc] sm:$0xf]
      %v4138 = vld [vmem:[%s17] sm:$0xf]
      %v4139 = vld [vmem:[%s17 + $0x4] sm:$0xf]
      %v4140 = vld [vmem:[%s17 + $0x8] sm:$0xf]
      %v4141 = vld [vmem:[%s17 + $0xc] sm:$0xf]
      %v4142 = vld [vmem:[%s17 + $0x10] sm:$0xf]
      %v4143 = vld [vmem:[%s17 + $0x14] sm:$0xf]
      %v4144 = vld [vmem:[%s17 + $0x18] sm:$0xf]
      %v4145 = vld [vmem:[%s17 + $0x1c] sm:$0xf]
      %v4146 = vld [vmem:[%s17 + $0x20] sm:$0xf]
      %v4147 = vld [vmem:[%s17 + $0x24] sm:$0xf]
      %v4148 = vld [vmem:[%s17 + $0x28] sm:$0xf]
      %v4149 = vld [vmem:[%s17 + $0x2c] sm:$0xf]
      %v4150 = vld [vmem:[%s17 + $0x30] sm:$0xf]
      %v4151 = vld [vmem:[%s17 + $0x34] sm:$0xf]
      %v4152 = vld [vmem:[%s17 + $0x38] sm:$0xf]
      %v4153 = vld [vmem:[%s17 + $0x3c] sm:$0xf]
      %v4154 = vld [vmem:[%s17 + $0x40] sm:$0xf]
      %v4155 = vld [vmem:[%s17 + $0x44] sm:$0xf]
      %v4156 = vld [vmem:[%s17 + $0x48] sm:$0xf]
      %v4157 = vld [vmem:[%s17 + $0x4c] sm:$0xf]
      %v4158 = vld [vmem:[%s17 + $0x50] sm:$0xf]
      %v4159 = vld [vmem:[%s17 + $0x54] sm:$0xf]
      %v4160 = vld [vmem:[%s17 + $0x58] sm:$0xf]
      %v4161 = vld [vmem:[%s17 + $0x5c] sm:$0xf]
      %v4186 = vunpack.c.l.b16 %v4138
      %v4187 = vunpack.c.l.b16 %v4139
      %v4188 = vunpack.c.l.b16 %v4140
      %v4189 = vunpack.c.l.b16 %v4141
      %v4190 = vunpack.c.l.b16 %v4142
      %v4191 = vunpack.c.l.b16 %v4143
      %v4192 = vunpack.c.l.b16 %v4144
      %v4193 = vunpack.c.l.b16 %v4145
      %v4194 = vunpack.c.l.b16 %v4146
      %v4195 = vunpack.c.l.b16 %v4147
      %v4196 = vunpack.c.l.b16 %v4148
      %v4197 = vunpack.c.l.b16 %v4149
      %v4198 = vunpack.c.l.b16 %v4150
      %v4199 = vunpack.c.l.b16 %v4151
      %v4200 = vunpack.c.l.b16 %v4152
      %v4201 = vunpack.c.l.b16 %v4153
      %v4202 = vunpack.c.l.b16 %v4154
      %v4203 = vunpack.c.l.b16 %v4155
      %v4204 = vunpack.c.l.b16 %v4156
      %v4205 = vunpack.c.l.b16 %v4157
      %v4206 = vunpack.c.l.b16 %v4158
      %v4207 = vunpack.c.l.b16 %v4159
      %v4208 = vunpack.c.l.b16 %v4160
      %v4209 = vunpack.c.l.b16 %v4161
      %v4210 = vpack.c.b16 %v4187, %v4186
      %v4211 = vpack.c.b16 %v4189, %v4188
      %v4212 = vpack.c.b16 %v4191, %v4190
      %v4213 = vpack.c.b16 %v4193, %v4192
      %v4214 = vpack.c.b16 %v4195, %v4194
      %v4215 = vpack.c.b16 %v4197, %v4196
      %v4216 = vpack.c.b16 %v4199, %v4198
      %v4217 = vpack.c.b16 %v4201, %v4200
      %v4218 = vpack.c.b16 %v4203, %v4202
      %v4219 = vpack.c.b16 %v4205, %v4204
      %v4220 = vpack.c.b16 %v4207, %v4206
      %v4221 = vpack.c.b16 %v4209, %v4208
      %v4235 = vsel %vm1417, %v4133, 0
      %4237 = vmatprep.subr.bf16.mxu0 0
      %4238 = vmatpush1.bf16.msra.mxu0 %v4217
      %4239 = vmatprep.subr.bf16.mxu0 0
      %4240 = vmatpush1.bf16.msra.mxu0 %v4216
      %4241 = vmatprep.subr.bf16.mxu0 0
      %4242 = vmatpush1.bf16.msra.mxu0 %v4215
      %4243 = vmatprep.subr.bf16.mxu0 0
      %4244 = vmatpush1.bf16.msra.mxu0 %v4214
      %4245 = vmatprep.subr.bf16.mxu0 0
      %4246 = vmatpush1.bf16.msra.mxu0 %v4213
      %4247 = vmatprep.subr.bf16.mxu0 0
      %4248 = vmatpush1.bf16.msra.mxu0 %v4212
      %4249 = vmatprep.subr.bf16.mxu0 0
      %4250 = vmatpush1.bf16.msra.mxu0 %v4211
      %4251 = vmatprep.subr.bf16.mxu0 0
      %4252 = vmatpush1.bf16.msra.mxu0 %v4210
      %4253 = vmatprep.subr.bf16.mxu0 0
      %4254 = vmatpush2.bf16.msra.mxu0 0
      %4255 = vmatprep.subr.bf16.mxu0 0
      %4256 = vmatpush2.bf16.msra.mxu0 0
      %4257 = vmatprep.subr.bf16.mxu0 0
      %4258 = vmatpush2.bf16.msra.mxu0 0
      %4259 = vmatprep.subr.bf16.mxu0 0
      %4260 = vmatpush2.bf16.msra.mxu0 0
      %4261 = vmatprep.subr.bf16.mxu0 0
      %4262 = vmatpush2.bf16.msra.mxu0 %v4221
      %4263 = vmatprep.subr.bf16.mxu0 0
      %4264 = vmatpush2.bf16.msra.mxu0 %v4220
      %4265 = vmatprep.subr.bf16.mxu0 0
      %4266 = vmatpush2.bf16.msra.mxu0 %v4219
      %4267 = vmatprep.subr.bf16.mxu0 0
      %4268 = vmatpush2.bf16.msra.mxu0 %v4218
      %4269 = vmatprep.mubr.bf16.mxu0 %v4235
      %4270 = vmatmul.mubr.bf16.gmra.mxu0 %v4132
      %v4271 = vpop.f32.mrf.mxu0
      %v4272 = vadd.f32 0.0, %v4271
      %v4273 = vpop.f32.mrf.mxu0
      %v4274 = vpop.f32.mrf.mxu0
      %v4275 = vadd.f32 0.0, %v4274
      %v4276 = vpop.f32.mrf.mxu0
      %4277 = vdwg.mxu0
      %v4278 = vpack.c.bf16 %v4275, %v4272
      %s4279 = scalar_lea.vmem %s16, 16
      %v4280 = vld [vmem:[%s4279] sm:$0xf]
      %v4281 = vld [vmem:[%s4279 + $0x4] sm:$0xf]
      %v4282 = vld [vmem:[%s4279 + $0x8] sm:$0xf]
      %v4283 = vld [vmem:[%s4279 + $0xc] sm:$0xf]
      %s4284 = scalar_lea.vmem %s17, 96
      %v4285 = vld [vmem:[%s4284] sm:$0xf]
      %v4286 = vld [vmem:[%s4284 + $0x4] sm:$0xf]
      %v4287 = vld [vmem:[%s4284 + $0x8] sm:$0xf]
      %v4288 = vld [vmem:[%s4284 + $0xc] sm:$0xf]
      %v4289 = vld [vmem:[%s4284 + $0x10] sm:$0xf]
      %v4290 = vld [vmem:[%s4284 + $0x14] sm:$0xf]
      %v4291 = vld [vmem:[%s4284 + $0x18] sm:$0xf]
      %v4292 = vld [vmem:[%s4284 + $0x1c] sm:$0xf]
      %v4293 = vld [vmem:[%s4284 + $0x20] sm:$0xf]
      %v4294 = vld [vmem:[%s4284 + $0x24] sm:$0xf]
      %v4295 = vld [vmem:[%s4284 + $0x28] sm:$0xf]
      %v4296 = vld [vmem:[%s4284 + $0x2c] sm:$0xf]
      %v4297 = vld [vmem:[%s4284 + $0x30] sm:$0xf]
      %v4298 = vld [vmem:[%s4284 + $0x34] sm:$0xf]
      %v4299 = vld [vmem:[%s4284 + $0x38] sm:$0xf]
      %v4300 = vld [vmem:[%s4284 + $0x3c] sm:$0xf]
      %v4301 = vld [vmem:[%s4284 + $0x40] sm:$0xf]
      %v4302 = vld [vmem:[%s4284 + $0x44] sm:$0xf]
      %v4303 = vld [vmem:[%s4284 + $0x48] sm:$0xf]
      %v4304 = vld [vmem:[%s4284 + $0x4c] sm:$0xf]
      %v4305 = vld [vmem:[%s4284 + $0x50] sm:$0xf]
      %v4306 = vld [vmem:[%s4284 + $0x54] sm:$0xf]
      %v4307 = vld [vmem:[%s4284 + $0x58] sm:$0xf]
      %v4308 = vld [vmem:[%s4284 + $0x5c] sm:$0xf]
      %v4333 = vunpack.c.l.b16 %v4285
      %v4334 = vunpack.c.l.b16 %v4286
      %v4335 = vunpack.c.l.b16 %v4287
      %v4336 = vunpack.c.l.b16 %v4288
      %v4337 = vunpack.c.l.b16 %v4289
      %v4338 = vunpack.c.l.b16 %v4290
      %v4339 = vunpack.c.l.b16 %v4291
      %v4340 = vunpack.c.l.b16 %v4292
      %v4341 = vunpack.c.l.b16 %v4293
      %v4342 = vunpack.c.l.b16 %v4294
      %v4343 = vunpack.c.l.b16 %v4295
      %v4344 = vunpack.c.l.b16 %v4296
      %v4345 = vunpack.c.l.b16 %v4297
      %v4346 = vunpack.c.l.b16 %v4298
      %v4347 = vunpack.c.l.b16 %v4299
      %v4348 = vunpack.c.l.b16 %v4300
      %v4349 = vunpack.c.l.b16 %v4301
      %v4350 = vunpack.c.l.b16 %v4302
      %v4351 = vunpack.c.l.b16 %v4303
      %v4352 = vunpack.c.l.b16 %v4304
      %v4353 = vunpack.c.l.b16 %v4305
      %v4354 = vunpack.c.l.b16 %v4306
      %v4355 = vunpack.c.l.b16 %v4307
      %v4356 = vunpack.c.l.b16 %v4308
      %v4357 = vpack.c.b16 %v4334, %v4333
      %v4358 = vpack.c.b16 %v4336, %v4335
      %v4359 = vpack.c.b16 %v4338, %v4337
      %v4360 = vpack.c.b16 %v4340, %v4339
      %v4361 = vpack.c.b16 %v4342, %v4341
      %v4362 = vpack.c.b16 %v4344, %v4343
      %v4363 = vpack.c.b16 %v4346, %v4345
      %v4364 = vpack.c.b16 %v4348, %v4347
      %v4365 = vpack.c.b16 %v4350, %v4349
      %v4366 = vpack.c.b16 %v4352, %v4351
      %v4367 = vpack.c.b16 %v4354, %v4353
      %v4368 = vpack.c.b16 %v4356, %v4355
      %4381 = vmatprep.subr.bf16.mxu0 0
      %4382 = vmatpush1.bf16.msra.mxu0 %v4364
      %4383 = vmatprep.subr.bf16.mxu0 0
      %4384 = vmatpush1.bf16.msra.mxu0 %v4363
      %4385 = vmatprep.subr.bf16.mxu0 0
      %4386 = vmatpush1.bf16.msra.mxu0 %v4362
      %4387 = vmatprep.subr.bf16.mxu0 0
      %4388 = vmatpush1.bf16.msra.mxu0 %v4361
      %4389 = vmatprep.subr.bf16.mxu0 0
      %4390 = vmatpush1.bf16.msra.mxu0 %v4360
      %4391 = vmatprep.subr.bf16.mxu0 0
      %4392 = vmatpush1.bf16.msra.mxu0 %v4359
      %4393 = vmatprep.subr.bf16.mxu0 0
      %4394 = vmatpush1.bf16.msra.mxu0 %v4358
      %4395 = vmatprep.subr.bf16.mxu0 0
      %4396 = vmatpush1.bf16.msra.mxu0 %v4357
      %4397 = vmatprep.subr.bf16.mxu0 0
      %4398 = vmatpush2.bf16.msra.mxu0 0
      %4399 = vmatprep.subr.bf16.mxu0 0
      %4400 = vmatpush2.bf16.msra.mxu0 0
      %4401 = vmatprep.subr.bf16.mxu0 0
      %4402 = vmatpush2.bf16.msra.mxu0 0
      %4403 = vmatprep.subr.bf16.mxu0 0
      %4404 = vmatpush2.bf16.msra.mxu0 0
      %4405 = vmatprep.subr.bf16.mxu0 0
      %4406 = vmatpush2.bf16.msra.mxu0 %v4368
      %4407 = vmatprep.subr.bf16.mxu0 0
      %4408 = vmatpush2.bf16.msra.mxu0 %v4367
      %4409 = vmatprep.subr.bf16.mxu0 0
      %4410 = vmatpush2.bf16.msra.mxu0 %v4366
      %4411 = vmatprep.subr.bf16.mxu0 0
      %4412 = vmatpush2.bf16.msra.mxu0 %v4365
      %4413 = vmatprep.mubr.bf16.mxu0 %v4235
      %4414 = vmatmul.mubr.bf16.gmra.mxu0 %v4132
      %v4415 = vpop.f32.mrf.mxu0
      %v4416 = vadd.f32 0.0, %v4415
      %v4417 = vpop.f32.mrf.mxu0
      %v4418 = vpop.f32.mrf.mxu0
      %v4419 = vadd.f32 0.0, %v4418
      %v4420 = vpop.f32.mrf.mxu0
      %4421 = vdwg.mxu0
      %v4422 = vpack.c.bf16 %v4419, %v4416
      %v4427 = vunpack.c.l.b16 %v4280
      %v4428 = vunpack.c.l.b16 %v4281
      %v4429 = vunpack.c.l.b16 %v4282
      %v4430 = vunpack.c.l.b16 %v4283
      %v4431 = vpack.c.b16 %v4428, %v4427
      %v4432 = vpack.c.b16 %v4430, %v4429
      %v4434 = vsel %vm1177, %v4431, 0
      %v4437 = vsel %vm1177, %v4432, 0
      %4439 = vmatprep.subr.bf16.mxu0 0
      %4440 = vmatpush1.bf16.msra.mxu0 0
      %4441 = vmatprep.subr.bf16.mxu0 0
      %4442 = vmatpush1.bf16.msra.mxu0 0
      %4443 = vmatprep.subr.bf16.mxu0 0
      %4444 = vmatpush1.bf16.msra.mxu0 0
      %4445 = vmatprep.subr.bf16.mxu0 0
      %4446 = vmatpush1.bf16.msra.mxu0 0
      %4447 = vmatprep.subr.bf16.mxu0 0
      %4448 = vmatpush1.bf16.msra.mxu0 0
      %4449 = vmatprep.subr.bf16.mxu0 0
      %4450 = vmatpush1.bf16.msra.mxu0 0
      %4451 = vmatprep.subr.bf16.mxu0 0
      %4452 = vmatpush1.bf16.msra.mxu0 0
      %4453 = vmatprep.subr.bf16.mxu0 0
      %4454 = vmatpush1.bf16.msra.mxu0 %v4422
      %4455 = vmatprep.subr.bf16.mxu0 0
      %4456 = vmatpush2.bf16.msra.mxu0 0
      %4457 = vmatprep.subr.bf16.mxu0 0
      %4458 = vmatpush2.bf16.msra.mxu0 0
      %4459 = vmatprep.subr.bf16.mxu0 0
      %4460 = vmatpush2.bf16.msra.mxu0 0
      %4461 = vmatprep.subr.bf16.mxu0 0
      %4462 = vmatpush2.bf16.msra.mxu0 0
      %4463 = vmatprep.subr.bf16.mxu0 0
      %4464 = vmatpush2.bf16.msra.mxu0 0
      %4465 = vmatprep.subr.bf16.mxu0 0
      %4466 = vmatpush2.bf16.msra.mxu0 0
      %4467 = vmatprep.subr.bf16.mxu0 0
      %4468 = vmatpush2.bf16.msra.mxu0 0
      %4469 = vmatprep.subr.bf16.mxu0 0
      %4470 = vmatpush2.bf16.msra.mxu0 0
      %4471 = vmatprep.mubr.bf16.mxu0 0
      %4472 = vmatmul.mubr.bf16.gmra.mxu0 %v4434
      %v4473 = vpop.f32.mrf.mxu0
      %v4474 = vadd.f32 0.0, %v4473
      %v4475 = vpop.f32.mrf.mxu0
      %v4476 = vpop.f32.mrf.mxu0
      %v4477 = vadd.f32 0.0, %v4476
      %v4478 = vpop.f32.mrf.mxu0
      %4479 = vmatprep.mubr.bf16.mxu0 0
      %4480 = vmatmul.mubr.bf16.gmra.mxu0 %v4437
      %v4481 = vpop.f32.mrf.mxu0
      %v4482 = vadd.f32 0.0, %v4481
      %v4483 = vpop.f32.mrf.mxu0
      %v4484 = vpop.f32.mrf.mxu0
      %v4485 = vadd.f32 0.0, %v4484
      %v4486 = vpop.f32.mrf.mxu0
      %4487 = vdwg.mxu0
      %v4492 = vunpack.c.l.b16 %v4134
      %v4493 = vunpack.c.l.b16 %v4135
      %v4494 = vunpack.c.l.b16 %v4136
      %v4495 = vunpack.c.l.b16 %v4137
      %v4496 = vpack.c.b16 %v4493, %v4492
      %v4497 = vpack.c.b16 %v4495, %v4494
      %v4499 = vsel %vm1177, %v4496, 0
      %v4502 = vsel %vm1177, %v4497, 0
      %4504 = vmatprep.subr.bf16.mxu0 0
      %4505 = vmatpush1.bf16.msra.mxu0 0
      %4506 = vmatprep.subr.bf16.mxu0 0
      %4507 = vmatpush1.bf16.msra.mxu0 0
      %4508 = vmatprep.subr.bf16.mxu0 0
      %4509 = vmatpush1.bf16.msra.mxu0 0
      %4510 = vmatprep.subr.bf16.mxu0 0
      %4511 = vmatpush1.bf16.msra.mxu0 0
      %4512 = vmatprep.subr.bf16.mxu0 0
      %4513 = vmatpush1.bf16.msra.mxu0 0
      %4514 = vmatprep.subr.bf16.mxu0 0
      %4515 = vmatpush1.bf16.msra.mxu0 0
      %4516 = vmatprep.subr.bf16.mxu0 0
      %4517 = vmatpush1.bf16.msra.mxu0 0
      %4518 = vmatprep.subr.bf16.mxu0 0
      %4519 = vmatpush1.bf16.msra.mxu0 %v4278
      %4520 = vmatprep.subr.bf16.mxu0 0
      %4521 = vmatpush2.bf16.msra.mxu0 0
      %4522 = vmatprep.subr.bf16.mxu0 0
      %4523 = vmatpush2.bf16.msra.mxu0 0
      %4524 = vmatprep.subr.bf16.mxu0 0
      %4525 = vmatpush2.bf16.msra.mxu0 0
      %4526 = vmatprep.subr.bf16.mxu0 0
      %4527 = vmatpush2.bf16.msra.mxu0 0
      %4528 = vmatprep.subr.bf16.mxu0 0
      %4529 = vmatpush2.bf16.msra.mxu0 0
      %4530 = vmatprep.subr.bf16.mxu0 0
      %4531 = vmatpush2.bf16.msra.mxu0 0
      %4532 = vmatprep.subr.bf16.mxu0 0
      %4533 = vmatpush2.bf16.msra.mxu0 0
      %4534 = vmatprep.subr.bf16.mxu0 0
      %4535 = vmatpush2.bf16.msra.mxu0 0
      %4536 = vmatprep.mubr.bf16.mxu0 0
      %4537 = vmatmul.mubr.bf16.gmra.mxu0 %v4499
      %v4538 = vpop.f32.mrf.mxu0
      %v4539 = vadd.f32 %v4474, %v4538
      %v4540 = vpop.f32.mrf.mxu0
      %v4541 = vpop.f32.mrf.mxu0
      %v4542 = vadd.f32 %v4477, %v4541
      %v4543 = vpop.f32.mrf.mxu0
      %4544 = vmatprep.mubr.bf16.mxu0 0
      %4545 = vmatmul.mubr.bf16.gmra.mxu0 %v4502
      %v4546 = vpop.f32.mrf.mxu0
      %v4547 = vadd.f32 %v4482, %v4546
      %v4548 = vpop.f32.mrf.mxu0
      %v4549 = vpop.f32.mrf.mxu0
      %v4550 = vadd.f32 %v4485, %v4549
      %v4551 = vpop.f32.mrf.mxu0
      %4552 = vdwg.mxu0
      %s4553 = scalar_lea.vmem %s16, 32
      %v4554 = vld [vmem:[%s4553] sm:$0xf]
      %v4555 = vld [vmem:[%s4553 + $0x4] sm:$0xf]
      %v4556 = vld [vmem:[%s4553 + $0x8] sm:$0xf]
      %v4557 = vld [vmem:[%s4553 + $0xc] sm:$0xf]
      %s4558 = scalar_lea.vmem %s17, 192
      %v4559 = vld [vmem:[%s4558] sm:$0xf]
      %v4560 = vld [vmem:[%s4558 + $0x4] sm:$0xf]
      %v4561 = vld [vmem:[%s4558 + $0x8] sm:$0xf]
      %v4562 = vld [vmem:[%s4558 + $0xc] sm:$0xf]
      %v4563 = vld [vmem:[%s4558 + $0x10] sm:$0xf]
      %v4564 = vld [vmem:[%s4558 + $0x14] sm:$0xf]
      %v4565 = vld [vmem:[%s4558 + $0x18] sm:$0xf]
      %v4566 = vld [vmem:[%s4558 + $0x1c] sm:$0xf]
      %v4567 = vld [vmem:[%s4558 + $0x20] sm:$0xf]
      %v4568 = vld [vmem:[%s4558 + $0x24] sm:$0xf]
      %v4569 = vld [vmem:[%s4558 + $0x28] sm:$0xf]
      %v4570 = vld [vmem:[%s4558 + $0x2c] sm:$0xf]
      %v4571 = vld [vmem:[%s4558 + $0x30] sm:$0xf]
      %v4572 = vld [vmem:[%s4558 + $0x34] sm:$0xf]
      %v4573 = vld [vmem:[%s4558 + $0x38] sm:$0xf]
      %v4574 = vld [vmem:[%s4558 + $0x3c] sm:$0xf]
      %v4575 = vld [vmem:[%s4558 + $0x40] sm:$0xf]
      %v4576 = vld [vmem:[%s4558 + $0x44] sm:$0xf]
      %v4577 = vld [vmem:[%s4558 + $0x48] sm:$0xf]
      %v4578 = vld [vmem:[%s4558 + $0x4c] sm:$0xf]
      %v4579 = vld [vmem:[%s4558 + $0x50] sm:$0xf]
      %v4580 = vld [vmem:[%s4558 + $0x54] sm:$0xf]
      %v4581 = vld [vmem:[%s4558 + $0x58] sm:$0xf]
      %v4582 = vld [vmem:[%s4558 + $0x5c] sm:$0xf]
      %v4607 = vunpack.c.l.b16 %v4559
      %v4608 = vunpack.c.l.b16 %v4560
      %v4609 = vunpack.c.l.b16 %v4561
      %v4610 = vunpack.c.l.b16 %v4562
      %v4611 = vunpack.c.l.b16 %v4563
      %v4612 = vunpack.c.l.b16 %v4564
      %v4613 = vunpack.c.l.b16 %v4565
      %v4614 = vunpack.c.l.b16 %v4566
      %v4615 = vunpack.c.l.b16 %v4567
      %v4616 = vunpack.c.l.b16 %v4568
      %v4617 = vunpack.c.l.b16 %v4569
      %v4618 = vunpack.c.l.b16 %v4570
      %v4619 = vunpack.c.l.b16 %v4571
      %v4620 = vunpack.c.l.b16 %v4572
      %v4621 = vunpack.c.l.b16 %v4573
      %v4622 = vunpack.c.l.b16 %v4574
      %v4623 = vunpack.c.l.b16 %v4575
      %v4624 = vunpack.c.l.b16 %v4576
      %v4625 = vunpack.c.l.b16 %v4577
      %v4626 = vunpack.c.l.b16 %v4578
      %v4627 = vunpack.c.l.b16 %v4579
      %v4628 = vunpack.c.l.b16 %v4580
      %v4629 = vunpack.c.l.b16 %v4581
      %v4630 = vunpack.c.l.b16 %v4582
      %v4631 = vpack.c.b16 %v4608, %v4607
      %v4632 = vpack.c.b16 %v4610, %v4609
      %v4633 = vpack.c.b16 %v4612, %v4611
      %v4634 = vpack.c.b16 %v4614, %v4613
      %v4635 = vpack.c.b16 %v4616, %v4615
      %v4636 = vpack.c.b16 %v4618, %v4617
      %v4637 = vpack.c.b16 %v4620, %v4619
      %v4638 = vpack.c.b16 %v4622, %v4621
      %v4639 = vpack.c.b16 %v4624, %v4623
      %v4640 = vpack.c.b16 %v4626, %v4625
      %v4641 = vpack.c.b16 %v4628, %v4627
      %v4642 = vpack.c.b16 %v4630, %v4629
      %4655 = vmatprep.subr.bf16.mxu0 0
      %4656 = vmatpush1.bf16.msra.mxu0 %v4638
      %4657 = vmatprep.subr.bf16.mxu0 0
      %4658 = vmatpush1.bf16.msra.mxu0 %v4637
      %4659 = vmatprep.subr.bf16.mxu0 0
      %4660 = vmatpush1.bf16.msra.mxu0 %v4636
      %4661 = vmatprep.subr.bf16.mxu0 0
      %4662 = vmatpush1.bf16.msra.mxu0 %v4635
      %4663 = vmatprep.subr.bf16.mxu0 0
      %4664 = vmatpush1.bf16.msra.mxu0 %v4634
      %4665 = vmatprep.subr.bf16.mxu0 0
      %4666 = vmatpush1.bf16.msra.mxu0 %v4633
      %4667 = vmatprep.subr.bf16.mxu0 0
      %4668 = vmatpush1.bf16.msra.mxu0 %v4632
      %4669 = vmatprep.subr.bf16.mxu0 0
      %4670 = vmatpush1.bf16.msra.mxu0 %v4631
      %4671 = vmatprep.subr.bf16.mxu0 0
      %4672 = vmatpush2.bf16.msra.mxu0 0
      %4673 = vmatprep.subr.bf16.mxu0 0
      %4674 = vmatpush2.bf16.msra.mxu0 0
      %4675 = vmatprep.subr.bf16.mxu0 0
      %4676 = vmatpush2.bf16.msra.mxu0 0
      %4677 = vmatprep.subr.bf16.mxu0 0
      %4678 = vmatpush2.bf16.msra.mxu0 0
      %4679 = vmatprep.subr.bf16.mxu0 0
      %4680 = vmatpush2.bf16.msra.mxu0 %v4642
      %4681 = vmatprep.subr.bf16.mxu0 0
      %4682 = vmatpush2.bf16.msra.mxu0 %v4641
      %4683 = vmatprep.subr.bf16.mxu0 0
      %4684 = vmatpush2.bf16.msra.mxu0 %v4640
      %4685 = vmatprep.subr.bf16.mxu0 0
      %4686 = vmatpush2.bf16.msra.mxu0 %v4639
      %4687 = vmatprep.mubr.bf16.mxu0 %v4235
      %4688 = vmatmul.mubr.bf16.gmra.mxu0 %v4132
      %v4689 = vpop.f32.mrf.mxu0
      %v4690 = vadd.f32 0.0, %v4689
      %v4691 = vpop.f32.mrf.mxu0
      %v4692 = vpop.f32.mrf.mxu0
      %v4693 = vadd.f32 0.0, %v4692
      %v4694 = vpop.f32.mrf.mxu0
      %4695 = vdwg.mxu0
      %v4696 = vpack.c.bf16 %v4693, %v4690
      %v4701 = vunpack.c.l.b16 %v4554
      %v4702 = vunpack.c.l.b16 %v4555
      %v4703 = vunpack.c.l.b16 %v4556
      %v4704 = vunpack.c.l.b16 %v4557
      %v4705 = vpack.c.b16 %v4702, %v4701
      %v4706 = vpack.c.b16 %v4704, %v4703
      %v4708 = vsel %vm1177, %v4705, 0
      %v4711 = vsel %vm1177, %v4706, 0
      %4713 = vmatprep.subr.bf16.mxu0 0
      %4714 = vmatpush1.bf16.msra.mxu0 0
      %4715 = vmatprep.subr.bf16.mxu0 0
      %4716 = vmatpush1.bf16.msra.mxu0 0
      %4717 = vmatprep.subr.bf16.mxu0 0
      %4718 = vmatpush1.bf16.msra.mxu0 0
      %4719 = vmatprep.subr.bf16.mxu0 0
      %4720 = vmatpush1.bf16.msra.mxu0 0
      %4721 = vmatprep.subr.bf16.mxu0 0
      %4722 = vmatpush1.bf16.msra.mxu0 0
      %4723 = vmatprep.subr.bf16.mxu0 0
      %4724 = vmatpush1.bf16.msra.mxu0 0
      %4725 = vmatprep.subr.bf16.mxu0 0
      %4726 = vmatpush1.bf16.msra.mxu0 0
      %4727 = vmatprep.subr.bf16.mxu0 0
      %4728 = vmatpush1.bf16.msra.mxu0 %v4696
      %4729 = vmatprep.subr.bf16.mxu0 0
      %4730 = vmatpush2.bf16.msra.mxu0 0
      %4731 = vmatprep.subr.bf16.mxu0 0
      %4732 = vmatpush2.bf16.msra.mxu0 0
      %4733 = vmatprep.subr.bf16.mxu0 0
      %4734 = vmatpush2.bf16.msra.mxu0 0
      %4735 = vmatprep.subr.bf16.mxu0 0
      %4736 = vmatpush2.bf16.msra.mxu0 0
      %4737 = vmatprep.subr.bf16.mxu0 0
      %4738 = vmatpush2.bf16.msra.mxu0 0
      %4739 = vmatprep.subr.bf16.mxu0 0
      %4740 = vmatpush2.bf16.msra.mxu0 0
      %4741 = vmatprep.subr.bf16.mxu0 0
      %4742 = vmatpush2.bf16.msra.mxu0 0
      %4743 = vmatprep.subr.bf16.mxu0 0
      %4744 = vmatpush2.bf16.msra.mxu0 0
      %4745 = vmatprep.mubr.bf16.mxu0 0
      %4746 = vmatmul.mubr.bf16.gmra.mxu0 %v4708
      %v4747 = vpop.f32.mrf.mxu0
      %v4748 = vadd.f32 0.0, %v4747
      %v4749 = vpop.f32.mrf.mxu0
      %v4750 = vpop.f32.mrf.mxu0
      %v4751 = vadd.f32 0.0, %v4750
      %v4752 = vpop.f32.mrf.mxu0
      %4753 = vmatprep.mubr.bf16.mxu0 0
      %4754 = vmatmul.mubr.bf16.gmra.mxu0 %v4711
      %v4755 = vpop.f32.mrf.mxu0
      %v4756 = vadd.f32 0.0, %v4755
      %v4757 = vpop.f32.mrf.mxu0
      %v4758 = vpop.f32.mrf.mxu0
      %v4759 = vadd.f32 0.0, %v4758
      %v4760 = vpop.f32.mrf.mxu0
      %4761 = vdwg.mxu0
      %v4762 = vadd.f32 %v4539, %v4748
      %v4763 = vadd.f32 %v4542, %v4751
      %v4764 = vadd.f32 %v4547, %v4756
      %v4765 = vadd.f32 %v4550, %v4759
      %v4766 = vld [vmem:[%s18] sm:$0x1]
      %v4768 = vlaneseq
      %v4769 = vshrl.u32 %v4768, 7
      %v4770 = vsub.s32 0, %v4769
      %v4771 = vrot.slane %v4766, %v4770
      %v4773 = vadd.f32 %v4762, %v4771
      %v4774 = vadd.f32 %v4763, %v4771
      %v4775 = vadd.f32 %v4764, %v4771
      %v4776 = vadd.f32 %v4765, %v4771
      %v4777 = vxor.u32 %v4773, 2147483648
      %v4778 = vxor.u32 %v4774, 2147483648
      %v4779 = vxor.u32 %v4775, 2147483648
      %v4780 = vxor.u32 %v4776, 2147483648
      %v4781 = vmul.f32 %v4777, 1.442695
      %v4782 = vpow.pop %v4781
      %v4783 = vmul.f32 %v4778, 1.442695
      %v4784 = vpow.pop %v4783
      %v4785 = vmul.f32 %v4779, 1.442695
      %v4786 = vpow.pop %v4785
      %v4787 = vmul.f32 %v4780, 1.442695
      %v4788 = vpow.pop %v4787
      %v4789 = vadd.f32 %v4782, 1.0
      %v4790 = vadd.f32 %v4784, 1.0
      %v4791 = vadd.f32 %v4786, 1.0
      %v4792 = vadd.f32 %v4788, 1.0
      %v4793 = vrcp.pop %v4789
      %v4794 = vmul.f32 1.0, %v4793
      %v4795 = vrcp.pop %v4790
      %v4796 = vmul.f32 1.0, %v4795
      %v4797 = vrcp.pop %v4791
      %v4798 = vmul.f32 1.0, %v4797
      %v4799 = vrcp.pop %v4792
      %v4800 = vmul.f32 1.0, %v4799
      %4801 = vst.msk [vmem:[%s602] sm:$0xff] %vm801, %v4794
      %4802 = vst.msk [vmem:[%s602 + $0x8] sm:$0xff] %vm801, %v4796
      %4803 = vst.msk [vmem:[%s602 + $0x10] sm:$0xff] %vm801, %v4798
      %4804 = vst.msk [vmem:[%s602 + $0x18] sm:$0xff] %vm801, %v4800
      %p4805 = scmp.lt.s32.totalorder %s30, 1
      %s4806 = scalar_select %p4805, %s30, 1
      %s4807 = smul.addr %s4806, 4
      %s4808 = smul.addr %s4807, 8
      %s4809 = scalar_lea.vmem %s19, %s4808
      // Predicated region
      $region97: #{vanilla_ae_forward.1} parent=95 // pred_check
        %p4810 = pneg %p452
      $region98: #{vanilla_ae_forward.1} parent=95 // pred_check_branch
        %4812 = sbr.rel (%p4810) target = $region100
      $region99: #{vanilla_ae_forward.1} parent=95 // pred_region
        _
      $region100: #{vanilla_ae_forward.1} parent=95 // pred_fallthru
        _
    $region96: #{vanilla_ae_forward.1} parent=5 // pred_fallthru
      _
    %p4813 = scmp.le.s32.totalorder 2, %s25
    // Predicated region
    $region101: #{vanilla_ae_forward.1} parent=5 // pred_check
      %p4814 = pneg %p4813
    $region102: #{vanilla_ae_forward.1} parent=5 // pred_check_branch
      %4816 = sbr.rel (%p4814) target = $region104
    $region103: #{vanilla_ae_forward.1} parent=5 // pred_region
      %s4817 = ssub.s32 %s25, 2
      // Predicated region
      $region105: #{vanilla_ae_forward.1} parent=103 // pred_check
        %p4818 = pneg %p458
      $region106: #{vanilla_ae_forward.1} parent=103 // pred_check_branch
        %4820 = sbr.rel (%p4818) target = $region108
      $region107: #{vanilla_ae_forward.1} parent=103 // pred_region
        %p4821 = scmp.lt.s32.totalorder %s31, 1
        %s4822 = scalar_select %p4821, %s31, 1
        %s4823 = smul.addr %s4822, 4
        %s4824 = smul.addr %s4823, 8
        %s4825 = scalar_lea.vmem %s19, %s4824
      $region108: #{vanilla_ae_forward.1} parent=103 // pred_fallthru
        _
    $region104: #{vanilla_ae_forward.1} parent=5 // pred_fallthru
      _
  $region6: #{vanilla_ae_forward.1} parent=0 // loop_footer
    %s29 = sadd.s32 1, %s25
  $region7: #{vanilla_ae_forward.1} parent=0 // loop_footer_branch
    %24 = sbr.rel target = $region3
  $region8: #{vanilla_ae_forward.1} parent=0 // loop_exit
    _

</llo_original>
